<compile_context>
chip_gen: v7x
topology: tpu7x:2x2x1
jax: 0.10.0
libtpu: 0.0.40
codegen_flags: <defaults>
</compile_context>

<pallas_src>
import numpy as np

import jax
import jax.numpy as jnp
from jax.experimental import pallas as pl
from jax.experimental.pallas import tpu as pltpu

D_IN = 32
H1 = 256
H2 = 128
EPS = 1e-5


# --------------------------------------------------------------------------
# Kernel
# --------------------------------------------------------------------------
def _mlp_kernel(x_ref, w1_ref, b1_ref, w2_ref, b2_ref, w3_ref, b3_ref, o_ref):
    f32 = jnp.float32
    # f32 path: force full-precision MXU passes (pl.dot's allow_tf32=False
    # equivalent); bf16 path: default single-pass bf16 with f32 accumulation.
    prec = (jax.lax.Precision.HIGHEST if w1_ref.dtype == f32
            else jax.lax.Precision.DEFAULT)

    # Cast x in VMEM after the DMA (x streams from HBM untouched, no pre-pass).
    x = x_ref[...].astype(w1_ref.dtype)

    # Layer 1 (+ folded BN1a/BN1b): (tb, 32) @ (32, 256); bias+ReLU in the
    # activation dtype (bf16 on v6e/v7x halves the largest intermediate).
    h = jnp.dot(x, w1_ref[...], preferred_element_type=f32, precision=prec)
    h = jnp.maximum(h.astype(b1_ref.dtype) + b1_ref[...], 0.0)

    # Layer 2 (+ folded BN2a/BN2b): (tb, 256) @ (256, 128)
    h = jnp.dot(h.astype(w2_ref.dtype), w2_ref[...],
                preferred_element_type=f32, precision=prec)
    h = jnp.maximum(h.astype(b2_ref.dtype) + b2_ref[...], 0.0)

    # Layer 3: single output unit.  Contract the folded w3 row against the
    # feature axis so the result lands directly as a lane-major (1, tb) row:
    # full-width stores and a dense 4 B/row writeback, no post-kernel gather.
    # (Perf note: if profiling shows Mosaic materialising a (tb, 128)
    # transpose of h here, switch to jnp.dot(h, w3_col) and relayout only the
    # (tb,)-element column instead.)
    o = jnp.einsum('od,bd->ob', w3_ref[...], h.astype(w3_ref.dtype),
                   preferred_element_type=f32, precision=prec)
    o_ref[...] = o + b3_ref[0]
    # Dropout(p) is the identity in eval mode.


# --------------------------------------------------------------------------
# Parameter folding (BatchNorm eval stats -> Linear weights/biases)
# --------------------------------------------------------------------------
def _bn_scale_shift(bn):
    gamma, beta, mean, var = bn
    scale = gamma / jnp.sqrt(var + EPS)
    return scale, beta - mean * scale


def fold_params(params, compute_dtype, act_dtype):
    """Fold the four eval-mode BatchNorms into the three Linear layers."""
    p = params
    s1a, t1a = _bn_scale_shift(p["bn1a"])
    s1b, t1b = _bn_scale_shift(p["bn1b"])
    s2a, t2a = _bn_scale_shift(p["bn2a"])
    s2b, t2b = _bn_scale_shift(p["bn2b"])

    w1f = p["w1"] * s1a[None, :]                         # (D_in, H1)
    b1f = p["b1"] * s1a + t1a                            # (H1,)
    w2f = (s1b[:, None] * p["w2"]) * s2a[None, :]        # (H1, H2)
    b2f = (t1b @ p["w2"] + p["b2"]) * s2a + t2a          # (H2,)
    w3f = s2b[:, None] * p["w3"]                         # (H2, 1)
    b3f = t2b @ p["w3"] + p["b3"]                        # (1,)

    return (w1f.astype(compute_dtype),
            b1f[None, :].astype(act_dtype),
            w2f.astype(compute_dtype),
            b2f[None, :].astype(act_dtype),
            w3f.T.astype(compute_dtype),                 # (1, H2) row
            b3f.astype(jnp.float32))                     # scalar (SMEM)


# --------------------------------------------------------------------------
# Wrapper
# --------------------------------------------------------------------------
def normalizing_mlp_forward(x, params, *, block_b=2048, use_bf16=True,
                            bf16_activations=None):
    """Fused eval-mode forward of NormalizingMLP.

    x: (N, input_size) float32.  Returns (N, 1) float32.
    block_b: batch rows per grid step (multiple of 128).  Default 2048; sweep
      2048-4096 for large N.  Keep n_blocks >= 2-4x the number of TensorCores
      (v7x has 2/chip) and block_b modest enough for v7x's 64 MiB VMEM
      (<= ~8192 with f32 activations, ~16384 with bf16 activations).
    use_bf16: bfloat16 matmul operands (f32 MXU accumulation).
    bf16_activations: keep the (block_b,256)/(block_b,128) activations in
      bf16 (bias+ReLU in bf16).  Defaults to use_bf16.  Pass False on v5e
      (no bf16 VPU there; bf16 elementwise wins nothing).
    Notes:
      * The ragged last batch block is handled by Pallas' partial-block DMA;
        rows past N produce garbage that is sliced off before returning -
        never read the raw kernel output.
      * The bf16 path rounds x itself to bf16 (in-kernel), slightly stricter
        than "bf16 matmul on f32 inputs" PyTorch-AMP-style semantics.
    """
    n, d_in = x.shape
    assert block_b % 128 == 0
    if bf16_activations is None:
        bf16_activations = use_bf16
    compute_dtype = jnp.bfloat16 if use_bf16 else jnp.float32
    act_dtype = jnp.bfloat16 if (use_bf16 and bf16_activations) else jnp.float32

    w1f, b1f, w2f, b2f, w3r, b3f = fold_params(params, compute_dtype, act_dtype)
    d_in_w, h1 = w1f.shape
    _, h2 = w2f.shape
    assert d_in == d_in_w

    n_blocks = pl.cdiv(n, block_b)

    in_specs = [
        pl.BlockSpec((block_b, d_in), lambda i: (i, 0)),    # x tile (streamed, ragged tail OK)
        pl.BlockSpec((d_in, h1), lambda i: (0, 0)),         # folded w1 (resident)
        pl.BlockSpec((1, h1), lambda i: (0, 0)),            # folded b1
        pl.BlockSpec((h1, h2), lambda i: (0, 0)),           # folded w2 (resident)
        pl.BlockSpec((1, h2), lambda i: (0, 0)),            # folded b2
        pl.BlockSpec((1, h2), lambda i: (0, 0)),            # folded w3 row
        pl.BlockSpec(memory_space=pltpu.MemorySpace.SMEM),  # scalar b3
    ]
    # Lane-dense output: one (1, block_b) row per grid step; the row-major
    # flattening of (n_blocks, 1, block_b) is exactly batch order.
    out_spec = pl.BlockSpec((None, 1, block_b), lambda i: (i, 0, 0))

    # Scoped-VMEM request sized from the actual buffers (v5e default is only
    # 16 MiB; request kept under v7x's 64 MiB physical VMEM).
    wb = jnp.dtype(compute_dtype).itemsize
    ab = jnp.dtype(act_dtype).itemsize
    est = (2 * block_b * d_in * 4                      # double-buffered x tile
           + 2 * (d_in * h1 + h1 * h2 + h2) * wb       # resident weights
           + 2 * (h1 + h2) * ab                        # biases
           + 2 * 8 * block_b * 4                       # output tile (8-sublane padded)
           + block_b * h1 * (4 + ab)                   # layer-1 activation (+ f32 acc)
           + block_b * h2 * (4 + ab))                  # layer-2 activation (+ f32 acc)
    vmem_limit = int(min(max(2 * est, 32 << 20), 60 << 20))

    out = pl.pallas_call(
        _mlp_kernel,
        out_shape=jax.ShapeDtypeStruct((n_blocks, 1, block_b), jnp.float32),
        grid_spec=pltpu.PrefetchScalarGridSpec(
            num_scalar_prefetch=0,
            grid=(n_blocks,),
            in_specs=in_specs,
            out_specs=out_spec,
        ),
        compiler_params=pltpu.CompilerParams(
            dimension_semantics=("parallel",),
            vmem_limit_bytes=vmem_limit),
    )(x, w1f, b1f, w2f, b2f, w3r, b3f)

    # Contiguous flatten (already batch order), drop the ragged tail, (N, 1).
    return out.reshape(-1)[:n, None]


# --------------------------------------------------------------------------
# Synthetic parameters + gold reference
# --------------------------------------------------------------------------
def make_params(key, input_size=D_IN):
    """Deterministic synthetic parameters matching NormalizingMLP shapes."""
    ks = jax.random.split(key, 7)

    def linear(k, fan_in, fan_out):
        bound = float(fan_in) ** -0.5
        w = jax.random.uniform(k, (fan_in, fan_out), jnp.float32, -bound, bound)
        b = jax.random.uniform(jax.random.fold_in(k, 1), (fan_out,),
                               jnp.float32, -bound, bound)
        return w, b

    def bn(k, f):
        gamma = 1.0 + 0.1 * jax.random.normal(k, (f,), jnp.float32)
        beta = 0.1 * jax.random.normal(jax.random.fold_in(k, 1), (f,), jnp.float32)
        mean = 0.1 * jax.random.normal(jax.random.fold_in(k, 2), (f,), jnp.float32)
        var = 1.0 + 0.1 * jax.random.uniform(jax.random.fold_in(k, 3), (f,),
                                             jnp.float32)
        return (gamma, beta, mean, var)

    w1, b1 = linear(ks[0], input_size, H1)
    w2, b2 = linear(ks[1], H1, H2)
    w3, b3 = linear(ks[2], H2, 1)
    return dict(w1=w1, b1=b1, bn1a=bn(ks[3], H1), bn1b=bn(ks[4], H1),
                w2=w2, b2=b2, bn2a=bn(ks[5], H2), bn2b=bn(ks[6], H2),
                w3=w3, b3=b3)


def reference_forward_f64(x, params):
    """Eval-mode NormalizingMLP forward in float64 numpy (gold reference)."""
    f64 = lambda a: np.asarray(a, np.float64)

    def bn(h, stats):
        g, b, m, v = map(f64, stats)
        return (h - m) / np.sqrt(v + EPS) * g + b

    h = f64(x) @ f64(params["w1"]) + f64(params["b1"])
    h = bn(h, params["bn1a"])
    h = np.maximum(h, 0.0)
    h = bn(h, params["bn1b"])
    h = h @ f64(params["w2"]) + f64(params["b2"])
    h = bn(h, params["bn2a"])
    h = np.maximum(h, 0.0)
    h = bn(h, params["bn2b"])
    return h @ f64(params["w3"]) + f64(params["b3"])   # Dropout = identity (eval)


# --------------------------------------------------------------------------
if __name__ == "__main__":
    key = jax.random.PRNGKey(0)
    kx, kp = jax.random.split(key)

    batch, input_size = 200, D_IN        # deliberately NOT a multiple of block_b
    x = jax.random.normal(kx, (batch, input_size), jnp.float32)
    params = make_params(kp, input_size)

    gold = reference_forward_f64(np.asarray(x), params)      # (batch, 1) f64

    # Small test: block_b=128 -> 2 grid steps, exercises the ragged last block.
    # For production-sized N keep the default block_b=2048 (sweep up to 4096).
    out_f32 = jax.block_until_ready(
        normalizing_mlp_forward(x, params, block_b=128, use_bf16=False))
    out_bf16 = jax.block_until_ready(
        normalizing_mlp_forward(x, params, block_b=128, use_bf16=True))

    assert out_f32.shape == (batch, 1) and out_bf16.shape == (batch, 1)

    scale = max(1.0, float(np.max(np.abs(gold))))
    err_f32 = float(np.max(np.abs(np.asarray(out_f32, np.float64) - gold)))
    err_bf16 = float(np.max(np.abs(np.asarray(out_bf16, np.float64) - gold)))
    # f32 path uses precision=HIGHEST -> tight tolerance (folding reassociation
    # only).  bf16 path: bf16 operands/activations with f32 accumulation.
    assert err_f32 <= 2e-3 * scale, f"f32 path mismatch: {err_f32}"
    assert err_bf16 <= 5e-2 * scale, f"bf16 path mismatch: {err_bf16}"

    print("KERNEL_OK")
</pallas_src>

<mosaic_0001>
module attributes {stable_mosaic.version = 11 : i64} {
  func.func @_mlp_kernel(%arg0: i32, %arg1: memref<128x32xf32, #tpu.memory_space<vmem>>, %arg2: memref<32x256xf32, #tpu.memory_space<vmem>>, %arg3: memref<1x256xf32, #tpu.memory_space<vmem>>, %arg4: memref<256x128xf32, #tpu.memory_space<vmem>>, %arg5: memref<1x128xf32, #tpu.memory_space<vmem>>, %arg6: memref<1x128xf32, #tpu.memory_space<vmem>>, %arg7: memref<1xf32, #tpu.memory_space<smem>>, %arg8: memref<1x1x128xf32, #tpu.memory_space<vmem>>) attributes {dimension_semantics = [#tpu.dimension_semantics<parallel>], iteration_bounds = array<i64: 2>, scalar_prefetch = 0 : i64, scratch_operands = 0 : i64, tpu.core_type = #tpu.core_type<tc>, window_params = [{transform_indices = @transform_0, window_bounds = array<i64: 128, 32>}, {pipeline_mode = #tpu.pipeline_mode<synchronous>, transform_indices = @transform_1, window_bounds = array<i64: 32, 256>}, {pipeline_mode = #tpu.pipeline_mode<synchronous>, transform_indices = @transform_2, window_bounds = array<i64: 1, 256>}, {pipeline_mode = #tpu.pipeline_mode<synchronous>, transform_indices = @transform_3, window_bounds = array<i64: 256, 128>}, {pipeline_mode = #tpu.pipeline_mode<synchronous>, transform_indices = @transform_4, window_bounds = array<i64: 1, 128>}, {pipeline_mode = #tpu.pipeline_mode<synchronous>, transform_indices = @transform_5, window_bounds = array<i64: 1, 128>}, {transform_indices = @transform_6, window_bounds = array<i64: 1>}, {transform_indices = @transform_7, window_bounds = array<i64: 1, 1, 128>}]} {
    %c0 = arith.constant 0 : index
    %c0_0 = arith.constant 0 : index
    %0 = vector.load %arg1[%c0, %c0_0] : memref<128x32xf32, #tpu.memory_space<vmem>>, vector<128x32xf32>
    %c0_1 = arith.constant 0 : index
    %c0_2 = arith.constant 0 : index
    %1 = vector.load %arg2[%c0_1, %c0_2] : memref<32x256xf32, #tpu.memory_space<vmem>>, vector<32x256xf32>
    %cst = arith.constant dense<0.000000e+00> : vector<128x256xf32>
    %2 = tpu.matmul %0, %1, %cst {dimension_numbers = #tpu.dot_dimension_numbers<[1], [0], [0], [1], [0, 0, 1, 1], [], []>, precision = #tpu.contract_precision<fp32>} : vector<128x32xf32>, vector<32x256xf32>, vector<128x256xf32> -> vector<128x256xf32>
    %c0_3 = arith.constant 0 : index
    %c0_4 = arith.constant 0 : index
    %3 = vector.load %arg3[%c0_3, %c0_4] : memref<1x256xf32, #tpu.memory_space<vmem>>, vector<1x256xf32>
    %4 = vector.broadcast %3 : vector<1x256xf32> to vector<128x256xf32>
    %5 = arith.addf %2, %4 : vector<128x256xf32>
    %cst_5 = arith.constant 0.000000e+00 : f32
    %6 = vector.broadcast %cst_5 : f32 to vector<128x256xf32>
    %7 = arith.maximumf %5, %6 : vector<128x256xf32>
    %c0_6 = arith.constant 0 : index
    %c0_7 = arith.constant 0 : index
    %8 = vector.load %arg4[%c0_6, %c0_7] : memref<256x128xf32, #tpu.memory_space<vmem>>, vector<256x128xf32>
    %cst_8 = arith.constant dense<0.000000e+00> : vector<128x128xf32>
    %9 = tpu.matmul %7, %8, %cst_8 {dimension_numbers = #tpu.dot_dimension_numbers<[1], [0], [0], [1], [0, 0, 1, 1], [], []>, precision = #tpu.contract_precision<fp32>} : vector<128x256xf32>, vector<256x128xf32>, vector<128x128xf32> -> vector<128x128xf32>
    %c0_9 = arith.constant 0 : index
    %c0_10 = arith.constant 0 : index
    %10 = vector.load %arg5[%c0_9, %c0_10] : memref<1x128xf32, #tpu.memory_space<vmem>>, vector<1x128xf32>
    %11 = vector.broadcast %10 : vector<1x128xf32> to vector<128x128xf32>
    %12 = arith.addf %9, %11 : vector<128x128xf32>
    %cst_11 = arith.constant 0.000000e+00 : f32
    %13 = vector.broadcast %cst_11 : f32 to vector<128x128xf32>
    %14 = arith.maximumf %12, %13 : vector<128x128xf32>
    %c0_12 = arith.constant 0 : index
    %c0_13 = arith.constant 0 : index
    %15 = vector.load %arg6[%c0_12, %c0_13] : memref<1x128xf32, #tpu.memory_space<vmem>>, vector<1x128xf32>
    "tpu.trace_start"() <{level = 10 : i32, message = "od,bd->ob"}> : () -> ()
    %cst_14 = arith.constant dense<0.000000e+00> : vector<1x128xf32>
    %16 = tpu.matmul %15, %14, %cst_14 {dimension_numbers = #tpu.dot_dimension_numbers<[1], [1], [0], [0], [0, 0, 1, 0], [], []>, precision = #tpu.contract_precision<fp32>} : vector<1x128xf32>, vector<128x128xf32>, vector<1x128xf32> -> vector<1x128xf32>
    "tpu.trace_stop"() : () -> ()
    %c0_15 = arith.constant 0 : index
    %17 = memref.load %arg7[%c0_15] : memref<1xf32, #tpu.memory_space<smem>>
    %18 = vector.broadcast %17 : f32 to vector<1x128xf32>
    %19 = arith.addf %16, %18 : vector<1x128xf32>
    %c0_16 = arith.constant 0 : index
    %c0_17 = arith.constant 0 : index
    %c0_18 = arith.constant 0 : index
    %20 = vector.load %arg8[%c0_16, %c0_17, %c0_18] : memref<1x1x128xf32, #tpu.memory_space<vmem>>, vector<1x1x128xf32>
    %21 = vector.shape_cast %20 : vector<1x1x128xf32> to vector<1x128xf32>
    %22 = vector.shape_cast %19 : vector<1x128xf32> to vector<1x1x128xf32>
    tpu.vector_store %arg8[%c0_16, %c0_17, %c0_18], %22 {strides = array<i32>} : memref<1x1x128xf32, #tpu.memory_space<vmem>>, vector<1x1x128xf32>,
    return
  }
  func.func @transform_0(%arg0: i32) -> (i32, i32) {
    %c0_i32 = arith.constant 0 : i32
    %c0_i32_0 = arith.constant 0 : i32
    return %arg0, %c0_i32 : i32, i32
  }
  func.func @transform_1(%arg0: i32) -> (i32, i32) {
    %c0_i32 = arith.constant 0 : i32
    %c0_i32_0 = arith.constant 0 : i32
    %c0_i32_1 = arith.constant 0 : i32
    return %c0_i32, %c0_i32_0 : i32, i32
  }
  func.func @transform_2(%arg0: i32) -> (i32, i32) {
    %c0_i32 = arith.constant 0 : i32
    %c0_i32_0 = arith.constant 0 : i32
    %c0_i32_1 = arith.constant 0 : i32
    return %c0_i32, %c0_i32_0 : i32, i32
  }
  func.func @transform_3(%arg0: i32) -> (i32, i32) {
    %c0_i32 = arith.constant 0 : i32
    %c0_i32_0 = arith.constant 0 : i32
    %c0_i32_1 = arith.constant 0 : i32
    return %c0_i32, %c0_i32_0 : i32, i32
  }
  func.func @transform_4(%arg0: i32) -> (i32, i32) {
    %c0_i32 = arith.constant 0 : i32
    %c0_i32_0 = arith.constant 0 : i32
    %c0_i32_1 = arith.constant 0 : i32
    return %c0_i32, %c0_i32_0 : i32, i32
  }
  func.func @transform_5(%arg0: i32) -> (i32, i32) {
    %c0_i32 = arith.constant 0 : i32
    %c0_i32_0 = arith.constant 0 : i32
    %c0_i32_1 = arith.constant 0 : i32
    return %c0_i32, %c0_i32_0 : i32, i32
  }
  func.func @transform_6(%arg0: i32) -> i32 {
    %c0_i32 = arith.constant 0 : i32
    %c0_i32_0 = arith.constant 0 : i32
    return %c0_i32 : i32
  }
  func.func @transform_7(%arg0: i32) -> (i32, i32, i32) {
    %c0_i32 = arith.constant 0 : i32
    %c0_i32_0 = arith.constant 0 : i32
    %c0_i32_1 = arith.constant 0 : i32
    return %arg0, %c0_i32, %c0_i32_0 : i32, i32, i32
  }
}

</mosaic_0001>

<llo_original>
// kernel: tpu_custom_call.1
$region0: #{tpu_custom_call.1}
  #allocation0 [shape = 'u32[]', space=smem, size = 0x4, offset = 0x4, fixed_abs, tag = 'smem constant byte address 0x4 - core index']
  #allocation1 [shape = 'u32[144,128]{1,0:T(1,128)}', space=vmem, size = 0x12000, scoped, tag = 'internal scratch']
  #allocation2 [shape = 'f32[1]{0:T(128)S(6)}', space=smem, size = 0x200, scoped, tag = 'scoped memory for tpu_custom_call.1']
  %s0 = inlined_call_operand.vmem [shape: f32[200,32], index: 0, kind: input, shape index: {}]
  %s1 = inlined_call_operand.hbm [shape: f32[32,256], index: 1, kind: input, shape index: {}]
  %s2 = inlined_call_operand.vmem [shape: f32[1,256], index: 2, kind: input, shape index: {}]
  %s3 = inlined_call_operand.vmem [shape: f32[256,128], index: 3, kind: input, shape index: {}]
  %s4 = inlined_call_operand.vmem [shape: f32[1,128], index: 4, kind: input, shape index: {}]
  %s5 = inlined_call_operand.vmem [shape: f32[1,128], index: 5, kind: input, shape index: {}]
  %s6 = inlined_call_operand.<no memory space> [shape: f32[1], index: 6, kind: input, shape index: {}]
  %s7 = inlined_call_operand.hbm [shape: f32[2,1,128], index: 7, kind: output, shape index: {}]
  %s8 = sld [smem:[#allocation0]]
  $region65: #{tpu_custom_call.1} parent=0
    _
  %s10 = ssub.s32 1, %s8
  %s11 = scalar_select 0, %s10, %s8
  %12 = sst [smem:[#allocation2]] %s6
  $region1: #{tpu_custom_call.1} parent=0
    #allocation3 [shape = 'u8[32768]{0}', space=vmem, size = 0x8000, scoped, tag = 'input window, operand 1, single buffered']
    #allocation4 [shape = 's32[2]{0}', space=sflag, size = 0x8, scoped, tag = 'scoped memory for tpu_custom_call.1']
    #allocation5 [shape = 's32[2]{0}', space=sflag, size = 0x8, scoped, tag = 'scoped memory for tpu_custom_call.1']
    #allocation6 [shape = 'u8[1024]{0}', space=vmem, size = 0x400, scoped, tag = 'output window, operand 0']
    %13 = vsyncpa [#allocation4], 0
    %14 = vsyncpa [#allocation5], 0
    %s15 = scalar_lea.sflag [#allocation5], 1
    %16 = vsyncpa %s15, 0
    loop: start=0, step=1, limit=4
    $region2: #{tpu_custom_call.1} parent=1 // loop_pre_header
      _
    $region3: #{tpu_custom_call.1} parent=1 // loop_header
      %s18 = sphi 0, %s22
      %p19 = scmp.ge.s32.totalorder %s18, 4
      %s28 = sphi 0, %s30
      %s31 = sphi 0, %s28
      %s32 = sphi 0, %s31
      %s48 = sphi 0, %s32
      %s52 = sphi 0, %s52
      %s54 = sphi 0, %s52
      %s55 = sphi 0, %s54
      %s69 = sphi 0, %s55
      %s73 = sphi 0, %s73
      %s75 = sphi 0, %s73
      %s76 = sphi 0, %s75
      %s90 = sphi 0, %s76
      %s94 = sphi 0, %s94
      %s96 = sphi 0, %s94
      %s97 = sphi 0, %s96
      %s111 = sphi 0, %s97
      %s115 = sphi 0, %s115
      %s117 = sphi 0, %s115
      %s118 = sphi 0, %s117
      %s132 = sphi 0, %s118
      %s136 = sphi 0, %s136
      %s138 = sphi 0, %s136
      %s139 = sphi 0, %s138
      %s153 = sphi 0, %s139
      %s157 = sphi 0, %s157
      %s159 = sphi 0, %s157
      %s160 = sphi 0, %s159
      %s174 = sphi 0, %s160
      %s180 = sphi 0, %s182
      %s183 = sphi 0, %s180
      %s184 = sphi 0, %s183
      %s200 = sphi 0, %s184
    $region4: #{tpu_custom_call.1} parent=1 // loop_header_branch
      %21 = sbr.rel (%p19) target = $region8
    $region5: #{tpu_custom_call.1} parent=1 // loop_body
      %s23 = ssub.s32 %s18, 1
      %s24 = ssub.s32 %s18, 2
      %s25 = sadd.s32 %s18, 1
      %s26 = ssub.s32 %s18, %s25
      %p27 = scmp.eq.s32.totalorder %s26, 0
      %s29 = sadd.s32 %s28, 1
      %s30 = scalar_select %p27, %s28, %s29
      %p33 = pneg %p27
      %p34 = scmp.eq.s32.totalorder %s18, 1
      %p35 = por %p33, %p34
      %p36 = scmp.ne.s32.totalorder %s28, %s31
      %p37 = scmp.eq.s32.totalorder %s18, 0
      %p38 = por %p36, %p37
      %p39 = scmp.ne.s32.totalorder %s28, %s31
      %p40 = scmp.eq.s32.totalorder %s23, 1
      %p41 = por %p39, %p40
      %p42 = scmp.ne.s32.totalorder %s31, %s32
      %p43 = scmp.eq.s32.totalorder %s23, 0
      %p44 = por %p42, %p43
      %p45 = scmp.ne.s32.totalorder %s31, %s32
      %p46 = scmp.eq.s32.totalorder %s24, 1
      %p47 = por %p45, %p46
      %p49 = scmp.ne.s32.totalorder %s32, %s48
      %p50 = scmp.eq.s32.totalorder %s24, 0
      %p51 = por %p49, %p50
      %s53 = sadd.s32 %s52, 1
      %p56 = scmp.eq.s32.totalorder %s18, 1
      %p57 = scmp.ne.s32.totalorder %s52, %s54
      %p58 = scmp.eq.s32.totalorder %s18, 0
      %p59 = por %p57, %p58
      %p60 = scmp.ne.s32.totalorder %s52, %s54
      %p61 = scmp.eq.s32.totalorder %s23, 1
      %p62 = por %p60, %p61
      %p63 = scmp.ne.s32.totalorder %s54, %s55
      %p64 = scmp.eq.s32.totalorder %s23, 0
      %p65 = por %p63, %p64
      %p66 = scmp.ne.s32.totalorder %s54, %s55
      %p67 = scmp.eq.s32.totalorder %s24, 1
      %p68 = por %p66, %p67
      %p70 = scmp.ne.s32.totalorder %s55, %s69
      %p71 = scmp.eq.s32.totalorder %s24, 0
      %p72 = por %p70, %p71
      %s74 = sadd.s32 %s73, 1
      %p77 = scmp.eq.s32.totalorder %s18, 1
      %p78 = scmp.ne.s32.totalorder %s73, %s75
      %p79 = scmp.eq.s32.totalorder %s18, 0
      %p80 = por %p78, %p79
      %p81 = scmp.ne.s32.totalorder %s73, %s75
      %p82 = scmp.eq.s32.totalorder %s23, 1
      %p83 = por %p81, %p82
      %p84 = scmp.ne.s32.totalorder %s75, %s76
      %p85 = scmp.eq.s32.totalorder %s23, 0
      %p86 = por %p84, %p85
      %p87 = scmp.ne.s32.totalorder %s75, %s76
      %p88 = scmp.eq.s32.totalorder %s24, 1
      %p89 = por %p87, %p88
      %p91 = scmp.ne.s32.totalorder %s76, %s90
      %p92 = scmp.eq.s32.totalorder %s24, 0
      %p93 = por %p91, %p92
      %s95 = sadd.s32 %s94, 1
      %p98 = scmp.eq.s32.totalorder %s18, 1
      %p99 = scmp.ne.s32.totalorder %s94, %s96
      %p100 = scmp.eq.s32.totalorder %s18, 0
      %p101 = por %p99, %p100
      %p102 = scmp.ne.s32.totalorder %s94, %s96
      %p103 = scmp.eq.s32.totalorder %s23, 1
      %p104 = por %p102, %p103
      %p105 = scmp.ne.s32.totalorder %s96, %s97
      %p106 = scmp.eq.s32.totalorder %s23, 0
      %p107 = por %p105, %p106
      %p108 = scmp.ne.s32.totalorder %s96, %s97
      %p109 = scmp.eq.s32.totalorder %s24, 1
      %p110 = por %p108, %p109
      %p112 = scmp.ne.s32.totalorder %s97, %s111
      %p113 = scmp.eq.s32.totalorder %s24, 0
      %p114 = por %p112, %p113
      %s116 = sadd.s32 %s115, 1
      %p119 = scmp.eq.s32.totalorder %s18, 1
      %p120 = scmp.ne.s32.totalorder %s115, %s117
      %p121 = scmp.eq.s32.totalorder %s18, 0
      %p122 = por %p120, %p121
      %p123 = scmp.ne.s32.totalorder %s115, %s117
      %p124 = scmp.eq.s32.totalorder %s23, 1
      %p125 = por %p123, %p124
      %p126 = scmp.ne.s32.totalorder %s117, %s118
      %p127 = scmp.eq.s32.totalorder %s23, 0
      %p128 = por %p126, %p127
      %p129 = scmp.ne.s32.totalorder %s117, %s118
      %p130 = scmp.eq.s32.totalorder %s24, 1
      %p131 = por %p129, %p130
      %p133 = scmp.ne.s32.totalorder %s118, %s132
      %p134 = scmp.eq.s32.totalorder %s24, 0
      %p135 = por %p133, %p134
      %s137 = sadd.s32 %s136, 1
      %p140 = scmp.eq.s32.totalorder %s18, 1
      %p141 = scmp.ne.s32.totalorder %s136, %s138
      %p142 = scmp.eq.s32.totalorder %s18, 0
      %p143 = por %p141, %p142
      %p144 = scmp.ne.s32.totalorder %s136, %s138
      %p145 = scmp.eq.s32.totalorder %s23, 1
      %p146 = por %p144, %p145
      %p147 = scmp.ne.s32.totalorder %s138, %s139
      %p148 = scmp.eq.s32.totalorder %s23, 0
      %p149 = por %p147, %p148
      %p150 = scmp.ne.s32.totalorder %s138, %s139
      %p151 = scmp.eq.s32.totalorder %s24, 1
      %p152 = por %p150, %p151
      %p154 = scmp.ne.s32.totalorder %s139, %s153
      %p155 = scmp.eq.s32.totalorder %s24, 0
      %p156 = por %p154, %p155
      %s158 = sadd.s32 %s157, 1
      %p161 = scmp.eq.s32.totalorder %s18, 1
      %p162 = scmp.ne.s32.totalorder %s157, %s159
      %p163 = scmp.eq.s32.totalorder %s18, 0
      %p164 = por %p162, %p163
      %p165 = scmp.ne.s32.totalorder %s157, %s159
      %p166 = scmp.eq.s32.totalorder %s23, 1
      %p167 = por %p165, %p166
      %p168 = scmp.ne.s32.totalorder %s159, %s160
      %p169 = scmp.eq.s32.totalorder %s23, 0
      %p170 = por %p168, %p169
      %p171 = scmp.ne.s32.totalorder %s159, %s160
      %p172 = scmp.eq.s32.totalorder %s24, 1
      %p173 = por %p171, %p172
      %p175 = scmp.ne.s32.totalorder %s160, %s174
      %p176 = scmp.eq.s32.totalorder %s24, 0
      %p177 = por %p175, %p176
      %s178 = ssub.s32 %s18, %s25
      %p179 = scmp.eq.s32.totalorder %s178, 0
      %s181 = sadd.s32 %s180, 1
      %s182 = scalar_select %p179, %s180, %s181
      %p185 = pneg %p179
      %p186 = scmp.eq.s32.totalorder %s18, 1
      %p187 = por %p185, %p186
      %p188 = scmp.ne.s32.totalorder %s180, %s183
      %p189 = scmp.eq.s32.totalorder %s18, 0
      %p190 = por %p188, %p189
      %p191 = scmp.ne.s32.totalorder %s180, %s183
      %p192 = scmp.eq.s32.totalorder %s23, 1
      %p193 = por %p191, %p192
      %p194 = scmp.ne.s32.totalorder %s183, %s184
      %p195 = scmp.eq.s32.totalorder %s23, 0
      %p196 = por %p194, %p195
      %p197 = scmp.ne.s32.totalorder %s183, %s184
      %p198 = scmp.eq.s32.totalorder %s24, 1
      %p199 = por %p197, %p198
      %p201 = scmp.ne.s32.totalorder %s184, %s200
      %p202 = scmp.eq.s32.totalorder %s24, 0
      %p203 = por %p201, %p202
      %p204 = scmp.le.s32.totalorder 1, %s18
      %p205 = scmp.lt.s32.totalorder %s18, 3
      %p206 = pnand %p204, %p205
      %p207 = pneg %p206
      // Predicated region
      $region9: #{tpu_custom_call.1} parent=5 // pred_check
        _
      $region10: #{tpu_custom_call.1} parent=5 // pred_check_branch
        %209 = sbr.rel (%p206) target = $region12
      $region11: #{tpu_custom_call.1} parent=5 // pred_region
        %s210 = ssub.s32 %s18, 1
        // Predicated region
        $region13: #{tpu_custom_call.1} parent=11 // pred_check
          %p211 = pneg %p65
        $region14: #{tpu_custom_call.1} parent=11 // pred_check_branch
          %213 = sbr.rel (%p211) target = $region16
        $region15: #{tpu_custom_call.1} parent=11 // pred_region
          %s215 = ssub.s32 1024, 1024
          %216 = vsyncadd [#allocation4], %s215
          %s217 = sshll.u32 [#allocation3], 4
          %s218 = int_to_ptr.vmem [resolvable:$true] %s217
          %223 = dma.hbm_to_vmem [thread:$0]  %s1, 1024, %s218, [#allocation4], 256, 256, 16
        $region16: #{tpu_custom_call.1} parent=11 // pred_fallthru
          _
        // Predicated region
        $region17: #{tpu_custom_call.1} parent=11 // pred_check
          %p224 = pneg %p86
        $region18: #{tpu_custom_call.1} parent=11 // pred_check_branch
          %226 = sbr.rel (%p224) target = $region20
        $region19: #{tpu_custom_call.1} parent=11 // pred_region
          _
        $region20: #{tpu_custom_call.1} parent=11 // pred_fallthru
          _
        // Predicated region
        $region21: #{tpu_custom_call.1} parent=11 // pred_check
          %p227 = pneg %p107
        $region22: #{tpu_custom_call.1} parent=11 // pred_check_branch
          %229 = sbr.rel (%p227) target = $region24
        $region23: #{tpu_custom_call.1} parent=11 // pred_region
          _
        $region24: #{tpu_custom_call.1} parent=11 // pred_fallthru
          _
        // Predicated region
        $region25: #{tpu_custom_call.1} parent=11 // pred_check
          %p230 = pneg %p128
        $region26: #{tpu_custom_call.1} parent=11 // pred_check_branch
          %232 = sbr.rel (%p230) target = $region28
        $region27: #{tpu_custom_call.1} parent=11 // pred_region
          _
        $region28: #{tpu_custom_call.1} parent=11 // pred_fallthru
          _
        // Predicated region
        $region29: #{tpu_custom_call.1} parent=11 // pred_check
          %p233 = pneg %p149
        $region30: #{tpu_custom_call.1} parent=11 // pred_check_branch
          %235 = sbr.rel (%p233) target = $region32
        $region31: #{tpu_custom_call.1} parent=11 // pred_region
          _
        $region32: #{tpu_custom_call.1} parent=11 // pred_fallthru
          _
        // Predicated region
        $region33: #{tpu_custom_call.1} parent=11 // pred_check
          %p236 = pneg %p170
        $region34: #{tpu_custom_call.1} parent=11 // pred_check_branch
          %238 = sbr.rel (%p236) target = $region36
        $region35: #{tpu_custom_call.1} parent=11 // pred_region
          _
        $region36: #{tpu_custom_call.1} parent=11 // pred_fallthru
          _
      $region12: #{tpu_custom_call.1} parent=5 // pred_fallthru
        _
      %p239 = scmp.lt.s32.totalorder %s18, 2
      // Predicated region
      $region37: #{tpu_custom_call.1} parent=5 // pred_check
        %p240 = pneg %p239
      $region38: #{tpu_custom_call.1} parent=5 // pred_check_branch
        %242 = sbr.rel (%p240) target = $region40
      $region39: #{tpu_custom_call.1} parent=5 // pred_region
        // Predicated region
        $region41: #{tpu_custom_call.1} parent=39 // pred_check
          %p243 = pneg %p38
        $region42: #{tpu_custom_call.1} parent=39 // pred_check_branch
          %245 = sbr.rel (%p243) target = $region44
        $region43: #{tpu_custom_call.1} parent=39 // pred_region
          %s246 = smul.u32 16, %s18
          %s247 = ssub.s32 25, %s246
          %p248 = scmp.lt.s32.totalorder %s247, 16
          %s249 = scalar_select %p248, %s247, 16
          %s250 = smul.u32 128, %s249
          %p251 = scmp.lt.s32.totalorder %s246, 24
          %s252 = scalar_select %p251, %s246, 24
          %s253 = smul.addr %s252, 8
          %s254 = scalar_lea.vmem %s0, %s253
          %s255 = smul.u32 16, %s18
          %s256 = ssub.s32 25, %s255
          %p257 = scmp.lt.s32.totalorder %s256, 16
          %s258 = scalar_select %p257, %s256, 16
          %s259 = smul.u32 128, %s258
        $region44: #{tpu_custom_call.1} parent=39 // pred_fallthru
          _
      $region40: #{tpu_custom_call.1} parent=5 // pred_fallthru
        _
      %p260 = scmp.le.s32.totalorder 1, %s18
      %p261 = scmp.lt.s32.totalorder %s18, 3
      %p262 = pnand %p260, %p261
      %p263 = pneg %p262
      // Predicated region
      $region45: #{tpu_custom_call.1} parent=5 // pred_check
        _
      $region46: #{tpu_custom_call.1} parent=5 // pred_check_branch
        %265 = sbr.rel (%p262) target = $region48
      $region47: #{tpu_custom_call.1} parent=5 // pred_region
        %s266 = ssub.s32 %s18, 1
        // Predicated region
        $region49: #{tpu_custom_call.1} parent=47 // pred_check
          %p267 = pneg %p65
        $region50: #{tpu_custom_call.1} parent=47 // pred_check_branch
          %269 = sbr.rel (%p267) target = $region52
        $region51: #{tpu_custom_call.1} parent=47 // pred_region
          %270 = dma.done [#allocation4], 1024
        $region52: #{tpu_custom_call.1} parent=47 // pred_fallthru
          _
        %s271 = smul.u32 16, %s23
        %s272 = ssub.s32 25, %s271
        %p273 = scmp.lt.s32.totalorder %s272, 16
        %s274 = scalar_select %p273, %s272, 16
        %s275 = smul.u32 128, %s274
        %p276 = scmp.lt.s32.totalorder %s271, 24
        %s277 = scalar_select %p276, %s271, 24
        %s278 = smul.addr %s277, 8
        %s279 = scalar_lea.vmem %s0, %s278
        %p280 = pneg %p44
        %p281 = pneg %p41
        %p282 = pneg %p65
        %p283 = pneg %p62
        %p284 = pneg %p86
        %p285 = pneg %p83
        %p286 = pneg %p107
        %p287 = pneg %p104
        %p288 = pneg %p128
        %p289 = pneg %p125
        %p290 = pneg %p149
        %p291 = pneg %p146
        %p292 = pneg %p170
        %p293 = pneg %p167
        %p294 = pneg %p196
        %p295 = pneg %p193
        %s296 = sand.u32 %s183, 1
        %s297 = scalar_lea.sflag [#allocation5], %s296
        %s298 = sand.u32 %s183, 1
        %s299 = scalar_lea.vmem [#allocation6], %s298
        %s300 = smul.u32 16, %s23
        %s301 = ssub.s32 25, %s300
        %p302 = scmp.lt.s32.totalorder %s301, 16
        %s303 = scalar_select %p302, %s301, 16
        %s304 = smul.u32 128, %s303
        %p305 = scmp.lt.s32.totalorder %s300, 24
        %s306 = scalar_select %p305, %s300, 24
        %s307 = smul.addr %s306, 8
        %s308 = scalar_lea.vmem %s0, %s307
        %s309 = smul.u32 16, %s23
        %s310 = ssub.s32 25, %s309
        %p311 = scmp.lt.s32.totalorder %s310, 16
        %s312 = scalar_select %p311, %s310, 16
        %s313 = smul.u32 128, %s312
        %v314 = vld [vmem:[%s308] sm:$0xff]
        %v315 = vld [vmem:[%s308 + $0x8] sm:$0xff]
        %v316 = vld [vmem:[%s308 + $0x10] sm:$0xff]
        %v317 = vld [vmem:[%s308 + $0x18] sm:$0xff]
        %v318 = vld [vmem:[%s308 + $0x20] sm:$0xff]
        %v319 = vld [vmem:[%s308 + $0x28] sm:$0xff]
        %v320 = vld [vmem:[%s308 + $0x30] sm:$0xff]
        %v321 = vld [vmem:[%s308 + $0x38] sm:$0xff]
        %v322 = vld [vmem:[%s308 + $0x40] sm:$0xff]
        %v323 = vld [vmem:[%s308 + $0x48] sm:$0xff]
        %v324 = vld [vmem:[%s308 + $0x50] sm:$0xff]
        %v325 = vld [vmem:[%s308 + $0x58] sm:$0xff]
        %v326 = vld [vmem:[%s308 + $0x60] sm:$0xff]
        %v327 = vld [vmem:[%s308 + $0x68] sm:$0xff]
        %v328 = vld [vmem:[%s308 + $0x70] sm:$0xff]
        %v329 = vld [vmem:[%s308 + $0x78] sm:$0xff]
        %v330 = vld [vmem:[#allocation3] sm:$0xff]
        %v331 = vld [vmem:[#allocation3 + $0x8] sm:$0xff]
        %v332 = vld [vmem:[#allocation3 + $0x10] sm:$0xff]
        %v333 = vld [vmem:[#allocation3 + $0x18] sm:$0xff]
        %v334 = vld [vmem:[#allocation3 + $0x20] sm:$0xff]
        %v335 = vld [vmem:[#allocation3 + $0x28] sm:$0xff]
        %v336 = vld [vmem:[#allocation3 + $0x30] sm:$0xff]
        %v337 = vld [vmem:[#allocation3 + $0x38] sm:$0xff]
        %v338 = vld [vmem:[%s2] sm:$0x3]
        %v340 = vlaneseq
        %v341 = vshrl.u32 %v340, 7
        %v342 = vsub.s32 0, %v341
        %v343 = vrot.slane %v338, %v342
        %v344 = vlaneseq
        %v345 = vshrl.u32 %v344, 7
        %v346 = vsub.s32 1, %v345
        %v347 = vrot.slane %v338, %v346
        %vm350 = vcmask 261120
        %v352 = vsel %vm350, %v314, 0
        %v355 = vsel %vm350, %v315, 0
        %v358 = vsel %vm350, %v316, 0
        %v361 = vsel %vm350, %v317, 0
        %v364 = vsel %vm350, %v318, 0
        %v367 = vsel %vm350, %v319, 0
        %v370 = vsel %vm350, %v320, 0
        %v373 = vsel %vm350, %v321, 0
        %v376 = vsel %vm350, %v322, 0
        %v379 = vsel %vm350, %v323, 0
        %v382 = vsel %vm350, %v324, 0
        %v385 = vsel %vm350, %v325, 0
        %v388 = vsel %vm350, %v326, 0
        %v391 = vsel %vm350, %v327, 0
        %v394 = vsel %vm350, %v328, 0
        %v397 = vsel %vm350, %v329, 0
        %v399 = vand.u32 %v331, 4294901760
        %400 = vmatprep.subr.mxu0 %v399
        %v401 = vand.u32 %v330, 4294901760
        %402 = vmatpush1.msra.mxu0 %v401
        %v403 = vand.u32 %v333, 4294901760
        %404 = vmatprep.subr.mxu0 %v403
        %v405 = vand.u32 %v332, 4294901760
        %406 = vmatpush1.msra.mxu0 %v405
        %v407 = vand.u32 %v335, 4294901760
        %408 = vmatprep.subr.mxu0 %v407
        %v409 = vand.u32 %v334, 4294901760
        %410 = vmatpush1.msra.mxu0 %v409
        %v411 = vand.u32 %v337, 4294901760
        %412 = vmatprep.subr.mxu0 %v411
        %v413 = vand.u32 %v336, 4294901760
        %414 = vmatpush1.msra.mxu0 %v413
        %415 = vmatprep.subr.mxu0 0.0
        %416 = vmatpush1.msra.mxu0 0.0
        %417 = vmatprep.subr.mxu0 0.0
        %418 = vmatpush1.msra.mxu0 0.0
        %419 = vmatprep.subr.mxu0 0.0
        %420 = vmatpush1.msra.mxu0 0.0
        %421 = vmatprep.subr.mxu0 0.0
        %422 = vmatpush1.msra.mxu0 0.0
        %423 = vmatprep.subr.mxu0 0.0
        %424 = vmatpush1.msra.mxu0 0.0
        %425 = vmatprep.subr.mxu0 0.0
        %426 = vmatpush1.msra.mxu0 0.0
        %427 = vmatprep.subr.mxu0 0.0
        %428 = vmatpush1.msra.mxu0 0.0
        %429 = vmatprep.subr.mxu0 0.0
        %430 = vmatpush1.msra.mxu0 0.0
        %431 = vmatprep.subr.mxu0 0.0
        %432 = vmatpush1.msra.mxu0 0.0
        %433 = vmatprep.subr.mxu0 0.0
        %434 = vmatpush1.msra.mxu0 0.0
        %435 = vmatprep.subr.mxu0 0.0
        %436 = vmatpush1.msra.mxu0 0.0
        %437 = vmatprep.subr.mxu0 0.0
        %438 = vmatpush1.msra.mxu0 0.0
        %439 = vmatprep.subr.mxu0 0.0
        %440 = vmatpush1.msra.mxu0 0.0
        %441 = vmatprep.subr.mxu0 0.0
        %442 = vmatpush1.msra.mxu0 0.0
        %443 = vmatprep.subr.mxu0 0.0
        %444 = vmatpush1.msra.mxu0 0.0
        %445 = vmatprep.subr.mxu0 0.0
        %446 = vmatpush1.msra.mxu0 0.0
        %447 = vmatprep.subr.mxu0 0.0
        %448 = vmatpush1.msra.mxu0 0.0
        %449 = vmatprep.subr.mxu0 0.0
        %450 = vmatpush1.msra.mxu0 0.0
        %451 = vmatprep.subr.mxu0 0.0
        %452 = vmatpush1.msra.mxu0 0.0
        %453 = vmatprep.subr.mxu0 0.0
        %454 = vmatpush1.msra.mxu0 0.0
        %455 = vmatprep.subr.mxu0 0.0
        %456 = vmatpush1.msra.mxu0 0.0
        %457 = vmatprep.subr.mxu0 0.0
        %458 = vmatpush1.msra.mxu0 0.0
        %459 = vmatprep.subr.mxu0 0.0
        %460 = vmatpush1.msra.mxu0 0.0
        %461 = vmatprep.subr.mxu0 0.0
        %462 = vmatpush1.msra.mxu0 0.0
        %463 = vmatprep.subr.mxu0 0.0
        %464 = vmatpush1.msra.mxu0 0.0
        %465 = vmatprep.subr.mxu0 0.0
        %466 = vmatpush1.msra.mxu0 0.0
        %467 = vmatprep.subr.mxu0 0.0
        %468 = vmatpush1.msra.mxu0 0.0
        %469 = vmatprep.subr.mxu0 0.0
        %470 = vmatpush1.msra.mxu0 0.0
        %471 = vmatprep.mubr.f32.mxu0 0.0
        %v472 = vand.u32 %v352, 4294901760
        %v473 = vsub.f32 %v352, %v472
        %v474 = vand.u32 %v473, 4294901760
        %v475 = vsub.f32 %v473, %v474
        %v476 = vand.u32 %v475, 4294901760
        %477 = vmatmul.mubr.f32.gmra.mrb[0].mxu0 %v476
        %v478 = vpop.f32.mrb[0].mxu0
        %v479 = vadd.f32 %v343, %v478
        %v480 = vpop.f32.mrb[0].mxu0
        %v481 = vadd.f32 %v347, %v480
        %482 = vmatprep.mubr.f32.mxu0 0.0
        %v483 = vand.u32 %v355, 4294901760
        %v484 = vsub.f32 %v355, %v483
        %v485 = vand.u32 %v484, 4294901760
        %v486 = vsub.f32 %v484, %v485
        %v487 = vand.u32 %v486, 4294901760
        %488 = vmatmul.mubr.f32.gmra.mrb[0].mxu0 %v487
        %v489 = vpop.f32.mrb[0].mxu0
        %v490 = vadd.f32 %v343, %v489
        %v491 = vpop.f32.mrb[0].mxu0
        %v492 = vadd.f32 %v347, %v491
        %493 = vmatprep.mubr.f32.mxu0 0.0
        %v494 = vand.u32 %v358, 4294901760
        %v495 = vsub.f32 %v358, %v494
        %v496 = vand.u32 %v495, 4294901760
        %v497 = vsub.f32 %v495, %v496
        %v498 = vand.u32 %v497, 4294901760
        %499 = vmatmul.mubr.f32.gmra.mrb[0].mxu0 %v498
        %v500 = vpop.f32.mrb[0].mxu0
        %v501 = vadd.f32 %v343, %v500
        %v502 = vpop.f32.mrb[0].mxu0
        %v503 = vadd.f32 %v347, %v502
        %504 = vmatprep.mubr.f32.mxu0 0.0
        %v505 = vand.u32 %v361, 4294901760
        %v506 = vsub.f32 %v361, %v505
        %v507 = vand.u32 %v506, 4294901760
        %v508 = vsub.f32 %v506, %v507
        %v509 = vand.u32 %v508, 4294901760
        %510 = vmatmul.mubr.f32.gmra.mrb[0].mxu0 %v509
        %v511 = vpop.f32.mrb[0].mxu0
        %v512 = vadd.f32 %v343, %v511
        %v513 = vpop.f32.mrb[0].mxu0
        %v514 = vadd.f32 %v347, %v513
        %515 = vmatprep.mubr.f32.mxu0 0.0
        %v516 = vand.u32 %v364, 4294901760
        %v517 = vsub.f32 %v364, %v516
        %v518 = vand.u32 %v517, 4294901760
        %v519 = vsub.f32 %v517, %v518
        %v520 = vand.u32 %v519, 4294901760
        %521 = vmatmul.mubr.f32.gmra.mrb[0].mxu0 %v520
        %v522 = vpop.f32.mrb[0].mxu0
        %v523 = vadd.f32 %v343, %v522
        %v524 = vpop.f32.mrb[0].mxu0
        %v525 = vadd.f32 %v347, %v524
        %526 = vmatprep.mubr.f32.mxu0 0.0
        %v527 = vand.u32 %v367, 4294901760
        %v528 = vsub.f32 %v367, %v527
        %v529 = vand.u32 %v528, 4294901760
        %v530 = vsub.f32 %v528, %v529
        %v531 = vand.u32 %v530, 4294901760
        %532 = vmatmul.mubr.f32.gmra.mrb[0].mxu0 %v531
        %v533 = vpop.f32.mrb[0].mxu0
        %v534 = vadd.f32 %v343, %v533
        %v535 = vpop.f32.mrb[0].mxu0
        %v536 = vadd.f32 %v347, %v535
        %537 = vmatprep.mubr.f32.mxu0 0.0
        %v538 = vand.u32 %v370, 4294901760
        %v539 = vsub.f32 %v370, %v538
        %v540 = vand.u32 %v539, 4294901760
        %v541 = vsub.f32 %v539, %v540
        %v542 = vand.u32 %v541, 4294901760
        %543 = vmatmul.mubr.f32.gmra.mrb[0].mxu0 %v542
        %v544 = vpop.f32.mrb[0].mxu0
        %v545 = vadd.f32 %v343, %v544
        %v546 = vpop.f32.mrb[0].mxu0
        %v547 = vadd.f32 %v347, %v546
        %548 = vmatprep.mubr.f32.mxu0 0.0
        %v549 = vand.u32 %v373, 4294901760
        %v550 = vsub.f32 %v373, %v549
        %v551 = vand.u32 %v550, 4294901760
        %v552 = vsub.f32 %v550, %v551
        %v553 = vand.u32 %v552, 4294901760
        %554 = vmatmul.mubr.f32.gmra.mrb[0].mxu0 %v553
        %v555 = vpop.f32.mrb[0].mxu0
        %v556 = vadd.f32 %v343, %v555
        %v557 = vpop.f32.mrb[0].mxu0
        %v558 = vadd.f32 %v347, %v557
        %559 = vmatprep.mubr.f32.mxu0 0.0
        %v560 = vand.u32 %v376, 4294901760
        %v561 = vsub.f32 %v376, %v560
        %v562 = vand.u32 %v561, 4294901760
        %v563 = vsub.f32 %v561, %v562
        %v564 = vand.u32 %v563, 4294901760
        %565 = vmatmul.mubr.f32.gmra.mrb[0].mxu0 %v564
        %v566 = vpop.f32.mrb[0].mxu0
        %v567 = vadd.f32 %v343, %v566
        %v568 = vpop.f32.mrb[0].mxu0
        %v569 = vadd.f32 %v347, %v568
        %570 = vmatprep.mubr.f32.mxu0 0.0
        %v571 = vand.u32 %v379, 4294901760
        %v572 = vsub.f32 %v379, %v571
        %v573 = vand.u32 %v572, 4294901760
        %v574 = vsub.f32 %v572, %v573
        %v575 = vand.u32 %v574, 4294901760
        %576 = vmatmul.mubr.f32.gmra.mrb[0].mxu0 %v575
        %v577 = vpop.f32.mrb[0].mxu0
        %v578 = vadd.f32 %v343, %v577
        %v579 = vpop.f32.mrb[0].mxu0
        %v580 = vadd.f32 %v347, %v579
        %581 = vmatprep.mubr.f32.mxu0 0.0
        %v582 = vand.u32 %v382, 4294901760
        %v583 = vsub.f32 %v382, %v582
        %v584 = vand.u32 %v583, 4294901760
        %v585 = vsub.f32 %v583, %v584
        %v586 = vand.u32 %v585, 4294901760
        %587 = vmatmul.mubr.f32.gmra.mrb[0].mxu0 %v586
        %v588 = vpop.f32.mrb[0].mxu0
        %v589 = vadd.f32 %v343, %v588
        %v590 = vpop.f32.mrb[0].mxu0
        %v591 = vadd.f32 %v347, %v590
        %592 = vmatprep.mubr.f32.mxu0 0.0
        %v593 = vand.u32 %v385, 4294901760
        %v594 = vsub.f32 %v385, %v593
        %v595 = vand.u32 %v594, 4294901760
        %v596 = vsub.f32 %v594, %v595
        %v597 = vand.u32 %v596, 4294901760
        %598 = vmatmul.mubr.f32.gmra.mrb[0].mxu0 %v597
        %v599 = vpop.f32.mrb[0].mxu0
        %v600 = vadd.f32 %v343, %v599
        %v601 = vpop.f32.mrb[0].mxu0
        %v602 = vadd.f32 %v347, %v601
        %603 = vmatprep.mubr.f32.mxu0 0.0
        %v604 = vand.u32 %v388, 4294901760
        %v605 = vsub.f32 %v388, %v604
        %v606 = vand.u32 %v605, 4294901760
        %v607 = vsub.f32 %v605, %v606
        %v608 = vand.u32 %v607, 4294901760
        %609 = vmatmul.mubr.f32.gmra.mrb[0].mxu0 %v608
        %v610 = vpop.f32.mrb[0].mxu0
        %v611 = vadd.f32 %v343, %v610
        %v612 = vpop.f32.mrb[0].mxu0
        %v613 = vadd.f32 %v347, %v612
        %614 = vmatprep.mubr.f32.mxu0 0.0
        %v615 = vand.u32 %v391, 4294901760
        %v616 = vsub.f32 %v391, %v615
        %v617 = vand.u32 %v616, 4294901760
        %v618 = vsub.f32 %v616, %v617
        %v619 = vand.u32 %v618, 4294901760
        %620 = vmatmul.mubr.f32.gmra.mrb[0].mxu0 %v619
        %v621 = vpop.f32.mrb[0].mxu0
        %v622 = vadd.f32 %v343, %v621
        %v623 = vpop.f32.mrb[0].mxu0
        %v624 = vadd.f32 %v347, %v623
        %625 = vmatprep.mubr.f32.mxu0 0.0
        %v626 = vand.u32 %v394, 4294901760
        %v627 = vsub.f32 %v394, %v626
        %v628 = vand.u32 %v627, 4294901760
        %v629 = vsub.f32 %v627, %v628
        %v630 = vand.u32 %v629, 4294901760
        %631 = vmatmul.mubr.f32.gmra.mrb[0].mxu0 %v630
        %v632 = vpop.f32.mrb[0].mxu0
        %v633 = vadd.f32 %v343, %v632
        %v634 = vpop.f32.mrb[0].mxu0
        %v635 = vadd.f32 %v347, %v634
        %636 = vmatprep.mubr.f32.mxu0 0.0
        %v637 = vand.u32 %v397, 4294901760
        %v638 = vsub.f32 %v397, %v637
        %v639 = vand.u32 %v638, 4294901760
        %v640 = vsub.f32 %v638, %v639
        %v641 = vand.u32 %v640, 4294901760
        %642 = vmatmul.mubr.f32.gmra.mrb[0].mxu0 %v641
        %v643 = vpop.f32.mrb[0].mxu0
        %v644 = vadd.f32 %v343, %v643
        %v645 = vpop.f32.mrb[0].mxu0
        %v646 = vadd.f32 %v347, %v645
        %647 = vdwg.mxu0
        %v648 = vand.u32 %v331, 4294901760
        %v649 = vsub.f32 %v331, %v648
        %v650 = vand.u32 %v649, 4294901760
        %v651 = vsub.f32 %v649, %v650
        %v652 = vand.u32 %v651, 4294901760
        %653 = vmatprep.subr.mxu0 %v652
        %v654 = vand.u32 %v330, 4294901760
        %v655 = vsub.f32 %v330, %v654
        %v656 = vand.u32 %v655, 4294901760
        %v657 = vsub.f32 %v655, %v656
        %v658 = vand.u32 %v657, 4294901760
        %659 = vmatpush1.msra.mxu0 %v658
        %v660 = vand.u32 %v333, 4294901760
        %v661 = vsub.f32 %v333, %v660
        %v662 = vand.u32 %v661, 4294901760
        %v663 = vsub.f32 %v661, %v662
        %v664 = vand.u32 %v663, 4294901760
        %665 = vmatprep.subr.mxu0 %v664
        %v666 = vand.u32 %v332, 4294901760
        %v667 = vsub.f32 %v332, %v666
        %v668 = vand.u32 %v667, 4294901760
        %v669 = vsub.f32 %v667, %v668
        %v670 = vand.u32 %v669, 4294901760
        %671 = vmatpush1.msra.mxu0 %v670
        %v672 = vand.u32 %v335, 4294901760
        %v673 = vsub.f32 %v335, %v672
        %v674 = vand.u32 %v673, 4294901760
        %v675 = vsub.f32 %v673, %v674
        %v676 = vand.u32 %v675, 4294901760
        %677 = vmatprep.subr.mxu0 %v676
        %v678 = vand.u32 %v334, 4294901760
        %v679 = vsub.f32 %v334, %v678
        %v680 = vand.u32 %v679, 4294901760
        %v681 = vsub.f32 %v679, %v680
        %v682 = vand.u32 %v681, 4294901760
        %683 = vmatpush1.msra.mxu0 %v682
        %v684 = vand.u32 %v337, 4294901760
        %v685 = vsub.f32 %v337, %v684
        %v686 = vand.u32 %v685, 4294901760
        %v687 = vsub.f32 %v685, %v686
        %v688 = vand.u32 %v687, 4294901760
        %689 = vmatprep.subr.mxu0 %v688
        %v690 = vand.u32 %v336, 4294901760
        %v691 = vsub.f32 %v336, %v690
        %v692 = vand.u32 %v691, 4294901760
        %v693 = vsub.f32 %v691, %v692
        %v694 = vand.u32 %v693, 4294901760
        %695 = vmatpush1.msra.mxu0 %v694
        %696 = vmatprep.subr.mxu0 0.0
        %697 = vmatpush1.msra.mxu0 0.0
        %698 = vmatprep.subr.mxu0 0.0
        %699 = vmatpush1.msra.mxu0 0.0
        %700 = vmatprep.subr.mxu0 0.0
        %701 = vmatpush1.msra.mxu0 0.0
        %702 = vmatprep.subr.mxu0 0.0
        %703 = vmatpush1.msra.mxu0 0.0
        %704 = vmatprep.subr.mxu0 0.0
        %705 = vmatpush1.msra.mxu0 0.0
        %706 = vmatprep.subr.mxu0 0.0
        %707 = vmatpush1.msra.mxu0 0.0
        %708 = vmatprep.subr.mxu0 0.0
        %709 = vmatpush1.msra.mxu0 0.0
        %710 = vmatprep.subr.mxu0 0.0
        %711 = vmatpush1.msra.mxu0 0.0
        %712 = vmatprep.subr.mxu0 0.0
        %713 = vmatpush1.msra.mxu0 0.0
        %714 = vmatprep.subr.mxu0 0.0
        %715 = vmatpush1.msra.mxu0 0.0
        %716 = vmatprep.subr.mxu0 0.0
        %717 = vmatpush1.msra.mxu0 0.0
        %718 = vmatprep.subr.mxu0 0.0
        %719 = vmatpush1.msra.mxu0 0.0
        %720 = vmatprep.subr.mxu0 0.0
        %721 = vmatpush1.msra.mxu0 0.0
        %722 = vmatprep.subr.mxu0 0.0
        %723 = vmatpush1.msra.mxu0 0.0
        %724 = vmatprep.subr.mxu0 0.0
        %725 = vmatpush1.msra.mxu0 0.0
        %726 = vmatprep.subr.mxu0 0.0
        %727 = vmatpush1.msra.mxu0 0.0
        %728 = vmatprep.subr.mxu0 0.0
        %729 = vmatpush1.msra.mxu0 0.0
        %730 = vmatprep.subr.mxu0 0.0
        %731 = vmatpush1.msra.mxu0 0.0
        %732 = vmatprep.subr.mxu0 0.0
        %733 = vmatpush1.msra.mxu0 0.0
        %734 = vmatprep.subr.mxu0 0.0
        %735 = vmatpush1.msra.mxu0 0.0
        %736 = vmatprep.subr.mxu0 0.0
        %737 = vmatpush1.msra.mxu0 0.0
        %738 = vmatprep.subr.mxu0 0.0
        %739 = vmatpush1.msra.mxu0 0.0
        %740 = vmatprep.subr.mxu0 0.0
        %741 = vmatpush1.msra.mxu0 0.0
        %742 = vmatprep.subr.mxu0 0.0
        %743 = vmatpush1.msra.mxu0 0.0
        %744 = vmatprep.subr.mxu0 0.0
        %745 = vmatpush1.msra.mxu0 0.0
        %746 = vmatprep.subr.mxu0 0.0
        %747 = vmatpush1.msra.mxu0 0.0
        %748 = vmatprep.subr.mxu0 0.0
        %749 = vmatpush1.msra.mxu0 0.0
        %750 = vmatprep.subr.mxu0 0.0
        %751 = vmatpush1.msra.mxu0 0.0
        %752 = vmatprep.mubr.f32.mxu0 0.0
        %v753 = vand.u32 %v352, 4294901760
        %754 = vmatmul.mubr.f32.gmra.mrb[0].mxu0 %v753
        %v755 = vpop.f32.mrb[0].mxu0
        %v756 = vadd.f32 %v479, %v755
        %v757 = vpop.f32.mrb[0].mxu0
        %v758 = vadd.f32 %v481, %v757
        %759 = vmatprep.mubr.f32.mxu0 0.0
        %v760 = vand.u32 %v355, 4294901760
        %761 = vmatmul.mubr.f32.gmra.mrb[0].mxu0 %v760
        %v762 = vpop.f32.mrb[0].mxu0
        %v763 = vadd.f32 %v490, %v762
        %v764 = vpop.f32.mrb[0].mxu0
        %v765 = vadd.f32 %v492, %v764
        %766 = vmatprep.mubr.f32.mxu0 0.0
        %v767 = vand.u32 %v358, 4294901760
        %768 = vmatmul.mubr.f32.gmra.mrb[0].mxu0 %v767
        %v769 = vpop.f32.mrb[0].mxu0
        %v770 = vadd.f32 %v501, %v769
        %v771 = vpop.f32.mrb[0].mxu0
        %v772 = vadd.f32 %v503, %v771
        %773 = vmatprep.mubr.f32.mxu0 0.0
        %v774 = vand.u32 %v361, 4294901760
        %775 = vmatmul.mubr.f32.gmra.mrb[0].mxu0 %v774
        %v776 = vpop.f32.mrb[0].mxu0
        %v777 = vadd.f32 %v512, %v776
        %v778 = vpop.f32.mrb[0].mxu0
        %v779 = vadd.f32 %v514, %v778
        %780 = vmatprep.mubr.f32.mxu0 0.0
        %v781 = vand.u32 %v364, 4294901760
        %782 = vmatmul.mubr.f32.gmra.mrb[0].mxu0 %v781
        %v783 = vpop.f32.mrb[0].mxu0
        %v784 = vadd.f32 %v523, %v783
        %v785 = vpop.f32.mrb[0].mxu0
        %v786 = vadd.f32 %v525, %v785
        %787 = vmatprep.mubr.f32.mxu0 0.0
        %v788 = vand.u32 %v367, 4294901760
        %789 = vmatmul.mubr.f32.gmra.mrb[0].mxu0 %v788
        %v790 = vpop.f32.mrb[0].mxu0
        %v791 = vadd.f32 %v534, %v790
        %v792 = vpop.f32.mrb[0].mxu0
        %v793 = vadd.f32 %v536, %v792
        %794 = vmatprep.mubr.f32.mxu0 0.0
        %v795 = vand.u32 %v370, 4294901760
        %796 = vmatmul.mubr.f32.gmra.mrb[0].mxu0 %v795
        %v797 = vpop.f32.mrb[0].mxu0
        %v798 = vadd.f32 %v545, %v797
        %v799 = vpop.f32.mrb[0].mxu0
        %v800 = vadd.f32 %v547, %v799
        %801 = vmatprep.mubr.f32.mxu0 0.0
        %v802 = vand.u32 %v373, 4294901760
        %803 = vmatmul.mubr.f32.gmra.mrb[0].mxu0 %v802
        %v804 = vpop.f32.mrb[0].mxu0
        %v805 = vadd.f32 %v556, %v804
        %v806 = vpop.f32.mrb[0].mxu0
        %v807 = vadd.f32 %v558, %v806
        %808 = vmatprep.mubr.f32.mxu0 0.0
        %v809 = vand.u32 %v376, 4294901760
        %810 = vmatmul.mubr.f32.gmra.mrb[0].mxu0 %v809
        %v811 = vpop.f32.mrb[0].mxu0
        %v812 = vadd.f32 %v567, %v811
        %v813 = vpop.f32.mrb[0].mxu0
        %v814 = vadd.f32 %v569, %v813
        %815 = vmatprep.mubr.f32.mxu0 0.0
        %v816 = vand.u32 %v379, 4294901760
        %817 = vmatmul.mubr.f32.gmra.mrb[0].mxu0 %v816
        %v818 = vpop.f32.mrb[0].mxu0
        %v819 = vadd.f32 %v578, %v818
        %v820 = vpop.f32.mrb[0].mxu0
        %v821 = vadd.f32 %v580, %v820
        %822 = vmatprep.mubr.f32.mxu0 0.0
        %v823 = vand.u32 %v382, 4294901760
        %824 = vmatmul.mubr.f32.gmra.mrb[0].mxu0 %v823
        %v825 = vpop.f32.mrb[0].mxu0
        %v826 = vadd.f32 %v589, %v825
        %v827 = vpop.f32.mrb[0].mxu0
        %v828 = vadd.f32 %v591, %v827
        %829 = vmatprep.mubr.f32.mxu0 0.0
        %v830 = vand.u32 %v385, 4294901760
        %831 = vmatmul.mubr.f32.gmra.mrb[0].mxu0 %v830
        %v832 = vpop.f32.mrb[0].mxu0
        %v833 = vadd.f32 %v600, %v832
        %v834 = vpop.f32.mrb[0].mxu0
        %v835 = vadd.f32 %v602, %v834
        %836 = vmatprep.mubr.f32.mxu0 0.0
        %v837 = vand.u32 %v388, 4294901760
        %838 = vmatmul.mubr.f32.gmra.mrb[0].mxu0 %v837
        %v839 = vpop.f32.mrb[0].mxu0
        %v840 = vadd.f32 %v611, %v839
        %v841 = vpop.f32.mrb[0].mxu0
        %v842 = vadd.f32 %v613, %v841
        %843 = vmatprep.mubr.f32.mxu0 0.0
        %v844 = vand.u32 %v391, 4294901760
        %845 = vmatmul.mubr.f32.gmra.mrb[0].mxu0 %v844
        %v846 = vpop.f32.mrb[0].mxu0
        %v847 = vadd.f32 %v622, %v846
        %v848 = vpop.f32.mrb[0].mxu0
        %v849 = vadd.f32 %v624, %v848
        %850 = vmatprep.mubr.f32.mxu0 0.0
        %v851 = vand.u32 %v394, 4294901760
        %852 = vmatmul.mubr.f32.gmra.mrb[0].mxu0 %v851
        %v853 = vpop.f32.mrb[0].mxu0
        %v854 = vadd.f32 %v633, %v853
        %v855 = vpop.f32.mrb[0].mxu0
        %v856 = vadd.f32 %v635, %v855
        %857 = vmatprep.mubr.f32.mxu0 0.0
        %v858 = vand.u32 %v397, 4294901760
        %859 = vmatmul.mubr.f32.gmra.mrb[0].mxu0 %v858
        %v860 = vpop.f32.mrb[0].mxu0
        %v861 = vadd.f32 %v644, %v860
        %v862 = vpop.f32.mrb[0].mxu0
        %v863 = vadd.f32 %v646, %v862
        %864 = vdwg.mxu0
        %v865 = vand.u32 %v331, 4294901760
        %v866 = vsub.f32 %v331, %v865
        %867 = vmatprep.subr.mxu0 %v866
        %v868 = vand.u32 %v330, 4294901760
        %v869 = vsub.f32 %v330, %v868
        %870 = vmatpush1.msra.mxu0 %v869
        %v871 = vand.u32 %v333, 4294901760
        %v872 = vsub.f32 %v333, %v871
        %873 = vmatprep.subr.mxu0 %v872
        %v874 = vand.u32 %v332, 4294901760
        %v875 = vsub.f32 %v332, %v874
        %876 = vmatpush1.msra.mxu0 %v875
        %v877 = vand.u32 %v335, 4294901760
        %v878 = vsub.f32 %v335, %v877
        %879 = vmatprep.subr.mxu0 %v878
        %v880 = vand.u32 %v334, 4294901760
        %v881 = vsub.f32 %v334, %v880
        %882 = vmatpush1.msra.mxu0 %v881
        %v883 = vand.u32 %v337, 4294901760
        %v884 = vsub.f32 %v337, %v883
        %885 = vmatprep.subr.mxu0 %v884
        %v886 = vand.u32 %v336, 4294901760
        %v887 = vsub.f32 %v336, %v886
        %888 = vmatpush1.msra.mxu0 %v887
        %889 = vmatprep.subr.mxu0 0.0
        %890 = vmatpush1.msra.mxu0 0.0
        %891 = vmatprep.subr.mxu0 0.0
        %892 = vmatpush1.msra.mxu0 0.0
        %893 = vmatprep.subr.mxu0 0.0
        %894 = vmatpush1.msra.mxu0 0.0
        %895 = vmatprep.subr.mxu0 0.0
        %896 = vmatpush1.msra.mxu0 0.0
        %897 = vmatprep.subr.mxu0 0.0
        %898 = vmatpush1.msra.mxu0 0.0
        %899 = vmatprep.subr.mxu0 0.0
        %900 = vmatpush1.msra.mxu0 0.0
        %901 = vmatprep.subr.mxu0 0.0
        %902 = vmatpush1.msra.mxu0 0.0
        %903 = vmatprep.subr.mxu0 0.0
        %904 = vmatpush1.msra.mxu0 0.0
        %905 = vmatprep.subr.mxu0 0.0
        %906 = vmatpush1.msra.mxu0 0.0
        %907 = vmatprep.subr.mxu0 0.0
        %908 = vmatpush1.msra.mxu0 0.0
        %909 = vmatprep.subr.mxu0 0.0
        %910 = vmatpush1.msra.mxu0 0.0
        %911 = vmatprep.subr.mxu0 0.0
        %912 = vmatpush1.msra.mxu0 0.0
        %913 = vmatprep.subr.mxu0 0.0
        %914 = vmatpush1.msra.mxu0 0.0
        %915 = vmatprep.subr.mxu0 0.0
        %916 = vmatpush1.msra.mxu0 0.0
        %917 = vmatprep.subr.mxu0 0.0
        %918 = vmatpush1.msra.mxu0 0.0
        %919 = vmatprep.subr.mxu0 0.0
        %920 = vmatpush1.msra.mxu0 0.0
        %921 = vmatprep.subr.mxu0 0.0
        %922 = vmatpush1.msra.mxu0 0.0
        %923 = vmatprep.subr.mxu0 0.0
        %924 = vmatpush1.msra.mxu0 0.0
        %925 = vmatprep.subr.mxu0 0.0
        %926 = vmatpush1.msra.mxu0 0.0
        %927 = vmatprep.subr.mxu0 0.0
        %928 = vmatpush1.msra.mxu0 0.0
        %929 = vmatprep.subr.mxu0 0.0
        %930 = vmatpush1.msra.mxu0 0.0
        %931 = vmatprep.subr.mxu0 0.0
        %932 = vmatpush1.msra.mxu0 0.0
        %933 = vmatprep.subr.mxu0 0.0
        %934 = vmatpush1.msra.mxu0 0.0
        %935 = vmatprep.subr.mxu0 0.0
        %936 = vmatpush1.msra.mxu0 0.0
        %937 = vmatprep.subr.mxu0 0.0
        %938 = vmatpush1.msra.mxu0 0.0
        %939 = vmatprep.subr.mxu0 0.0
        %940 = vmatpush1.msra.mxu0 0.0
        %941 = vmatprep.subr.mxu0 0.0
        %942 = vmatpush1.msra.mxu0 0.0
        %943 = vmatprep.subr.mxu0 0.0
        %944 = vmatpush1.msra.mxu0 0.0
        %945 = vmatprep.mubr.f32.mxu0 0.0
        %v946 = vand.u32 %v352, 4294901760
        %v947 = vsub.f32 %v352, %v946
        %948 = vmatmul.mubr.f32.gmra.mrb[0].mxu0 %v947
        %v949 = vpop.f32.mrb[0].mxu0
        %v950 = vadd.f32 %v756, %v949
        %v951 = vpop.f32.mrb[0].mxu0
        %v952 = vadd.f32 %v758, %v951
        %953 = vmatprep.mubr.f32.mxu0 0.0
        %v954 = vand.u32 %v355, 4294901760
        %v955 = vsub.f32 %v355, %v954
        %956 = vmatmul.mubr.f32.gmra.mrb[0].mxu0 %v955
        %v957 = vpop.f32.mrb[0].mxu0
        %v958 = vadd.f32 %v763, %v957
        %v959 = vpop.f32.mrb[0].mxu0
        %v960 = vadd.f32 %v765, %v959
        %961 = vmatprep.mubr.f32.mxu0 0.0
        %v962 = vand.u32 %v358, 4294901760
        %v963 = vsub.f32 %v358, %v962
        %964 = vmatmul.mubr.f32.gmra.mrb[0].mxu0 %v963
        %v965 = vpop.f32.mrb[0].mxu0
        %v966 = vadd.f32 %v770, %v965
        %v967 = vpop.f32.mrb[0].mxu0
        %v968 = vadd.f32 %v772, %v967
        %969 = vmatprep.mubr.f32.mxu0 0.0
        %v970 = vand.u32 %v361, 4294901760
        %v971 = vsub.f32 %v361, %v970
        %972 = vmatmul.mubr.f32.gmra.mrb[0].mxu0 %v971
        %v973 = vpop.f32.mrb[0].mxu0
        %v974 = vadd.f32 %v777, %v973
        %v975 = vpop.f32.mrb[0].mxu0
        %v976 = vadd.f32 %v779, %v975
        %977 = vmatprep.mubr.f32.mxu0 0.0
        %v978 = vand.u32 %v364, 4294901760
        %v979 = vsub.f32 %v364, %v978
        %980 = vmatmul.mubr.f32.gmra.mrb[0].mxu0 %v979
        %v981 = vpop.f32.mrb[0].mxu0
        %v982 = vadd.f32 %v784, %v981
        %v983 = vpop.f32.mrb[0].mxu0
        %v984 = vadd.f32 %v786, %v983
        %985 = vmatprep.mubr.f32.mxu0 0.0
        %v986 = vand.u32 %v367, 4294901760
        %v987 = vsub.f32 %v367, %v986
        %988 = vmatmul.mubr.f32.gmra.mrb[0].mxu0 %v987
        %v989 = vpop.f32.mrb[0].mxu0
        %v990 = vadd.f32 %v791, %v989
        %v991 = vpop.f32.mrb[0].mxu0
        %v992 = vadd.f32 %v793, %v991
        %993 = vmatprep.mubr.f32.mxu0 0.0
        %v994 = vand.u32 %v370, 4294901760
        %v995 = vsub.f32 %v370, %v994
        %996 = vmatmul.mubr.f32.gmra.mrb[0].mxu0 %v995
        %v997 = vpop.f32.mrb[0].mxu0
        %v998 = vadd.f32 %v798, %v997
        %v999 = vpop.f32.mrb[0].mxu0
        %v1000 = vadd.f32 %v800, %v999
        %1001 = vmatprep.mubr.f32.mxu0 0.0
        %v1002 = vand.u32 %v373, 4294901760
        %v1003 = vsub.f32 %v373, %v1002
        %1004 = vmatmul.mubr.f32.gmra.mrb[0].mxu0 %v1003
        %v1005 = vpop.f32.mrb[0].mxu0
        %v1006 = vadd.f32 %v805, %v1005
        %v1007 = vpop.f32.mrb[0].mxu0
        %v1008 = vadd.f32 %v807, %v1007
        %1009 = vmatprep.mubr.f32.mxu0 0.0
        %v1010 = vand.u32 %v376, 4294901760
        %v1011 = vsub.f32 %v376, %v1010
        %1012 = vmatmul.mubr.f32.gmra.mrb[0].mxu0 %v1011
        %v1013 = vpop.f32.mrb[0].mxu0
        %v1014 = vadd.f32 %v812, %v1013
        %v1015 = vpop.f32.mrb[0].mxu0
        %v1016 = vadd.f32 %v814, %v1015
        %1017 = vmatprep.mubr.f32.mxu0 0.0
        %v1018 = vand.u32 %v379, 4294901760
        %v1019 = vsub.f32 %v379, %v1018
        %1020 = vmatmul.mubr.f32.gmra.mrb[0].mxu0 %v1019
        %v1021 = vpop.f32.mrb[0].mxu0
        %v1022 = vadd.f32 %v819, %v1021
        %v1023 = vpop.f32.mrb[0].mxu0
        %v1024 = vadd.f32 %v821, %v1023
        %1025 = vmatprep.mubr.f32.mxu0 0.0
        %v1026 = vand.u32 %v382, 4294901760
        %v1027 = vsub.f32 %v382, %v1026
        %1028 = vmatmul.mubr.f32.gmra.mrb[0].mxu0 %v1027
        %v1029 = vpop.f32.mrb[0].mxu0
        %v1030 = vadd.f32 %v826, %v1029
        %v1031 = vpop.f32.mrb[0].mxu0
        %v1032 = vadd.f32 %v828, %v1031
        %1033 = vmatprep.mubr.f32.mxu0 0.0
        %v1034 = vand.u32 %v385, 4294901760
        %v1035 = vsub.f32 %v385, %v1034
        %1036 = vmatmul.mubr.f32.gmra.mrb[0].mxu0 %v1035
        %v1037 = vpop.f32.mrb[0].mxu0
        %v1038 = vadd.f32 %v833, %v1037
        %v1039 = vpop.f32.mrb[0].mxu0
        %v1040 = vadd.f32 %v835, %v1039
        %1041 = vmatprep.mubr.f32.mxu0 0.0
        %v1042 = vand.u32 %v388, 4294901760
        %v1043 = vsub.f32 %v388, %v1042
        %1044 = vmatmul.mubr.f32.gmra.mrb[0].mxu0 %v1043
        %v1045 = vpop.f32.mrb[0].mxu0
        %v1046 = vadd.f32 %v840, %v1045
        %v1047 = vpop.f32.mrb[0].mxu0
        %v1048 = vadd.f32 %v842, %v1047
        %1049 = vmatprep.mubr.f32.mxu0 0.0
        %v1050 = vand.u32 %v391, 4294901760
        %v1051 = vsub.f32 %v391, %v1050
        %1052 = vmatmul.mubr.f32.gmra.mrb[0].mxu0 %v1051
        %v1053 = vpop.f32.mrb[0].mxu0
        %v1054 = vadd.f32 %v847, %v1053
        %v1055 = vpop.f32.mrb[0].mxu0
        %v1056 = vadd.f32 %v849, %v1055
        %1057 = vmatprep.mubr.f32.mxu0 0.0
        %v1058 = vand.u32 %v394, 4294901760
        %v1059 = vsub.f32 %v394, %v1058
        %1060 = vmatmul.mubr.f32.gmra.mrb[0].mxu0 %v1059
        %v1061 = vpop.f32.mrb[0].mxu0
        %v1062 = vadd.f32 %v854, %v1061
        %v1063 = vpop.f32.mrb[0].mxu0
        %v1064 = vadd.f32 %v856, %v1063
        %1065 = vmatprep.mubr.f32.mxu0 0.0
        %v1066 = vand.u32 %v397, 4294901760
        %v1067 = vsub.f32 %v397, %v1066
        %1068 = vmatmul.mubr.f32.gmra.mrb[0].mxu0 %v1067
        %v1069 = vpop.f32.mrb[0].mxu0
        %v1070 = vadd.f32 %v861, %v1069
        %v1071 = vpop.f32.mrb[0].mxu0
        %v1072 = vadd.f32 %v863, %v1071
        %1073 = vdwg.mxu0
        %v1074 = vand.u32 %v331, 4294901760
        %1075 = vmatprep.subr.mxu0 %v1074
        %v1076 = vand.u32 %v330, 4294901760
        %1077 = vmatpush1.msra.mxu0 %v1076
        %v1078 = vand.u32 %v333, 4294901760
        %1079 = vmatprep.subr.mxu0 %v1078
        %v1080 = vand.u32 %v332, 4294901760
        %1081 = vmatpush1.msra.mxu0 %v1080
        %v1082 = vand.u32 %v335, 4294901760
        %1083 = vmatprep.subr.mxu0 %v1082
        %v1084 = vand.u32 %v334, 4294901760
        %1085 = vmatpush1.msra.mxu0 %v1084
        %v1086 = vand.u32 %v337, 4294901760
        %1087 = vmatprep.subr.mxu0 %v1086
        %v1088 = vand.u32 %v336, 4294901760
        %1089 = vmatpush1.msra.mxu0 %v1088
        %1090 = vmatprep.subr.mxu0 0.0
        %1091 = vmatpush1.msra.mxu0 0.0
        %1092 = vmatprep.subr.mxu0 0.0
        %1093 = vmatpush1.msra.mxu0 0.0
        %1094 = vmatprep.subr.mxu0 0.0
        %1095 = vmatpush1.msra.mxu0 0.0
        %1096 = vmatprep.subr.mxu0 0.0
        %1097 = vmatpush1.msra.mxu0 0.0
        %1098 = vmatprep.subr.mxu0 0.0
        %1099 = vmatpush1.msra.mxu0 0.0
        %1100 = vmatprep.subr.mxu0 0.0
        %1101 = vmatpush1.msra.mxu0 0.0
        %1102 = vmatprep.subr.mxu0 0.0
        %1103 = vmatpush1.msra.mxu0 0.0
        %1104 = vmatprep.subr.mxu0 0.0
        %1105 = vmatpush1.msra.mxu0 0.0
        %1106 = vmatprep.subr.mxu0 0.0
        %1107 = vmatpush1.msra.mxu0 0.0
        %1108 = vmatprep.subr.mxu0 0.0
        %1109 = vmatpush1.msra.mxu0 0.0
        %1110 = vmatprep.subr.mxu0 0.0
        %1111 = vmatpush1.msra.mxu0 0.0
        %1112 = vmatprep.subr.mxu0 0.0
        %1113 = vmatpush1.msra.mxu0 0.0
        %1114 = vmatprep.subr.mxu0 0.0
        %1115 = vmatpush1.msra.mxu0 0.0
        %1116 = vmatprep.subr.mxu0 0.0
        %1117 = vmatpush1.msra.mxu0 0.0
        %1118 = vmatprep.subr.mxu0 0.0
        %1119 = vmatpush1.msra.mxu0 0.0
        %1120 = vmatprep.subr.mxu0 0.0
        %1121 = vmatpush1.msra.mxu0 0.0
        %1122 = vmatprep.subr.mxu0 0.0
        %1123 = vmatpush1.msra.mxu0 0.0
        %1124 = vmatprep.subr.mxu0 0.0
        %1125 = vmatpush1.msra.mxu0 0.0
        %1126 = vmatprep.subr.mxu0 0.0
        %1127 = vmatpush1.msra.mxu0 0.0
        %1128 = vmatprep.subr.mxu0 0.0
        %1129 = vmatpush1.msra.mxu0 0.0
        %1130 = vmatprep.subr.mxu0 0.0
        %1131 = vmatpush1.msra.mxu0 0.0
        %1132 = vmatprep.subr.mxu0 0.0
        %1133 = vmatpush1.msra.mxu0 0.0
        %1134 = vmatprep.subr.mxu0 0.0
        %1135 = vmatpush1.msra.mxu0 0.0
        %1136 = vmatprep.subr.mxu0 0.0
        %1137 = vmatpush1.msra.mxu0 0.0
        %1138 = vmatprep.subr.mxu0 0.0
        %1139 = vmatpush1.msra.mxu0 0.0
        %1140 = vmatprep.subr.mxu0 0.0
        %1141 = vmatpush1.msra.mxu0 0.0
        %1142 = vmatprep.subr.mxu0 0.0
        %1143 = vmatpush1.msra.mxu0 0.0
        %1144 = vmatprep.subr.mxu0 0.0
        %1145 = vmatpush1.msra.mxu0 0.0
        %1146 = vmatprep.mubr.f32.mxu0 0.0
        %v1147 = vand.u32 %v352, 4294901760
        %v1148 = vsub.f32 %v352, %v1147
        %v1149 = vand.u32 %v1148, 4294901760
        %1150 = vmatmul.mubr.f32.gmra.mrb[0].mxu0 %v1149
        %v1151 = vpop.f32.mrb[0].mxu0
        %v1152 = vadd.f32 %v950, %v1151
        %v1153 = vpop.f32.mrb[0].mxu0
        %v1154 = vadd.f32 %v952, %v1153
        %1155 = vmatprep.mubr.f32.mxu0 0.0
        %v1156 = vand.u32 %v355, 4294901760
        %v1157 = vsub.f32 %v355, %v1156
        %v1158 = vand.u32 %v1157, 4294901760
        %1159 = vmatmul.mubr.f32.gmra.mrb[0].mxu0 %v1158
        %v1160 = vpop.f32.mrb[0].mxu0
        %v1161 = vadd.f32 %v958, %v1160
        %v1162 = vpop.f32.mrb[0].mxu0
        %v1163 = vadd.f32 %v960, %v1162
        %1164 = vmatprep.mubr.f32.mxu0 0.0
        %v1165 = vand.u32 %v358, 4294901760
        %v1166 = vsub.f32 %v358, %v1165
        %v1167 = vand.u32 %v1166, 4294901760
        %1168 = vmatmul.mubr.f32.gmra.mrb[0].mxu0 %v1167
        %v1169 = vpop.f32.mrb[0].mxu0
        %v1170 = vadd.f32 %v966, %v1169
        %v1171 = vpop.f32.mrb[0].mxu0
        %v1172 = vadd.f32 %v968, %v1171
        %1173 = vmatprep.mubr.f32.mxu0 0.0
        %v1174 = vand.u32 %v361, 4294901760
        %v1175 = vsub.f32 %v361, %v1174
        %v1176 = vand.u32 %v1175, 4294901760
        %1177 = vmatmul.mubr.f32.gmra.mrb[0].mxu0 %v1176
        %v1178 = vpop.f32.mrb[0].mxu0
        %v1179 = vadd.f32 %v974, %v1178
        %v1180 = vpop.f32.mrb[0].mxu0
        %v1181 = vadd.f32 %v976, %v1180
        %1182 = vmatprep.mubr.f32.mxu0 0.0
        %v1183 = vand.u32 %v364, 4294901760
        %v1184 = vsub.f32 %v364, %v1183
        %v1185 = vand.u32 %v1184, 4294901760
        %1186 = vmatmul.mubr.f32.gmra.mrb[0].mxu0 %v1185
        %v1187 = vpop.f32.mrb[0].mxu0
        %v1188 = vadd.f32 %v982, %v1187
        %v1189 = vpop.f32.mrb[0].mxu0
        %v1190 = vadd.f32 %v984, %v1189
        %1191 = vmatprep.mubr.f32.mxu0 0.0
        %v1192 = vand.u32 %v367, 4294901760
        %v1193 = vsub.f32 %v367, %v1192
        %v1194 = vand.u32 %v1193, 4294901760
        %1195 = vmatmul.mubr.f32.gmra.mrb[0].mxu0 %v1194
        %v1196 = vpop.f32.mrb[0].mxu0
        %v1197 = vadd.f32 %v990, %v1196
        %v1198 = vpop.f32.mrb[0].mxu0
        %v1199 = vadd.f32 %v992, %v1198
        %1200 = vmatprep.mubr.f32.mxu0 0.0
        %v1201 = vand.u32 %v370, 4294901760
        %v1202 = vsub.f32 %v370, %v1201
        %v1203 = vand.u32 %v1202, 4294901760
        %1204 = vmatmul.mubr.f32.gmra.mrb[0].mxu0 %v1203
        %v1205 = vpop.f32.mrb[0].mxu0
        %v1206 = vadd.f32 %v998, %v1205
        %v1207 = vpop.f32.mrb[0].mxu0
        %v1208 = vadd.f32 %v1000, %v1207
        %1209 = vmatprep.mubr.f32.mxu0 0.0
        %v1210 = vand.u32 %v373, 4294901760
        %v1211 = vsub.f32 %v373, %v1210
        %v1212 = vand.u32 %v1211, 4294901760
        %1213 = vmatmul.mubr.f32.gmra.mrb[0].mxu0 %v1212
        %v1214 = vpop.f32.mrb[0].mxu0
        %v1215 = vadd.f32 %v1006, %v1214
        %v1216 = vpop.f32.mrb[0].mxu0
        %v1217 = vadd.f32 %v1008, %v1216
        %1218 = vmatprep.mubr.f32.mxu0 0.0
        %v1219 = vand.u32 %v376, 4294901760
        %v1220 = vsub.f32 %v376, %v1219
        %v1221 = vand.u32 %v1220, 4294901760
        %1222 = vmatmul.mubr.f32.gmra.mrb[0].mxu0 %v1221
        %v1223 = vpop.f32.mrb[0].mxu0
        %v1224 = vadd.f32 %v1014, %v1223
        %v1225 = vpop.f32.mrb[0].mxu0
        %v1226 = vadd.f32 %v1016, %v1225
        %1227 = vmatprep.mubr.f32.mxu0 0.0
        %v1228 = vand.u32 %v379, 4294901760
        %v1229 = vsub.f32 %v379, %v1228
        %v1230 = vand.u32 %v1229, 4294901760
        %1231 = vmatmul.mubr.f32.gmra.mrb[0].mxu0 %v1230
        %v1232 = vpop.f32.mrb[0].mxu0
        %v1233 = vadd.f32 %v1022, %v1232
        %v1234 = vpop.f32.mrb[0].mxu0
        %v1235 = vadd.f32 %v1024, %v1234
        %1236 = vmatprep.mubr.f32.mxu0 0.0
        %v1237 = vand.u32 %v382, 4294901760
        %v1238 = vsub.f32 %v382, %v1237
        %v1239 = vand.u32 %v1238, 4294901760
        %1240 = vmatmul.mubr.f32.gmra.mrb[0].mxu0 %v1239
        %v1241 = vpop.f32.mrb[0].mxu0
        %v1242 = vadd.f32 %v1030, %v1241
        %v1243 = vpop.f32.mrb[0].mxu0
        %v1244 = vadd.f32 %v1032, %v1243
        %1245 = vmatprep.mubr.f32.mxu0 0.0
        %v1246 = vand.u32 %v385, 4294901760
        %v1247 = vsub.f32 %v385, %v1246
        %v1248 = vand.u32 %v1247, 4294901760
        %1249 = vmatmul.mubr.f32.gmra.mrb[0].mxu0 %v1248
        %v1250 = vpop.f32.mrb[0].mxu0
        %v1251 = vadd.f32 %v1038, %v1250
        %v1252 = vpop.f32.mrb[0].mxu0
        %v1253 = vadd.f32 %v1040, %v1252
        %1254 = vmatprep.mubr.f32.mxu0 0.0
        %v1255 = vand.u32 %v388, 4294901760
        %v1256 = vsub.f32 %v388, %v1255
        %v1257 = vand.u32 %v1256, 4294901760
        %1258 = vmatmul.mubr.f32.gmra.mrb[0].mxu0 %v1257
        %v1259 = vpop.f32.mrb[0].mxu0
        %v1260 = vadd.f32 %v1046, %v1259
        %v1261 = vpop.f32.mrb[0].mxu0
        %v1262 = vadd.f32 %v1048, %v1261
        %1263 = vmatprep.mubr.f32.mxu0 0.0
        %v1264 = vand.u32 %v391, 4294901760
        %v1265 = vsub.f32 %v391, %v1264
        %v1266 = vand.u32 %v1265, 4294901760
        %1267 = vmatmul.mubr.f32.gmra.mrb[0].mxu0 %v1266
        %v1268 = vpop.f32.mrb[0].mxu0
        %v1269 = vadd.f32 %v1054, %v1268
        %v1270 = vpop.f32.mrb[0].mxu0
        %v1271 = vadd.f32 %v1056, %v1270
        %1272 = vmatprep.mubr.f32.mxu0 0.0
        %v1273 = vand.u32 %v394, 4294901760
        %v1274 = vsub.f32 %v394, %v1273
        %v1275 = vand.u32 %v1274, 4294901760
        %1276 = vmatmul.mubr.f32.gmra.mrb[0].mxu0 %v1275
        %v1277 = vpop.f32.mrb[0].mxu0
        %v1278 = vadd.f32 %v1062, %v1277
        %v1279 = vpop.f32.mrb[0].mxu0
        %v1280 = vadd.f32 %v1064, %v1279
        %1281 = vmatprep.mubr.f32.mxu0 0.0
        %v1282 = vand.u32 %v397, 4294901760
        %v1283 = vsub.f32 %v397, %v1282
        %v1284 = vand.u32 %v1283, 4294901760
        %1285 = vmatmul.mubr.f32.gmra.mrb[0].mxu0 %v1284
        %v1286 = vpop.f32.mrb[0].mxu0
        %v1287 = vadd.f32 %v1070, %v1286
        %v1288 = vpop.f32.mrb[0].mxu0
        %v1289 = vadd.f32 %v1072, %v1288
        %1290 = vdwg.mxu0
        %v1291 = vand.u32 %v331, 4294901760
        %v1292 = vsub.f32 %v331, %v1291
        %v1293 = vand.u32 %v1292, 4294901760
        %1294 = vmatprep.subr.mxu0 %v1293
        %v1295 = vand.u32 %v330, 4294901760
        %v1296 = vsub.f32 %v330, %v1295
        %v1297 = vand.u32 %v1296, 4294901760
        %1298 = vmatpush1.msra.mxu0 %v1297
        %v1299 = vand.u32 %v333, 4294901760
        %v1300 = vsub.f32 %v333, %v1299
        %v1301 = vand.u32 %v1300, 4294901760
        %1302 = vmatprep.subr.mxu0 %v1301
        %v1303 = vand.u32 %v332, 4294901760
        %v1304 = vsub.f32 %v332, %v1303
        %v1305 = vand.u32 %v1304, 4294901760
        %1306 = vmatpush1.msra.mxu0 %v1305
        %v1307 = vand.u32 %v335, 4294901760
        %v1308 = vsub.f32 %v335, %v1307
        %v1309 = vand.u32 %v1308, 4294901760
        %1310 = vmatprep.subr.mxu0 %v1309
        %v1311 = vand.u32 %v334, 4294901760
        %v1312 = vsub.f32 %v334, %v1311
        %v1313 = vand.u32 %v1312, 4294901760
        %1314 = vmatpush1.msra.mxu0 %v1313
        %v1315 = vand.u32 %v337, 4294901760
        %v1316 = vsub.f32 %v337, %v1315
        %v1317 = vand.u32 %v1316, 4294901760
        %1318 = vmatprep.subr.mxu0 %v1317
        %v1319 = vand.u32 %v336, 4294901760
        %v1320 = vsub.f32 %v336, %v1319
        %v1321 = vand.u32 %v1320, 4294901760
        %1322 = vmatpush1.msra.mxu0 %v1321
        %1323 = vmatprep.subr.mxu0 0.0
        %1324 = vmatpush1.msra.mxu0 0.0
        %1325 = vmatprep.subr.mxu0 0.0
        %1326 = vmatpush1.msra.mxu0 0.0
        %1327 = vmatprep.subr.mxu0 0.0
        %1328 = vmatpush1.msra.mxu0 0.0
        %1329 = vmatprep.subr.mxu0 0.0
        %1330 = vmatpush1.msra.mxu0 0.0
        %1331 = vmatprep.subr.mxu0 0.0
        %1332 = vmatpush1.msra.mxu0 0.0
        %1333 = vmatprep.subr.mxu0 0.0
        %1334 = vmatpush1.msra.mxu0 0.0
        %1335 = vmatprep.subr.mxu0 0.0
        %1336 = vmatpush1.msra.mxu0 0.0
        %1337 = vmatprep.subr.mxu0 0.0
        %1338 = vmatpush1.msra.mxu0 0.0
        %1339 = vmatprep.subr.mxu0 0.0
        %1340 = vmatpush1.msra.mxu0 0.0
        %1341 = vmatprep.subr.mxu0 0.0
        %1342 = vmatpush1.msra.mxu0 0.0
        %1343 = vmatprep.subr.mxu0 0.0
        %1344 = vmatpush1.msra.mxu0 0.0
        %1345 = vmatprep.subr.mxu0 0.0
        %1346 = vmatpush1.msra.mxu0 0.0
        %1347 = vmatprep.subr.mxu0 0.0
        %1348 = vmatpush1.msra.mxu0 0.0
        %1349 = vmatprep.subr.mxu0 0.0
        %1350 = vmatpush1.msra.mxu0 0.0
        %1351 = vmatprep.subr.mxu0 0.0
        %1352 = vmatpush1.msra.mxu0 0.0
        %1353 = vmatprep.subr.mxu0 0.0
        %1354 = vmatpush1.msra.mxu0 0.0
        %1355 = vmatprep.subr.mxu0 0.0
        %1356 = vmatpush1.msra.mxu0 0.0
        %1357 = vmatprep.subr.mxu0 0.0
        %1358 = vmatpush1.msra.mxu0 0.0
        %1359 = vmatprep.subr.mxu0 0.0
        %1360 = vmatpush1.msra.mxu0 0.0
        %1361 = vmatprep.subr.mxu0 0.0
        %1362 = vmatpush1.msra.mxu0 0.0
        %1363 = vmatprep.subr.mxu0 0.0
        %1364 = vmatpush1.msra.mxu0 0.0
        %1365 = vmatprep.subr.mxu0 0.0
        %1366 = vmatpush1.msra.mxu0 0.0
        %1367 = vmatprep.subr.mxu0 0.0
        %1368 = vmatpush1.msra.mxu0 0.0
        %1369 = vmatprep.subr.mxu0 0.0
        %1370 = vmatpush1.msra.mxu0 0.0
        %1371 = vmatprep.subr.mxu0 0.0
        %1372 = vmatpush1.msra.mxu0 0.0
        %1373 = vmatprep.subr.mxu0 0.0
        %1374 = vmatpush1.msra.mxu0 0.0
        %1375 = vmatprep.subr.mxu0 0.0
        %1376 = vmatpush1.msra.mxu0 0.0
        %1377 = vmatprep.subr.mxu0 0.0
        %1378 = vmatpush1.msra.mxu0 0.0
        %1379 = vmatprep.mubr.f32.mxu0 0.0
        %v1380 = vand.u32 %v352, 4294901760
        %1381 = vmatmul.mubr.f32.gmra.mrb[0].mxu0 %v1380
        %v1382 = vpop.f32.mrb[0].mxu0
        %v1383 = vadd.f32 %v1152, %v1382
        %v1384 = vpop.f32.mrb[0].mxu0
        %v1385 = vadd.f32 %v1154, %v1384
        %1386 = vmatprep.mubr.f32.mxu0 0.0
        %v1387 = vand.u32 %v355, 4294901760
        %1388 = vmatmul.mubr.f32.gmra.mrb[0].mxu0 %v1387
        %v1389 = vpop.f32.mrb[0].mxu0
        %v1390 = vadd.f32 %v1161, %v1389
        %v1391 = vpop.f32.mrb[0].mxu0
        %v1392 = vadd.f32 %v1163, %v1391
        %1393 = vmatprep.mubr.f32.mxu0 0.0
        %v1394 = vand.u32 %v358, 4294901760
        %1395 = vmatmul.mubr.f32.gmra.mrb[0].mxu0 %v1394
        %v1396 = vpop.f32.mrb[0].mxu0
        %v1397 = vadd.f32 %v1170, %v1396
        %v1398 = vpop.f32.mrb[0].mxu0
        %v1399 = vadd.f32 %v1172, %v1398
        %1400 = vmatprep.mubr.f32.mxu0 0.0
        %v1401 = vand.u32 %v361, 4294901760
        %1402 = vmatmul.mubr.f32.gmra.mrb[0].mxu0 %v1401
        %v1403 = vpop.f32.mrb[0].mxu0
        %v1404 = vadd.f32 %v1179, %v1403
        %v1405 = vpop.f32.mrb[0].mxu0
        %v1406 = vadd.f32 %v1181, %v1405
        %1407 = vmatprep.mubr.f32.mxu0 0.0
        %v1408 = vand.u32 %v364, 4294901760
        %1409 = vmatmul.mubr.f32.gmra.mrb[0].mxu0 %v1408
        %v1410 = vpop.f32.mrb[0].mxu0
        %v1411 = vadd.f32 %v1188, %v1410
        %v1412 = vpop.f32.mrb[0].mxu0
        %v1413 = vadd.f32 %v1190, %v1412
        %1414 = vmatprep.mubr.f32.mxu0 0.0
        %v1415 = vand.u32 %v367, 4294901760
        %1416 = vmatmul.mubr.f32.gmra.mrb[0].mxu0 %v1415
        %v1417 = vpop.f32.mrb[0].mxu0
        %v1418 = vadd.f32 %v1197, %v1417
        %v1419 = vpop.f32.mrb[0].mxu0
        %v1420 = vadd.f32 %v1199, %v1419
        %1421 = vmatprep.mubr.f32.mxu0 0.0
        %v1422 = vand.u32 %v370, 4294901760
        %1423 = vmatmul.mubr.f32.gmra.mrb[0].mxu0 %v1422
        %v1424 = vpop.f32.mrb[0].mxu0
        %v1425 = vadd.f32 %v1206, %v1424
        %v1426 = vpop.f32.mrb[0].mxu0
        %v1427 = vadd.f32 %v1208, %v1426
        %1428 = vmatprep.mubr.f32.mxu0 0.0
        %v1429 = vand.u32 %v373, 4294901760
        %1430 = vmatmul.mubr.f32.gmra.mrb[0].mxu0 %v1429
        %v1431 = vpop.f32.mrb[0].mxu0
        %v1432 = vadd.f32 %v1215, %v1431
        %v1433 = vpop.f32.mrb[0].mxu0
        %v1434 = vadd.f32 %v1217, %v1433
        %1435 = vmatprep.mubr.f32.mxu0 0.0
        %v1436 = vand.u32 %v376, 4294901760
        %1437 = vmatmul.mubr.f32.gmra.mrb[0].mxu0 %v1436
        %v1438 = vpop.f32.mrb[0].mxu0
        %v1439 = vadd.f32 %v1224, %v1438
        %v1440 = vpop.f32.mrb[0].mxu0
        %v1441 = vadd.f32 %v1226, %v1440
        %1442 = vmatprep.mubr.f32.mxu0 0.0
        %v1443 = vand.u32 %v379, 4294901760
        %1444 = vmatmul.mubr.f32.gmra.mrb[0].mxu0 %v1443
        %v1445 = vpop.f32.mrb[0].mxu0
        %v1446 = vadd.f32 %v1233, %v1445
        %v1447 = vpop.f32.mrb[0].mxu0
        %v1448 = vadd.f32 %v1235, %v1447
        %1449 = vmatprep.mubr.f32.mxu0 0.0
        %v1450 = vand.u32 %v382, 4294901760
        %1451 = vmatmul.mubr.f32.gmra.mrb[0].mxu0 %v1450
        %v1452 = vpop.f32.mrb[0].mxu0
        %v1453 = vadd.f32 %v1242, %v1452
        %v1454 = vpop.f32.mrb[0].mxu0
        %v1455 = vadd.f32 %v1244, %v1454
        %1456 = vmatprep.mubr.f32.mxu0 0.0
        %v1457 = vand.u32 %v385, 4294901760
        %1458 = vmatmul.mubr.f32.gmra.mrb[0].mxu0 %v1457
        %v1459 = vpop.f32.mrb[0].mxu0
        %v1460 = vadd.f32 %v1251, %v1459
        %v1461 = vpop.f32.mrb[0].mxu0
        %v1462 = vadd.f32 %v1253, %v1461
        %1463 = vmatprep.mubr.f32.mxu0 0.0
        %v1464 = vand.u32 %v388, 4294901760
        %1465 = vmatmul.mubr.f32.gmra.mrb[0].mxu0 %v1464
        %v1466 = vpop.f32.mrb[0].mxu0
        %v1467 = vadd.f32 %v1260, %v1466
        %v1468 = vpop.f32.mrb[0].mxu0
        %v1469 = vadd.f32 %v1262, %v1468
        %1470 = vmatprep.mubr.f32.mxu0 0.0
        %v1471 = vand.u32 %v391, 4294901760
        %1472 = vmatmul.mubr.f32.gmra.mrb[0].mxu0 %v1471
        %v1473 = vpop.f32.mrb[0].mxu0
        %v1474 = vadd.f32 %v1269, %v1473
        %v1475 = vpop.f32.mrb[0].mxu0
        %v1476 = vadd.f32 %v1271, %v1475
        %1477 = vmatprep.mubr.f32.mxu0 0.0
        %v1478 = vand.u32 %v394, 4294901760
        %1479 = vmatmul.mubr.f32.gmra.mrb[0].mxu0 %v1478
        %v1480 = vpop.f32.mrb[0].mxu0
        %v1481 = vadd.f32 %v1278, %v1480
        %v1482 = vpop.f32.mrb[0].mxu0
        %v1483 = vadd.f32 %v1280, %v1482
        %1484 = vmatprep.mubr.f32.mxu0 0.0
        %v1485 = vand.u32 %v397, 4294901760
        %1486 = vmatmul.mubr.f32.gmra.mrb[0].mxu0 %v1485
        %v1487 = vpop.f32.mrb[0].mxu0
        %v1488 = vadd.f32 %v1287, %v1487
        %v1489 = vpop.f32.mrb[0].mxu0
        %v1490 = vadd.f32 %v1289, %v1489
        %1491 = vdwg.mxu0
        %v1492 = vand.u32 %v331, 4294901760
        %1493 = vmatprep.subr.mxu0 %v1492
        %v1494 = vand.u32 %v330, 4294901760
        %1495 = vmatpush1.msra.mxu0 %v1494
        %v1496 = vand.u32 %v333, 4294901760
        %1497 = vmatprep.subr.mxu0 %v1496
        %v1498 = vand.u32 %v332, 4294901760
        %1499 = vmatpush1.msra.mxu0 %v1498
        %v1500 = vand.u32 %v335, 4294901760
        %1501 = vmatprep.subr.mxu0 %v1500
        %v1502 = vand.u32 %v334, 4294901760
        %1503 = vmatpush1.msra.mxu0 %v1502
        %v1504 = vand.u32 %v337, 4294901760
        %1505 = vmatprep.subr.mxu0 %v1504
        %v1506 = vand.u32 %v336, 4294901760
        %1507 = vmatpush1.msra.mxu0 %v1506
        %1508 = vmatprep.subr.mxu0 0.0
        %1509 = vmatpush1.msra.mxu0 0.0
        %1510 = vmatprep.subr.mxu0 0.0
        %1511 = vmatpush1.msra.mxu0 0.0
        %1512 = vmatprep.subr.mxu0 0.0
        %1513 = vmatpush1.msra.mxu0 0.0
        %1514 = vmatprep.subr.mxu0 0.0
        %1515 = vmatpush1.msra.mxu0 0.0
        %1516 = vmatprep.subr.mxu0 0.0
        %1517 = vmatpush1.msra.mxu0 0.0
        %1518 = vmatprep.subr.mxu0 0.0
        %1519 = vmatpush1.msra.mxu0 0.0
        %1520 = vmatprep.subr.mxu0 0.0
        %1521 = vmatpush1.msra.mxu0 0.0
        %1522 = vmatprep.subr.mxu0 0.0
        %1523 = vmatpush1.msra.mxu0 0.0
        %1524 = vmatprep.subr.mxu0 0.0
        %1525 = vmatpush1.msra.mxu0 0.0
        %1526 = vmatprep.subr.mxu0 0.0
        %1527 = vmatpush1.msra.mxu0 0.0
        %1528 = vmatprep.subr.mxu0 0.0
        %1529 = vmatpush1.msra.mxu0 0.0
        %1530 = vmatprep.subr.mxu0 0.0
        %1531 = vmatpush1.msra.mxu0 0.0
        %1532 = vmatprep.subr.mxu0 0.0
        %1533 = vmatpush1.msra.mxu0 0.0
        %1534 = vmatprep.subr.mxu0 0.0
        %1535 = vmatpush1.msra.mxu0 0.0
        %1536 = vmatprep.subr.mxu0 0.0
        %1537 = vmatpush1.msra.mxu0 0.0
        %1538 = vmatprep.subr.mxu0 0.0
        %1539 = vmatpush1.msra.mxu0 0.0
        %1540 = vmatprep.subr.mxu0 0.0
        %1541 = vmatpush1.msra.mxu0 0.0
        %1542 = vmatprep.subr.mxu0 0.0
        %1543 = vmatpush1.msra.mxu0 0.0
        %1544 = vmatprep.subr.mxu0 0.0
        %1545 = vmatpush1.msra.mxu0 0.0
        %1546 = vmatprep.subr.mxu0 0.0
        %1547 = vmatpush1.msra.mxu0 0.0
        %1548 = vmatprep.subr.mxu0 0.0
        %1549 = vmatpush1.msra.mxu0 0.0
        %1550 = vmatprep.subr.mxu0 0.0
        %1551 = vmatpush1.msra.mxu0 0.0
        %1552 = vmatprep.subr.mxu0 0.0
        %1553 = vmatpush1.msra.mxu0 0.0
        %1554 = vmatprep.subr.mxu0 0.0
        %1555 = vmatpush1.msra.mxu0 0.0
        %1556 = vmatprep.subr.mxu0 0.0
        %1557 = vmatpush1.msra.mxu0 0.0
        %1558 = vmatprep.subr.mxu0 0.0
        %1559 = vmatpush1.msra.mxu0 0.0
        %1560 = vmatprep.subr.mxu0 0.0
        %1561 = vmatpush1.msra.mxu0 0.0
        %1562 = vmatprep.subr.mxu0 0.0
        %1563 = vmatpush1.msra.mxu0 0.0
        %1564 = vmatprep.mubr.f32.mxu0 0.0
        %v1565 = vand.u32 %v352, 4294901760
        %1566 = vmatmul.mubr.f32.gmra.mrb[0].mxu0 %v1565
        %v1567 = vpop.f32.mrb[0].mxu0
        %v1568 = vadd.f32 %v1383, %v1567
        %v1569 = vpop.f32.mrb[0].mxu0
        %v1570 = vadd.f32 %v1385, %v1569
        %1571 = vmatprep.mubr.f32.mxu0 0.0
        %v1572 = vand.u32 %v355, 4294901760
        %1573 = vmatmul.mubr.f32.gmra.mrb[0].mxu0 %v1572
        %v1574 = vpop.f32.mrb[0].mxu0
        %v1575 = vadd.f32 %v1390, %v1574
        %v1576 = vpop.f32.mrb[0].mxu0
        %v1577 = vadd.f32 %v1392, %v1576
        %1578 = vmatprep.mubr.f32.mxu0 0.0
        %v1579 = vand.u32 %v358, 4294901760
        %1580 = vmatmul.mubr.f32.gmra.mrb[0].mxu0 %v1579
        %v1581 = vpop.f32.mrb[0].mxu0
        %v1582 = vadd.f32 %v1397, %v1581
        %v1583 = vpop.f32.mrb[0].mxu0
        %v1584 = vadd.f32 %v1399, %v1583
        %1585 = vmatprep.mubr.f32.mxu0 0.0
        %v1586 = vand.u32 %v361, 4294901760
        %1587 = vmatmul.mubr.f32.gmra.mrb[0].mxu0 %v1586
        %v1588 = vpop.f32.mrb[0].mxu0
        %v1589 = vadd.f32 %v1404, %v1588
        %v1590 = vpop.f32.mrb[0].mxu0
        %v1591 = vadd.f32 %v1406, %v1590
        %1592 = vmatprep.mubr.f32.mxu0 0.0
        %v1593 = vand.u32 %v364, 4294901760
        %1594 = vmatmul.mubr.f32.gmra.mrb[0].mxu0 %v1593
        %v1595 = vpop.f32.mrb[0].mxu0
        %v1596 = vadd.f32 %v1411, %v1595
        %v1597 = vpop.f32.mrb[0].mxu0
        %v1598 = vadd.f32 %v1413, %v1597
        %1599 = vmatprep.mubr.f32.mxu0 0.0
        %v1600 = vand.u32 %v367, 4294901760
        %1601 = vmatmul.mubr.f32.gmra.mrb[0].mxu0 %v1600
        %v1602 = vpop.f32.mrb[0].mxu0
        %v1603 = vadd.f32 %v1418, %v1602
        %v1604 = vpop.f32.mrb[0].mxu0
        %v1605 = vadd.f32 %v1420, %v1604
        %1606 = vmatprep.mubr.f32.mxu0 0.0
        %v1607 = vand.u32 %v370, 4294901760
        %1608 = vmatmul.mubr.f32.gmra.mrb[0].mxu0 %v1607
        %v1609 = vpop.f32.mrb[0].mxu0
        %v1610 = vadd.f32 %v1425, %v1609
        %v1611 = vpop.f32.mrb[0].mxu0
        %v1612 = vadd.f32 %v1427, %v1611
        %1613 = vmatprep.mubr.f32.mxu0 0.0
        %v1614 = vand.u32 %v373, 4294901760
        %1615 = vmatmul.mubr.f32.gmra.mrb[0].mxu0 %v1614
        %v1616 = vpop.f32.mrb[0].mxu0
        %v1617 = vadd.f32 %v1432, %v1616
        %v1618 = vpop.f32.mrb[0].mxu0
        %v1619 = vadd.f32 %v1434, %v1618
        %1620 = vmatprep.mubr.f32.mxu0 0.0
        %v1621 = vand.u32 %v376, 4294901760
        %1622 = vmatmul.mubr.f32.gmra.mrb[0].mxu0 %v1621
        %v1623 = vpop.f32.mrb[0].mxu0
        %v1624 = vadd.f32 %v1439, %v1623
        %v1625 = vpop.f32.mrb[0].mxu0
        %v1626 = vadd.f32 %v1441, %v1625
        %1627 = vmatprep.mubr.f32.mxu0 0.0
        %v1628 = vand.u32 %v379, 4294901760
        %1629 = vmatmul.mubr.f32.gmra.mrb[0].mxu0 %v1628
        %v1630 = vpop.f32.mrb[0].mxu0
        %v1631 = vadd.f32 %v1446, %v1630
        %v1632 = vpop.f32.mrb[0].mxu0
        %v1633 = vadd.f32 %v1448, %v1632
        %1634 = vmatprep.mubr.f32.mxu0 0.0
        %v1635 = vand.u32 %v382, 4294901760
        %1636 = vmatmul.mubr.f32.gmra.mrb[0].mxu0 %v1635
        %v1637 = vpop.f32.mrb[0].mxu0
        %v1638 = vadd.f32 %v1453, %v1637
        %v1639 = vpop.f32.mrb[0].mxu0
        %v1640 = vadd.f32 %v1455, %v1639
        %1641 = vmatprep.mubr.f32.mxu0 0.0
        %v1642 = vand.u32 %v385, 4294901760
        %1643 = vmatmul.mubr.f32.gmra.mrb[0].mxu0 %v1642
        %v1644 = vpop.f32.mrb[0].mxu0
        %v1645 = vadd.f32 %v1460, %v1644
        %v1646 = vpop.f32.mrb[0].mxu0
        %v1647 = vadd.f32 %v1462, %v1646
        %1648 = vmatprep.mubr.f32.mxu0 0.0
        %v1649 = vand.u32 %v388, 4294901760
        %1650 = vmatmul.mubr.f32.gmra.mrb[0].mxu0 %v1649
        %v1651 = vpop.f32.mrb[0].mxu0
        %v1652 = vadd.f32 %v1467, %v1651
        %v1653 = vpop.f32.mrb[0].mxu0
        %v1654 = vadd.f32 %v1469, %v1653
        %1655 = vmatprep.mubr.f32.mxu0 0.0
        %v1656 = vand.u32 %v391, 4294901760
        %1657 = vmatmul.mubr.f32.gmra.mrb[0].mxu0 %v1656
        %v1658 = vpop.f32.mrb[0].mxu0
        %v1659 = vadd.f32 %v1474, %v1658
        %v1660 = vpop.f32.mrb[0].mxu0
        %v1661 = vadd.f32 %v1476, %v1660
        %1662 = vmatprep.mubr.f32.mxu0 0.0
        %v1663 = vand.u32 %v394, 4294901760
        %1664 = vmatmul.mubr.f32.gmra.mrb[0].mxu0 %v1663
        %v1665 = vpop.f32.mrb[0].mxu0
        %v1666 = vadd.f32 %v1481, %v1665
        %v1667 = vpop.f32.mrb[0].mxu0
        %v1668 = vadd.f32 %v1483, %v1667
        %1669 = vmatprep.mubr.f32.mxu0 0.0
        %v1670 = vand.u32 %v397, 4294901760
        %1671 = vmatmul.mubr.f32.gmra.mrb[0].mxu0 %v1670
        %v1672 = vpop.f32.mrb[0].mxu0
        %v1673 = vadd.f32 %v1488, %v1672
        %v1674 = vpop.f32.mrb[0].mxu0
        %v1675 = vadd.f32 %v1490, %v1674
        %1676 = vdwg.mxu0
        %v1677 = vmax.f32 %v1568, 0.0
        %v1678 = vmax.f32 %v1570, 0.0
        %v1679 = vmax.f32 %v1575, 0.0
        %v1680 = vmax.f32 %v1577, 0.0
        %v1681 = vmax.f32 %v1582, 0.0
        %v1682 = vmax.f32 %v1584, 0.0
        %v1683 = vmax.f32 %v1589, 0.0
        %v1684 = vmax.f32 %v1591, 0.0
        %v1685 = vmax.f32 %v1596, 0.0
        %v1686 = vmax.f32 %v1598, 0.0
        %v1687 = vmax.f32 %v1603, 0.0
        %v1688 = vmax.f32 %v1605, 0.0
        %v1689 = vmax.f32 %v1610, 0.0
        %v1690 = vmax.f32 %v1612, 0.0
        %v1691 = vmax.f32 %v1617, 0.0
        %v1692 = vmax.f32 %v1619, 0.0
        %v1693 = vmax.f32 %v1624, 0.0
        %v1694 = vmax.f32 %v1626, 0.0
        %v1695 = vmax.f32 %v1631, 0.0
        %v1696 = vmax.f32 %v1633, 0.0
        %v1697 = vmax.f32 %v1638, 0.0
        %v1698 = vmax.f32 %v1640, 0.0
        %v1699 = vmax.f32 %v1645, 0.0
        %v1700 = vmax.f32 %v1647, 0.0
        %v1701 = vmax.f32 %v1652, 0.0
        %v1702 = vmax.f32 %v1654, 0.0
        %v1703 = vmax.f32 %v1659, 0.0
        %v1704 = vmax.f32 %v1661, 0.0
        %v1705 = vmax.f32 %v1666, 0.0
        %v1706 = vmax.f32 %v1668, 0.0
        %v1707 = vmax.f32 %v1673, 0.0
        %v1708 = vmax.f32 %v1675, 0.0
        %v1709 = vld [vmem:[%s3] sm:$0xff]
        %v1710 = vld [vmem:[%s3 + $0x8] sm:$0xff]
        %v1711 = vld [vmem:[%s3 + $0x10] sm:$0xff]
        %v1712 = vld [vmem:[%s3 + $0x18] sm:$0xff]
        %v1713 = vld [vmem:[%s3 + $0x20] sm:$0xff]
        %v1714 = vld [vmem:[%s3 + $0x28] sm:$0xff]
        %v1715 = vld [vmem:[%s3 + $0x30] sm:$0xff]
        %v1716 = vld [vmem:[%s3 + $0x38] sm:$0xff]
        %v1717 = vld [vmem:[%s3 + $0x40] sm:$0xff]
        %v1718 = vld [vmem:[%s3 + $0x48] sm:$0xff]
        %v1719 = vld [vmem:[%s3 + $0x50] sm:$0xff]
        %v1720 = vld [vmem:[%s3 + $0x58] sm:$0xff]
        %v1721 = vld [vmem:[%s3 + $0x60] sm:$0xff]
        %v1722 = vld [vmem:[%s3 + $0x68] sm:$0xff]
        %v1723 = vld [vmem:[%s3 + $0x70] sm:$0xff]
        %v1724 = vld [vmem:[%s3 + $0x78] sm:$0xff]
        %v1725 = vld [vmem:[%s3 + $0x80] sm:$0xff]
        %v1726 = vld [vmem:[%s3 + $0x88] sm:$0xff]
        %v1727 = vld [vmem:[%s3 + $0x90] sm:$0xff]
        %v1728 = vld [vmem:[%s3 + $0x98] sm:$0xff]
        %v1729 = vld [vmem:[%s3 + $0xa0] sm:$0xff]
        %v1730 = vld [vmem:[%s3 + $0xa8] sm:$0xff]
        %v1731 = vld [vmem:[%s3 + $0xb0] sm:$0xff]
        %v1732 = vld [vmem:[%s3 + $0xb8] sm:$0xff]
        %v1733 = vld [vmem:[%s3 + $0xc0] sm:$0xff]
        %v1734 = vld [vmem:[%s3 + $0xc8] sm:$0xff]
        %v1735 = vld [vmem:[%s3 + $0xd0] sm:$0xff]
        %v1736 = vld [vmem:[%s3 + $0xd8] sm:$0xff]
        %v1737 = vld [vmem:[%s3 + $0xe0] sm:$0xff]
        %v1738 = vld [vmem:[%s3 + $0xe8] sm:$0xff]
        %v1739 = vld [vmem:[%s3 + $0xf0] sm:$0xff]
        %v1740 = vld [vmem:[%s3 + $0xf8] sm:$0xff]
        %v1741 = vld [vmem:[%s4] sm:$0x1]
        %v1743 = vlaneseq
        %v1744 = vshrl.u32 %v1743, 7
        %v1745 = vsub.s32 0, %v1744
        %v1746 = vrot.slane %v1741, %v1745
        %1748 = vmatprep.subr.mxu0 0.0
        %v1749 = vand.u32 %v1709, 4294901760
        %1750 = vmatpush1.msra.mxu0 %v1749
        %1751 = vmatprep.subr.mxu0 0.0
        %v1752 = vand.u32 %v1710, 4294901760
        %1753 = vmatpush1.msra.mxu0 %v1752
        %1754 = vmatprep.subr.mxu0 0.0
        %v1755 = vand.u32 %v1711, 4294901760
        %1756 = vmatpush1.msra.mxu0 %v1755
        %1757 = vmatprep.subr.mxu0 0.0
        %v1758 = vand.u32 %v1712, 4294901760
        %1759 = vmatpush1.msra.mxu0 %v1758
        %1760 = vmatprep.subr.mxu0 0.0
        %v1761 = vand.u32 %v1713, 4294901760
        %1762 = vmatpush1.msra.mxu0 %v1761
        %1763 = vmatprep.subr.mxu0 0.0
        %v1764 = vand.u32 %v1714, 4294901760
        %1765 = vmatpush1.msra.mxu0 %v1764
        %1766 = vmatprep.subr.mxu0 0.0
        %v1767 = vand.u32 %v1715, 4294901760
        %1768 = vmatpush1.msra.mxu0 %v1767
        %1769 = vmatprep.subr.mxu0 0.0
        %v1770 = vand.u32 %v1716, 4294901760
        %1771 = vmatpush1.msra.mxu0 %v1770
        %1772 = vmatprep.subr.mxu0 0.0
        %v1773 = vand.u32 %v1717, 4294901760
        %1774 = vmatpush1.msra.mxu0 %v1773
        %1775 = vmatprep.subr.mxu0 0.0
        %v1776 = vand.u32 %v1718, 4294901760
        %1777 = vmatpush1.msra.mxu0 %v1776
        %1778 = vmatprep.subr.mxu0 0.0
        %v1779 = vand.u32 %v1719, 4294901760
        %1780 = vmatpush1.msra.mxu0 %v1779
        %1781 = vmatprep.subr.mxu0 0.0
        %v1782 = vand.u32 %v1720, 4294901760
        %1783 = vmatpush1.msra.mxu0 %v1782
        %1784 = vmatprep.subr.mxu0 0.0
        %v1785 = vand.u32 %v1721, 4294901760
        %1786 = vmatpush1.msra.mxu0 %v1785
        %1787 = vmatprep.subr.mxu0 0.0
        %v1788 = vand.u32 %v1722, 4294901760
        %1789 = vmatpush1.msra.mxu0 %v1788
        %1790 = vmatprep.subr.mxu0 0.0
        %v1791 = vand.u32 %v1723, 4294901760
        %1792 = vmatpush1.msra.mxu0 %v1791
        %1793 = vmatprep.subr.mxu0 0.0
        %v1794 = vand.u32 %v1724, 4294901760
        %1795 = vmatpush1.msra.mxu0 %v1794
        %1796 = vmatprep.subr.mxu0 0.0
        %v1797 = vand.u32 %v1725, 4294901760
        %1798 = vmatpush1.msra.mxu0 %v1797
        %1799 = vmatprep.subr.mxu0 0.0
        %v1800 = vand.u32 %v1726, 4294901760
        %1801 = vmatpush1.msra.mxu0 %v1800
        %1802 = vmatprep.subr.mxu0 0.0
        %v1803 = vand.u32 %v1727, 4294901760
        %1804 = vmatpush1.msra.mxu0 %v1803
        %1805 = vmatprep.subr.mxu0 0.0
        %v1806 = vand.u32 %v1728, 4294901760
        %1807 = vmatpush1.msra.mxu0 %v1806
        %1808 = vmatprep.subr.mxu0 0.0
        %v1809 = vand.u32 %v1729, 4294901760
        %1810 = vmatpush1.msra.mxu0 %v1809
        %1811 = vmatprep.subr.mxu0 0.0
        %v1812 = vand.u32 %v1730, 4294901760
        %1813 = vmatpush1.msra.mxu0 %v1812
        %1814 = vmatprep.subr.mxu0 0.0
        %v1815 = vand.u32 %v1731, 4294901760
        %1816 = vmatpush1.msra.mxu0 %v1815
        %1817 = vmatprep.subr.mxu0 0.0
        %v1818 = vand.u32 %v1732, 4294901760
        %1819 = vmatpush1.msra.mxu0 %v1818
        %1820 = vmatprep.subr.mxu0 0.0
        %v1821 = vand.u32 %v1733, 4294901760
        %1822 = vmatpush1.msra.mxu0 %v1821
        %1823 = vmatprep.subr.mxu0 0.0
        %v1824 = vand.u32 %v1734, 4294901760
        %1825 = vmatpush1.msra.mxu0 %v1824
        %1826 = vmatprep.subr.mxu0 0.0
        %v1827 = vand.u32 %v1735, 4294901760
        %1828 = vmatpush1.msra.mxu0 %v1827
        %1829 = vmatprep.subr.mxu0 0.0
        %v1830 = vand.u32 %v1736, 4294901760
        %1831 = vmatpush1.msra.mxu0 %v1830
        %1832 = vmatprep.subr.mxu0 0.0
        %v1833 = vand.u32 %v1737, 4294901760
        %1834 = vmatpush1.msra.mxu0 %v1833
        %1835 = vmatprep.subr.mxu0 0.0
        %v1836 = vand.u32 %v1738, 4294901760
        %1837 = vmatpush1.msra.mxu0 %v1836
        %1838 = vmatprep.subr.mxu0 0.0
        %v1839 = vand.u32 %v1739, 4294901760
        %1840 = vmatpush1.msra.mxu0 %v1839
        %1841 = vmatprep.subr.mxu0 0.0
        %v1842 = vand.u32 %v1740, 4294901760
        %1843 = vmatpush1.msra.mxu0 %v1842
        %v1844 = vand.u32 %v1678, 4294901760
        %v1845 = vsub.f32 %v1678, %v1844
        %v1846 = vand.u32 %v1845, 4294901760
        %v1847 = vsub.f32 %v1845, %v1846
        %v1848 = vand.u32 %v1847, 4294901760
        %1849 = vmatprep.mubr.f32.mxu0 %v1848
        %v1850 = vand.u32 %v1677, 4294901760
        %v1851 = vsub.f32 %v1677, %v1850
        %v1852 = vand.u32 %v1851, 4294901760
        %v1853 = vsub.f32 %v1851, %v1852
        %v1854 = vand.u32 %v1853, 4294901760
        %1855 = vmatmul.mubr.f32.gmra.mrb[0].mxu0 %v1854
        %v1856 = vpop.f32.mrb[0].mxu0
        %v1857 = vadd.f32 %v1746, %v1856
        %v1858 = vpop.f32.mrb[0].mxu0
        %v1859 = vand.u32 %v1680, 4294901760
        %v1860 = vsub.f32 %v1680, %v1859
        %v1861 = vand.u32 %v1860, 4294901760
        %v1862 = vsub.f32 %v1860, %v1861
        %v1863 = vand.u32 %v1862, 4294901760
        %1864 = vmatprep.mubr.f32.mxu0 %v1863
        %v1865 = vand.u32 %v1679, 4294901760
        %v1866 = vsub.f32 %v1679, %v1865
        %v1867 = vand.u32 %v1866, 4294901760
        %v1868 = vsub.f32 %v1866, %v1867
        %v1869 = vand.u32 %v1868, 4294901760
        %1870 = vmatmul.mubr.f32.gmra.mrb[0].mxu0 %v1869
        %v1871 = vpop.f32.mrb[0].mxu0
        %v1872 = vadd.f32 %v1746, %v1871
        %v1873 = vpop.f32.mrb[0].mxu0
        %v1874 = vand.u32 %v1682, 4294901760
        %v1875 = vsub.f32 %v1682, %v1874
        %v1876 = vand.u32 %v1875, 4294901760
        %v1877 = vsub.f32 %v1875, %v1876
        %v1878 = vand.u32 %v1877, 4294901760
        %1879 = vmatprep.mubr.f32.mxu0 %v1878
        %v1880 = vand.u32 %v1681, 4294901760
        %v1881 = vsub.f32 %v1681, %v1880
        %v1882 = vand.u32 %v1881, 4294901760
        %v1883 = vsub.f32 %v1881, %v1882
        %v1884 = vand.u32 %v1883, 4294901760
        %1885 = vmatmul.mubr.f32.gmra.mrb[0].mxu0 %v1884
        %v1886 = vpop.f32.mrb[0].mxu0
        %v1887 = vadd.f32 %v1746, %v1886
        %v1888 = vpop.f32.mrb[0].mxu0
        %v1889 = vand.u32 %v1684, 4294901760
        %v1890 = vsub.f32 %v1684, %v1889
        %v1891 = vand.u32 %v1890, 4294901760
        %v1892 = vsub.f32 %v1890, %v1891
        %v1893 = vand.u32 %v1892, 4294901760
        %1894 = vmatprep.mubr.f32.mxu0 %v1893
        %v1895 = vand.u32 %v1683, 4294901760
        %v1896 = vsub.f32 %v1683, %v1895
        %v1897 = vand.u32 %v1896, 4294901760
        %v1898 = vsub.f32 %v1896, %v1897
        %v1899 = vand.u32 %v1898, 4294901760
        %1900 = vmatmul.mubr.f32.gmra.mrb[0].mxu0 %v1899
        %v1901 = vpop.f32.mrb[0].mxu0
        %v1902 = vadd.f32 %v1746, %v1901
        %v1903 = vpop.f32.mrb[0].mxu0
        %v1904 = vand.u32 %v1686, 4294901760
        %v1905 = vsub.f32 %v1686, %v1904
        %v1906 = vand.u32 %v1905, 4294901760
        %v1907 = vsub.f32 %v1905, %v1906
        %v1908 = vand.u32 %v1907, 4294901760
        %1909 = vmatprep.mubr.f32.mxu0 %v1908
        %v1910 = vand.u32 %v1685, 4294901760
        %v1911 = vsub.f32 %v1685, %v1910
        %v1912 = vand.u32 %v1911, 4294901760
        %v1913 = vsub.f32 %v1911, %v1912
        %v1914 = vand.u32 %v1913, 4294901760
        %1915 = vmatmul.mubr.f32.gmra.mrb[0].mxu0 %v1914
        %v1916 = vpop.f32.mrb[0].mxu0
        %v1917 = vadd.f32 %v1746, %v1916
        %v1918 = vpop.f32.mrb[0].mxu0
        %v1919 = vand.u32 %v1688, 4294901760
        %v1920 = vsub.f32 %v1688, %v1919
        %v1921 = vand.u32 %v1920, 4294901760
        %v1922 = vsub.f32 %v1920, %v1921
        %v1923 = vand.u32 %v1922, 4294901760
        %1924 = vmatprep.mubr.f32.mxu0 %v1923
        %v1925 = vand.u32 %v1687, 4294901760
        %v1926 = vsub.f32 %v1687, %v1925
        %v1927 = vand.u32 %v1926, 4294901760
        %v1928 = vsub.f32 %v1926, %v1927
        %v1929 = vand.u32 %v1928, 4294901760
        %1930 = vmatmul.mubr.f32.gmra.mrb[0].mxu0 %v1929
        %v1931 = vpop.f32.mrb[0].mxu0
        %v1932 = vadd.f32 %v1746, %v1931
        %v1933 = vpop.f32.mrb[0].mxu0
        %v1934 = vand.u32 %v1690, 4294901760
        %v1935 = vsub.f32 %v1690, %v1934
        %v1936 = vand.u32 %v1935, 4294901760
        %v1937 = vsub.f32 %v1935, %v1936
        %v1938 = vand.u32 %v1937, 4294901760
        %1939 = vmatprep.mubr.f32.mxu0 %v1938
        %v1940 = vand.u32 %v1689, 4294901760
        %v1941 = vsub.f32 %v1689, %v1940
        %v1942 = vand.u32 %v1941, 4294901760
        %v1943 = vsub.f32 %v1941, %v1942
        %v1944 = vand.u32 %v1943, 4294901760
        %1945 = vmatmul.mubr.f32.gmra.mrb[0].mxu0 %v1944
        %v1946 = vpop.f32.mrb[0].mxu0
        %v1947 = vadd.f32 %v1746, %v1946
        %v1948 = vpop.f32.mrb[0].mxu0
        %v1949 = vand.u32 %v1692, 4294901760
        %v1950 = vsub.f32 %v1692, %v1949
        %v1951 = vand.u32 %v1950, 4294901760
        %v1952 = vsub.f32 %v1950, %v1951
        %v1953 = vand.u32 %v1952, 4294901760
        %1954 = vmatprep.mubr.f32.mxu0 %v1953
        %v1955 = vand.u32 %v1691, 4294901760
        %v1956 = vsub.f32 %v1691, %v1955
        %v1957 = vand.u32 %v1956, 4294901760
        %v1958 = vsub.f32 %v1956, %v1957
        %v1959 = vand.u32 %v1958, 4294901760
        %1960 = vmatmul.mubr.f32.gmra.mrb[0].mxu0 %v1959
        %v1961 = vpop.f32.mrb[0].mxu0
        %v1962 = vadd.f32 %v1746, %v1961
        %v1963 = vpop.f32.mrb[0].mxu0
        %v1964 = vand.u32 %v1694, 4294901760
        %v1965 = vsub.f32 %v1694, %v1964
        %v1966 = vand.u32 %v1965, 4294901760
        %v1967 = vsub.f32 %v1965, %v1966
        %v1968 = vand.u32 %v1967, 4294901760
        %1969 = vmatprep.mubr.f32.mxu0 %v1968
        %v1970 = vand.u32 %v1693, 4294901760
        %v1971 = vsub.f32 %v1693, %v1970
        %v1972 = vand.u32 %v1971, 4294901760
        %v1973 = vsub.f32 %v1971, %v1972
        %v1974 = vand.u32 %v1973, 4294901760
        %1975 = vmatmul.mubr.f32.gmra.mrb[0].mxu0 %v1974
        %v1976 = vpop.f32.mrb[0].mxu0
        %v1977 = vadd.f32 %v1746, %v1976
        %v1978 = vpop.f32.mrb[0].mxu0
        %v1979 = vand.u32 %v1696, 4294901760
        %v1980 = vsub.f32 %v1696, %v1979
        %v1981 = vand.u32 %v1980, 4294901760
        %v1982 = vsub.f32 %v1980, %v1981
        %v1983 = vand.u32 %v1982, 4294901760
        %1984 = vmatprep.mubr.f32.mxu0 %v1983
        %v1985 = vand.u32 %v1695, 4294901760
        %v1986 = vsub.f32 %v1695, %v1985
        %v1987 = vand.u32 %v1986, 4294901760
        %v1988 = vsub.f32 %v1986, %v1987
        %v1989 = vand.u32 %v1988, 4294901760
        %1990 = vmatmul.mubr.f32.gmra.mrb[0].mxu0 %v1989
        %v1991 = vpop.f32.mrb[0].mxu0
        %v1992 = vadd.f32 %v1746, %v1991
        %v1993 = vpop.f32.mrb[0].mxu0
        %v1994 = vand.u32 %v1698, 4294901760
        %v1995 = vsub.f32 %v1698, %v1994
        %v1996 = vand.u32 %v1995, 4294901760
        %v1997 = vsub.f32 %v1995, %v1996
        %v1998 = vand.u32 %v1997, 4294901760
        %1999 = vmatprep.mubr.f32.mxu0 %v1998
        %v2000 = vand.u32 %v1697, 4294901760
        %v2001 = vsub.f32 %v1697, %v2000
        %v2002 = vand.u32 %v2001, 4294901760
        %v2003 = vsub.f32 %v2001, %v2002
        %v2004 = vand.u32 %v2003, 4294901760
        %2005 = vmatmul.mubr.f32.gmra.mrb[0].mxu0 %v2004
        %v2006 = vpop.f32.mrb[0].mxu0
        %v2007 = vadd.f32 %v1746, %v2006
        %v2008 = vpop.f32.mrb[0].mxu0
        %v2009 = vand.u32 %v1700, 4294901760
        %v2010 = vsub.f32 %v1700, %v2009
        %v2011 = vand.u32 %v2010, 4294901760
        %v2012 = vsub.f32 %v2010, %v2011
        %v2013 = vand.u32 %v2012, 4294901760
        %2014 = vmatprep.mubr.f32.mxu0 %v2013
        %v2015 = vand.u32 %v1699, 4294901760
        %v2016 = vsub.f32 %v1699, %v2015
        %v2017 = vand.u32 %v2016, 4294901760
        %v2018 = vsub.f32 %v2016, %v2017
        %v2019 = vand.u32 %v2018, 4294901760
        %2020 = vmatmul.mubr.f32.gmra.mrb[0].mxu0 %v2019
        %v2021 = vpop.f32.mrb[0].mxu0
        %v2022 = vadd.f32 %v1746, %v2021
        %v2023 = vpop.f32.mrb[0].mxu0
        %v2024 = vand.u32 %v1702, 4294901760
        %v2025 = vsub.f32 %v1702, %v2024
        %v2026 = vand.u32 %v2025, 4294901760
        %v2027 = vsub.f32 %v2025, %v2026
        %v2028 = vand.u32 %v2027, 4294901760
        %2029 = vmatprep.mubr.f32.mxu0 %v2028
        %v2030 = vand.u32 %v1701, 4294901760
        %v2031 = vsub.f32 %v1701, %v2030
        %v2032 = vand.u32 %v2031, 4294901760
        %v2033 = vsub.f32 %v2031, %v2032
        %v2034 = vand.u32 %v2033, 4294901760
        %2035 = vmatmul.mubr.f32.gmra.mrb[0].mxu0 %v2034
        %v2036 = vpop.f32.mrb[0].mxu0
        %v2037 = vadd.f32 %v1746, %v2036
        %v2038 = vpop.f32.mrb[0].mxu0
        %v2039 = vand.u32 %v1704, 4294901760
        %v2040 = vsub.f32 %v1704, %v2039
        %v2041 = vand.u32 %v2040, 4294901760
        %v2042 = vsub.f32 %v2040, %v2041
        %v2043 = vand.u32 %v2042, 4294901760
        %2044 = vmatprep.mubr.f32.mxu0 %v2043
        %v2045 = vand.u32 %v1703, 4294901760
        %v2046 = vsub.f32 %v1703, %v2045
        %v2047 = vand.u32 %v2046, 4294901760
        %v2048 = vsub.f32 %v2046, %v2047
        %v2049 = vand.u32 %v2048, 4294901760
        %2050 = vmatmul.mubr.f32.gmra.mrb[0].mxu0 %v2049
        %v2051 = vpop.f32.mrb[0].mxu0
        %v2052 = vadd.f32 %v1746, %v2051
        %v2053 = vpop.f32.mrb[0].mxu0
        %v2054 = vand.u32 %v1706, 4294901760
        %v2055 = vsub.f32 %v1706, %v2054
        %v2056 = vand.u32 %v2055, 4294901760
        %v2057 = vsub.f32 %v2055, %v2056
        %v2058 = vand.u32 %v2057, 4294901760
        %2059 = vmatprep.mubr.f32.mxu0 %v2058
        %v2060 = vand.u32 %v1705, 4294901760
        %v2061 = vsub.f32 %v1705, %v2060
        %v2062 = vand.u32 %v2061, 4294901760
        %v2063 = vsub.f32 %v2061, %v2062
        %v2064 = vand.u32 %v2063, 4294901760
        %2065 = vmatmul.mubr.f32.gmra.mrb[0].mxu0 %v2064
        %v2066 = vpop.f32.mrb[0].mxu0
        %v2067 = vadd.f32 %v1746, %v2066
        %v2068 = vpop.f32.mrb[0].mxu0
        %v2069 = vand.u32 %v1708, 4294901760
        %v2070 = vsub.f32 %v1708, %v2069
        %v2071 = vand.u32 %v2070, 4294901760
        %v2072 = vsub.f32 %v2070, %v2071
        %v2073 = vand.u32 %v2072, 4294901760
        %2074 = vmatprep.mubr.f32.mxu0 %v2073
        %v2075 = vand.u32 %v1707, 4294901760
        %v2076 = vsub.f32 %v1707, %v2075
        %v2077 = vand.u32 %v2076, 4294901760
        %v2078 = vsub.f32 %v2076, %v2077
        %v2079 = vand.u32 %v2078, 4294901760
        %2080 = vmatmul.mubr.f32.gmra.mrb[0].mxu0 %v2079
        %v2081 = vpop.f32.mrb[0].mxu0
        %v2082 = vadd.f32 %v1746, %v2081
        %v2083 = vpop.f32.mrb[0].mxu0
        %2084 = vdwg.mxu0
        %2085 = vmatprep.subr.mxu0 0.0
        %v2086 = vand.u32 %v1709, 4294901760
        %v2087 = vsub.f32 %v1709, %v2086
        %v2088 = vand.u32 %v2087, 4294901760
        %v2089 = vsub.f32 %v2087, %v2088
        %v2090 = vand.u32 %v2089, 4294901760
        %2091 = vmatpush1.msra.mxu0 %v2090
        %2092 = vmatprep.subr.mxu0 0.0
        %v2093 = vand.u32 %v1710, 4294901760
        %v2094 = vsub.f32 %v1710, %v2093
        %v2095 = vand.u32 %v2094, 4294901760
        %v2096 = vsub.f32 %v2094, %v2095
        %v2097 = vand.u32 %v2096, 4294901760
        %2098 = vmatpush1.msra.mxu0 %v2097
        %2099 = vmatprep.subr.mxu0 0.0
        %v2100 = vand.u32 %v1711, 4294901760
        %v2101 = vsub.f32 %v1711, %v2100
        %v2102 = vand.u32 %v2101, 4294901760
        %v2103 = vsub.f32 %v2101, %v2102
        %v2104 = vand.u32 %v2103, 4294901760
        %2105 = vmatpush1.msra.mxu0 %v2104
        %2106 = vmatprep.subr.mxu0 0.0
        %v2107 = vand.u32 %v1712, 4294901760
        %v2108 = vsub.f32 %v1712, %v2107
        %v2109 = vand.u32 %v2108, 4294901760
        %v2110 = vsub.f32 %v2108, %v2109
        %v2111 = vand.u32 %v2110, 4294901760
        %2112 = vmatpush1.msra.mxu0 %v2111
        %2113 = vmatprep.subr.mxu0 0.0
        %v2114 = vand.u32 %v1713, 4294901760
        %v2115 = vsub.f32 %v1713, %v2114
        %v2116 = vand.u32 %v2115, 4294901760
        %v2117 = vsub.f32 %v2115, %v2116
        %v2118 = vand.u32 %v2117, 4294901760
        %2119 = vmatpush1.msra.mxu0 %v2118
        %2120 = vmatprep.subr.mxu0 0.0
        %v2121 = vand.u32 %v1714, 4294901760
        %v2122 = vsub.f32 %v1714, %v2121
        %v2123 = vand.u32 %v2122, 4294901760
        %v2124 = vsub.f32 %v2122, %v2123
        %v2125 = vand.u32 %v2124, 4294901760
        %2126 = vmatpush1.msra.mxu0 %v2125
        %2127 = vmatprep.subr.mxu0 0.0
        %v2128 = vand.u32 %v1715, 4294901760
        %v2129 = vsub.f32 %v1715, %v2128
        %v2130 = vand.u32 %v2129, 4294901760
        %v2131 = vsub.f32 %v2129, %v2130
        %v2132 = vand.u32 %v2131, 4294901760
        %2133 = vmatpush1.msra.mxu0 %v2132
        %2134 = vmatprep.subr.mxu0 0.0
        %v2135 = vand.u32 %v1716, 4294901760
        %v2136 = vsub.f32 %v1716, %v2135
        %v2137 = vand.u32 %v2136, 4294901760
        %v2138 = vsub.f32 %v2136, %v2137
        %v2139 = vand.u32 %v2138, 4294901760
        %2140 = vmatpush1.msra.mxu0 %v2139
        %2141 = vmatprep.subr.mxu0 0.0
        %v2142 = vand.u32 %v1717, 4294901760
        %v2143 = vsub.f32 %v1717, %v2142
        %v2144 = vand.u32 %v2143, 4294901760
        %v2145 = vsub.f32 %v2143, %v2144
        %v2146 = vand.u32 %v2145, 4294901760
        %2147 = vmatpush1.msra.mxu0 %v2146
        %2148 = vmatprep.subr.mxu0 0.0
        %v2149 = vand.u32 %v1718, 4294901760
        %v2150 = vsub.f32 %v1718, %v2149
        %v2151 = vand.u32 %v2150, 4294901760
        %v2152 = vsub.f32 %v2150, %v2151
        %v2153 = vand.u32 %v2152, 4294901760
        %2154 = vmatpush1.msra.mxu0 %v2153
        %2155 = vmatprep.subr.mxu0 0.0
        %v2156 = vand.u32 %v1719, 4294901760
        %v2157 = vsub.f32 %v1719, %v2156
        %v2158 = vand.u32 %v2157, 4294901760
        %v2159 = vsub.f32 %v2157, %v2158
        %v2160 = vand.u32 %v2159, 4294901760
        %2161 = vmatpush1.msra.mxu0 %v2160
        %2162 = vmatprep.subr.mxu0 0.0
        %v2163 = vand.u32 %v1720, 4294901760
        %v2164 = vsub.f32 %v1720, %v2163
        %v2165 = vand.u32 %v2164, 4294901760
        %v2166 = vsub.f32 %v2164, %v2165
        %v2167 = vand.u32 %v2166, 4294901760
        %2168 = vmatpush1.msra.mxu0 %v2167
        %2169 = vmatprep.subr.mxu0 0.0
        %v2170 = vand.u32 %v1721, 4294901760
        %v2171 = vsub.f32 %v1721, %v2170
        %v2172 = vand.u32 %v2171, 4294901760
        %v2173 = vsub.f32 %v2171, %v2172
        %v2174 = vand.u32 %v2173, 4294901760
        %2175 = vmatpush1.msra.mxu0 %v2174
        %2176 = vmatprep.subr.mxu0 0.0
        %v2177 = vand.u32 %v1722, 4294901760
        %v2178 = vsub.f32 %v1722, %v2177
        %v2179 = vand.u32 %v2178, 4294901760
        %v2180 = vsub.f32 %v2178, %v2179
        %v2181 = vand.u32 %v2180, 4294901760
        %2182 = vmatpush1.msra.mxu0 %v2181
        %2183 = vmatprep.subr.mxu0 0.0
        %v2184 = vand.u32 %v1723, 4294901760
        %v2185 = vsub.f32 %v1723, %v2184
        %v2186 = vand.u32 %v2185, 4294901760
        %v2187 = vsub.f32 %v2185, %v2186
        %v2188 = vand.u32 %v2187, 4294901760
        %2189 = vmatpush1.msra.mxu0 %v2188
        %2190 = vmatprep.subr.mxu0 0.0
        %v2191 = vand.u32 %v1724, 4294901760
        %v2192 = vsub.f32 %v1724, %v2191
        %v2193 = vand.u32 %v2192, 4294901760
        %v2194 = vsub.f32 %v2192, %v2193
        %v2195 = vand.u32 %v2194, 4294901760
        %2196 = vmatpush1.msra.mxu0 %v2195
        %2197 = vmatprep.subr.mxu0 0.0
        %v2198 = vand.u32 %v1725, 4294901760
        %v2199 = vsub.f32 %v1725, %v2198
        %v2200 = vand.u32 %v2199, 4294901760
        %v2201 = vsub.f32 %v2199, %v2200
        %v2202 = vand.u32 %v2201, 4294901760
        %2203 = vmatpush1.msra.mxu0 %v2202
        %2204 = vmatprep.subr.mxu0 0.0
        %v2205 = vand.u32 %v1726, 4294901760
        %v2206 = vsub.f32 %v1726, %v2205
        %v2207 = vand.u32 %v2206, 4294901760
        %v2208 = vsub.f32 %v2206, %v2207
        %v2209 = vand.u32 %v2208, 4294901760
        %2210 = vmatpush1.msra.mxu0 %v2209
        %2211 = vmatprep.subr.mxu0 0.0
        %v2212 = vand.u32 %v1727, 4294901760
        %v2213 = vsub.f32 %v1727, %v2212
        %v2214 = vand.u32 %v2213, 4294901760
        %v2215 = vsub.f32 %v2213, %v2214
        %v2216 = vand.u32 %v2215, 4294901760
        %2217 = vmatpush1.msra.mxu0 %v2216
        %2218 = vmatprep.subr.mxu0 0.0
        %v2219 = vand.u32 %v1728, 4294901760
        %v2220 = vsub.f32 %v1728, %v2219
        %v2221 = vand.u32 %v2220, 4294901760
        %v2222 = vsub.f32 %v2220, %v2221
        %v2223 = vand.u32 %v2222, 4294901760
        %2224 = vmatpush1.msra.mxu0 %v2223
        %2225 = vmatprep.subr.mxu0 0.0
        %v2226 = vand.u32 %v1729, 4294901760
        %v2227 = vsub.f32 %v1729, %v2226
        %v2228 = vand.u32 %v2227, 4294901760
        %v2229 = vsub.f32 %v2227, %v2228
        %v2230 = vand.u32 %v2229, 4294901760
        %2231 = vmatpush1.msra.mxu0 %v2230
        %2232 = vmatprep.subr.mxu0 0.0
        %v2233 = vand.u32 %v1730, 4294901760
        %v2234 = vsub.f32 %v1730, %v2233
        %v2235 = vand.u32 %v2234, 4294901760
        %v2236 = vsub.f32 %v2234, %v2235
        %v2237 = vand.u32 %v2236, 4294901760
        %2238 = vmatpush1.msra.mxu0 %v2237
        %2239 = vmatprep.subr.mxu0 0.0
        %v2240 = vand.u32 %v1731, 4294901760
        %v2241 = vsub.f32 %v1731, %v2240
        %v2242 = vand.u32 %v2241, 4294901760
        %v2243 = vsub.f32 %v2241, %v2242
        %v2244 = vand.u32 %v2243, 4294901760
        %2245 = vmatpush1.msra.mxu0 %v2244
        %2246 = vmatprep.subr.mxu0 0.0
        %v2247 = vand.u32 %v1732, 4294901760
        %v2248 = vsub.f32 %v1732, %v2247
        %v2249 = vand.u32 %v2248, 4294901760
        %v2250 = vsub.f32 %v2248, %v2249
        %v2251 = vand.u32 %v2250, 4294901760
        %2252 = vmatpush1.msra.mxu0 %v2251
        %2253 = vmatprep.subr.mxu0 0.0
        %v2254 = vand.u32 %v1733, 4294901760
        %v2255 = vsub.f32 %v1733, %v2254
        %v2256 = vand.u32 %v2255, 4294901760
        %v2257 = vsub.f32 %v2255, %v2256
        %v2258 = vand.u32 %v2257, 4294901760
        %2259 = vmatpush1.msra.mxu0 %v2258
        %2260 = vmatprep.subr.mxu0 0.0
        %v2261 = vand.u32 %v1734, 4294901760
        %v2262 = vsub.f32 %v1734, %v2261
        %v2263 = vand.u32 %v2262, 4294901760
        %v2264 = vsub.f32 %v2262, %v2263
        %v2265 = vand.u32 %v2264, 4294901760
        %2266 = vmatpush1.msra.mxu0 %v2265
        %2267 = vmatprep.subr.mxu0 0.0
        %v2268 = vand.u32 %v1735, 4294901760
        %v2269 = vsub.f32 %v1735, %v2268
        %v2270 = vand.u32 %v2269, 4294901760
        %v2271 = vsub.f32 %v2269, %v2270
        %v2272 = vand.u32 %v2271, 4294901760
        %2273 = vmatpush1.msra.mxu0 %v2272
        %2274 = vmatprep.subr.mxu0 0.0
        %v2275 = vand.u32 %v1736, 4294901760
        %v2276 = vsub.f32 %v1736, %v2275
        %v2277 = vand.u32 %v2276, 4294901760
        %v2278 = vsub.f32 %v2276, %v2277
        %v2279 = vand.u32 %v2278, 4294901760
        %2280 = vmatpush1.msra.mxu0 %v2279
        %2281 = vmatprep.subr.mxu0 0.0
        %v2282 = vand.u32 %v1737, 4294901760
        %v2283 = vsub.f32 %v1737, %v2282
        %v2284 = vand.u32 %v2283, 4294901760
        %v2285 = vsub.f32 %v2283, %v2284
        %v2286 = vand.u32 %v2285, 4294901760
        %2287 = vmatpush1.msra.mxu0 %v2286
        %2288 = vmatprep.subr.mxu0 0.0
        %v2289 = vand.u32 %v1738, 4294901760
        %v2290 = vsub.f32 %v1738, %v2289
        %v2291 = vand.u32 %v2290, 4294901760
        %v2292 = vsub.f32 %v2290, %v2291
        %v2293 = vand.u32 %v2292, 4294901760
        %2294 = vmatpush1.msra.mxu0 %v2293
        %2295 = vmatprep.subr.mxu0 0.0
        %v2296 = vand.u32 %v1739, 4294901760
        %v2297 = vsub.f32 %v1739, %v2296
        %v2298 = vand.u32 %v2297, 4294901760
        %v2299 = vsub.f32 %v2297, %v2298
        %v2300 = vand.u32 %v2299, 4294901760
        %2301 = vmatpush1.msra.mxu0 %v2300
        %2302 = vmatprep.subr.mxu0 0.0
        %v2303 = vand.u32 %v1740, 4294901760
        %v2304 = vsub.f32 %v1740, %v2303
        %v2305 = vand.u32 %v2304, 4294901760
        %v2306 = vsub.f32 %v2304, %v2305
        %v2307 = vand.u32 %v2306, 4294901760
        %2308 = vmatpush1.msra.mxu0 %v2307
        %v2309 = vand.u32 %v1678, 4294901760
        %2310 = vmatprep.mubr.f32.mxu0 %v2309
        %v2311 = vand.u32 %v1677, 4294901760
        %2312 = vmatmul.mubr.f32.gmra.mrb[0].mxu0 %v2311
        %v2313 = vpop.f32.mrb[0].mxu0
        %v2314 = vadd.f32 %v1857, %v2313
        %v2315 = vpop.f32.mrb[0].mxu0
        %v2316 = vand.u32 %v1680, 4294901760
        %2317 = vmatprep.mubr.f32.mxu0 %v2316
        %v2318 = vand.u32 %v1679, 4294901760
        %2319 = vmatmul.mubr.f32.gmra.mrb[0].mxu0 %v2318
        %v2320 = vpop.f32.mrb[0].mxu0
        %v2321 = vadd.f32 %v1872, %v2320
        %v2322 = vpop.f32.mrb[0].mxu0
        %v2323 = vand.u32 %v1682, 4294901760
        %2324 = vmatprep.mubr.f32.mxu0 %v2323
        %v2325 = vand.u32 %v1681, 4294901760
        %2326 = vmatmul.mubr.f32.gmra.mrb[0].mxu0 %v2325
        %v2327 = vpop.f32.mrb[0].mxu0
        %v2328 = vadd.f32 %v1887, %v2327
        %v2329 = vpop.f32.mrb[0].mxu0
        %v2330 = vand.u32 %v1684, 4294901760
        %2331 = vmatprep.mubr.f32.mxu0 %v2330
        %v2332 = vand.u32 %v1683, 4294901760
        %2333 = vmatmul.mubr.f32.gmra.mrb[0].mxu0 %v2332
        %v2334 = vpop.f32.mrb[0].mxu0
        %v2335 = vadd.f32 %v1902, %v2334
        %v2336 = vpop.f32.mrb[0].mxu0
        %v2337 = vand.u32 %v1686, 4294901760
        %2338 = vmatprep.mubr.f32.mxu0 %v2337
        %v2339 = vand.u32 %v1685, 4294901760
        %2340 = vmatmul.mubr.f32.gmra.mrb[0].mxu0 %v2339
        %v2341 = vpop.f32.mrb[0].mxu0
        %v2342 = vadd.f32 %v1917, %v2341
        %v2343 = vpop.f32.mrb[0].mxu0
        %v2344 = vand.u32 %v1688, 4294901760
        %2345 = vmatprep.mubr.f32.mxu0 %v2344
        %v2346 = vand.u32 %v1687, 4294901760
        %2347 = vmatmul.mubr.f32.gmra.mrb[0].mxu0 %v2346
        %v2348 = vpop.f32.mrb[0].mxu0
        %v2349 = vadd.f32 %v1932, %v2348
        %v2350 = vpop.f32.mrb[0].mxu0
        %v2351 = vand.u32 %v1690, 4294901760
        %2352 = vmatprep.mubr.f32.mxu0 %v2351
        %v2353 = vand.u32 %v1689, 4294901760
        %2354 = vmatmul.mubr.f32.gmra.mrb[0].mxu0 %v2353
        %v2355 = vpop.f32.mrb[0].mxu0
        %v2356 = vadd.f32 %v1947, %v2355
        %v2357 = vpop.f32.mrb[0].mxu0
        %v2358 = vand.u32 %v1692, 4294901760
        %2359 = vmatprep.mubr.f32.mxu0 %v2358
        %v2360 = vand.u32 %v1691, 4294901760
        %2361 = vmatmul.mubr.f32.gmra.mrb[0].mxu0 %v2360
        %v2362 = vpop.f32.mrb[0].mxu0
        %v2363 = vadd.f32 %v1962, %v2362
        %v2364 = vpop.f32.mrb[0].mxu0
        %v2365 = vand.u32 %v1694, 4294901760
        %2366 = vmatprep.mubr.f32.mxu0 %v2365
        %v2367 = vand.u32 %v1693, 4294901760
        %2368 = vmatmul.mubr.f32.gmra.mrb[0].mxu0 %v2367
        %v2369 = vpop.f32.mrb[0].mxu0
        %v2370 = vadd.f32 %v1977, %v2369
        %v2371 = vpop.f32.mrb[0].mxu0
        %v2372 = vand.u32 %v1696, 4294901760
        %2373 = vmatprep.mubr.f32.mxu0 %v2372
        %v2374 = vand.u32 %v1695, 4294901760
        %2375 = vmatmul.mubr.f32.gmra.mrb[0].mxu0 %v2374
        %v2376 = vpop.f32.mrb[0].mxu0
        %v2377 = vadd.f32 %v1992, %v2376
        %v2378 = vpop.f32.mrb[0].mxu0
        %v2379 = vand.u32 %v1698, 4294901760
        %2380 = vmatprep.mubr.f32.mxu0 %v2379
        %v2381 = vand.u32 %v1697, 4294901760
        %2382 = vmatmul.mubr.f32.gmra.mrb[0].mxu0 %v2381
        %v2383 = vpop.f32.mrb[0].mxu0
        %v2384 = vadd.f32 %v2007, %v2383
        %v2385 = vpop.f32.mrb[0].mxu0
        %v2386 = vand.u32 %v1700, 4294901760
        %2387 = vmatprep.mubr.f32.mxu0 %v2386
        %v2388 = vand.u32 %v1699, 4294901760
        %2389 = vmatmul.mubr.f32.gmra.mrb[0].mxu0 %v2388
        %v2390 = vpop.f32.mrb[0].mxu0
        %v2391 = vadd.f32 %v2022, %v2390
        %v2392 = vpop.f32.mrb[0].mxu0
        %v2393 = vand.u32 %v1702, 4294901760
        %2394 = vmatprep.mubr.f32.mxu0 %v2393
        %v2395 = vand.u32 %v1701, 4294901760
        %2396 = vmatmul.mubr.f32.gmra.mrb[0].mxu0 %v2395
        %v2397 = vpop.f32.mrb[0].mxu0
        %v2398 = vadd.f32 %v2037, %v2397
        %v2399 = vpop.f32.mrb[0].mxu0
        %v2400 = vand.u32 %v1704, 4294901760
        %2401 = vmatprep.mubr.f32.mxu0 %v2400
        %v2402 = vand.u32 %v1703, 4294901760
        %2403 = vmatmul.mubr.f32.gmra.mrb[0].mxu0 %v2402
        %v2404 = vpop.f32.mrb[0].mxu0
        %v2405 = vadd.f32 %v2052, %v2404
        %v2406 = vpop.f32.mrb[0].mxu0
        %v2407 = vand.u32 %v1706, 4294901760
        %2408 = vmatprep.mubr.f32.mxu0 %v2407
        %v2409 = vand.u32 %v1705, 4294901760
        %2410 = vmatmul.mubr.f32.gmra.mrb[0].mxu0 %v2409
        %v2411 = vpop.f32.mrb[0].mxu0
        %v2412 = vadd.f32 %v2067, %v2411
        %v2413 = vpop.f32.mrb[0].mxu0
        %v2414 = vand.u32 %v1708, 4294901760
        %2415 = vmatprep.mubr.f32.mxu0 %v2414
        %v2416 = vand.u32 %v1707, 4294901760
        %2417 = vmatmul.mubr.f32.gmra.mrb[0].mxu0 %v2416
        %v2418 = vpop.f32.mrb[0].mxu0
        %v2419 = vadd.f32 %v2082, %v2418
        %v2420 = vpop.f32.mrb[0].mxu0
        %2421 = vdwg.mxu0
        %2422 = vmatprep.subr.mxu0 0.0
        %v2423 = vand.u32 %v1709, 4294901760
        %v2424 = vsub.f32 %v1709, %v2423
        %2425 = vmatpush1.msra.mxu0 %v2424
        %2426 = vmatprep.subr.mxu0 0.0
        %v2427 = vand.u32 %v1710, 4294901760
        %v2428 = vsub.f32 %v1710, %v2427
        %2429 = vmatpush1.msra.mxu0 %v2428
        %2430 = vmatprep.subr.mxu0 0.0
        %v2431 = vand.u32 %v1711, 4294901760
        %v2432 = vsub.f32 %v1711, %v2431
        %2433 = vmatpush1.msra.mxu0 %v2432
        %2434 = vmatprep.subr.mxu0 0.0
        %v2435 = vand.u32 %v1712, 4294901760
        %v2436 = vsub.f32 %v1712, %v2435
        %2437 = vmatpush1.msra.mxu0 %v2436
        %2438 = vmatprep.subr.mxu0 0.0
        %v2439 = vand.u32 %v1713, 4294901760
        %v2440 = vsub.f32 %v1713, %v2439
        %2441 = vmatpush1.msra.mxu0 %v2440
        %2442 = vmatprep.subr.mxu0 0.0
        %v2443 = vand.u32 %v1714, 4294901760
        %v2444 = vsub.f32 %v1714, %v2443
        %2445 = vmatpush1.msra.mxu0 %v2444
        %2446 = vmatprep.subr.mxu0 0.0
        %v2447 = vand.u32 %v1715, 4294901760
        %v2448 = vsub.f32 %v1715, %v2447
        %2449 = vmatpush1.msra.mxu0 %v2448
        %2450 = vmatprep.subr.mxu0 0.0
        %v2451 = vand.u32 %v1716, 4294901760
        %v2452 = vsub.f32 %v1716, %v2451
        %2453 = vmatpush1.msra.mxu0 %v2452
        %2454 = vmatprep.subr.mxu0 0.0
        %v2455 = vand.u32 %v1717, 4294901760
        %v2456 = vsub.f32 %v1717, %v2455
        %2457 = vmatpush1.msra.mxu0 %v2456
        %2458 = vmatprep.subr.mxu0 0.0
        %v2459 = vand.u32 %v1718, 4294901760
        %v2460 = vsub.f32 %v1718, %v2459
        %2461 = vmatpush1.msra.mxu0 %v2460
        %2462 = vmatprep.subr.mxu0 0.0
        %v2463 = vand.u32 %v1719, 4294901760
        %v2464 = vsub.f32 %v1719, %v2463
        %2465 = vmatpush1.msra.mxu0 %v2464
        %2466 = vmatprep.subr.mxu0 0.0
        %v2467 = vand.u32 %v1720, 4294901760
        %v2468 = vsub.f32 %v1720, %v2467
        %2469 = vmatpush1.msra.mxu0 %v2468
        %2470 = vmatprep.subr.mxu0 0.0
        %v2471 = vand.u32 %v1721, 4294901760
        %v2472 = vsub.f32 %v1721, %v2471
        %2473 = vmatpush1.msra.mxu0 %v2472
        %2474 = vmatprep.subr.mxu0 0.0
        %v2475 = vand.u32 %v1722, 4294901760
        %v2476 = vsub.f32 %v1722, %v2475
        %2477 = vmatpush1.msra.mxu0 %v2476
        %2478 = vmatprep.subr.mxu0 0.0
        %v2479 = vand.u32 %v1723, 4294901760
        %v2480 = vsub.f32 %v1723, %v2479
        %2481 = vmatpush1.msra.mxu0 %v2480
        %2482 = vmatprep.subr.mxu0 0.0
        %v2483 = vand.u32 %v1724, 4294901760
        %v2484 = vsub.f32 %v1724, %v2483
        %2485 = vmatpush1.msra.mxu0 %v2484
        %2486 = vmatprep.subr.mxu0 0.0
        %v2487 = vand.u32 %v1725, 4294901760
        %v2488 = vsub.f32 %v1725, %v2487
        %2489 = vmatpush1.msra.mxu0 %v2488
        %2490 = vmatprep.subr.mxu0 0.0
        %v2491 = vand.u32 %v1726, 4294901760
        %v2492 = vsub.f32 %v1726, %v2491
        %2493 = vmatpush1.msra.mxu0 %v2492
        %2494 = vmatprep.subr.mxu0 0.0
        %v2495 = vand.u32 %v1727, 4294901760
        %v2496 = vsub.f32 %v1727, %v2495
        %2497 = vmatpush1.msra.mxu0 %v2496
        %2498 = vmatprep.subr.mxu0 0.0
        %v2499 = vand.u32 %v1728, 4294901760
        %v2500 = vsub.f32 %v1728, %v2499
        %2501 = vmatpush1.msra.mxu0 %v2500
        %2502 = vmatprep.subr.mxu0 0.0
        %v2503 = vand.u32 %v1729, 4294901760
        %v2504 = vsub.f32 %v1729, %v2503
        %2505 = vmatpush1.msra.mxu0 %v2504
        %2506 = vmatprep.subr.mxu0 0.0
        %v2507 = vand.u32 %v1730, 4294901760
        %v2508 = vsub.f32 %v1730, %v2507
        %2509 = vmatpush1.msra.mxu0 %v2508
        %2510 = vmatprep.subr.mxu0 0.0
        %v2511 = vand.u32 %v1731, 4294901760
        %v2512 = vsub.f32 %v1731, %v2511
        %2513 = vmatpush1.msra.mxu0 %v2512
        %2514 = vmatprep.subr.mxu0 0.0
        %v2515 = vand.u32 %v1732, 4294901760
        %v2516 = vsub.f32 %v1732, %v2515
        %2517 = vmatpush1.msra.mxu0 %v2516
        %2518 = vmatprep.subr.mxu0 0.0
        %v2519 = vand.u32 %v1733, 4294901760
        %v2520 = vsub.f32 %v1733, %v2519
        %2521 = vmatpush1.msra.mxu0 %v2520
        %2522 = vmatprep.subr.mxu0 0.0
        %v2523 = vand.u32 %v1734, 4294901760
        %v2524 = vsub.f32 %v1734, %v2523
        %2525 = vmatpush1.msra.mxu0 %v2524
        %2526 = vmatprep.subr.mxu0 0.0
        %v2527 = vand.u32 %v1735, 4294901760
        %v2528 = vsub.f32 %v1735, %v2527
        %2529 = vmatpush1.msra.mxu0 %v2528
        %2530 = vmatprep.subr.mxu0 0.0
        %v2531 = vand.u32 %v1736, 4294901760
        %v2532 = vsub.f32 %v1736, %v2531
        %2533 = vmatpush1.msra.mxu0 %v2532
        %2534 = vmatprep.subr.mxu0 0.0
        %v2535 = vand.u32 %v1737, 4294901760
        %v2536 = vsub.f32 %v1737, %v2535
        %2537 = vmatpush1.msra.mxu0 %v2536
        %2538 = vmatprep.subr.mxu0 0.0
        %v2539 = vand.u32 %v1738, 4294901760
        %v2540 = vsub.f32 %v1738, %v2539
        %2541 = vmatpush1.msra.mxu0 %v2540
        %2542 = vmatprep.subr.mxu0 0.0
        %v2543 = vand.u32 %v1739, 4294901760
        %v2544 = vsub.f32 %v1739, %v2543
        %2545 = vmatpush1.msra.mxu0 %v2544
        %2546 = vmatprep.subr.mxu0 0.0
        %v2547 = vand.u32 %v1740, 4294901760
        %v2548 = vsub.f32 %v1740, %v2547
        %2549 = vmatpush1.msra.mxu0 %v2548
        %v2550 = vand.u32 %v1678, 4294901760
        %v2551 = vsub.f32 %v1678, %v2550
        %2552 = vmatprep.mubr.f32.mxu0 %v2551
        %v2553 = vand.u32 %v1677, 4294901760
        %v2554 = vsub.f32 %v1677, %v2553
        %2555 = vmatmul.mubr.f32.gmra.mrb[0].mxu0 %v2554
        %v2556 = vpop.f32.mrb[0].mxu0
        %v2557 = vadd.f32 %v2314, %v2556
        %v2558 = vpop.f32.mrb[0].mxu0
        %v2559 = vand.u32 %v1680, 4294901760
        %v2560 = vsub.f32 %v1680, %v2559
        %2561 = vmatprep.mubr.f32.mxu0 %v2560
        %v2562 = vand.u32 %v1679, 4294901760
        %v2563 = vsub.f32 %v1679, %v2562
        %2564 = vmatmul.mubr.f32.gmra.mrb[0].mxu0 %v2563
        %v2565 = vpop.f32.mrb[0].mxu0
        %v2566 = vadd.f32 %v2321, %v2565
        %v2567 = vpop.f32.mrb[0].mxu0
        %v2568 = vand.u32 %v1682, 4294901760
        %v2569 = vsub.f32 %v1682, %v2568
        %2570 = vmatprep.mubr.f32.mxu0 %v2569
        %v2571 = vand.u32 %v1681, 4294901760
        %v2572 = vsub.f32 %v1681, %v2571
        %2573 = vmatmul.mubr.f32.gmra.mrb[0].mxu0 %v2572
        %v2574 = vpop.f32.mrb[0].mxu0
        %v2575 = vadd.f32 %v2328, %v2574
        %v2576 = vpop.f32.mrb[0].mxu0
        %v2577 = vand.u32 %v1684, 4294901760
        %v2578 = vsub.f32 %v1684, %v2577
        %2579 = vmatprep.mubr.f32.mxu0 %v2578
        %v2580 = vand.u32 %v1683, 4294901760
        %v2581 = vsub.f32 %v1683, %v2580
        %2582 = vmatmul.mubr.f32.gmra.mrb[0].mxu0 %v2581
        %v2583 = vpop.f32.mrb[0].mxu0
        %v2584 = vadd.f32 %v2335, %v2583
        %v2585 = vpop.f32.mrb[0].mxu0
        %v2586 = vand.u32 %v1686, 4294901760
        %v2587 = vsub.f32 %v1686, %v2586
        %2588 = vmatprep.mubr.f32.mxu0 %v2587
        %v2589 = vand.u32 %v1685, 4294901760
        %v2590 = vsub.f32 %v1685, %v2589
        %2591 = vmatmul.mubr.f32.gmra.mrb[0].mxu0 %v2590
        %v2592 = vpop.f32.mrb[0].mxu0
        %v2593 = vadd.f32 %v2342, %v2592
        %v2594 = vpop.f32.mrb[0].mxu0
        %v2595 = vand.u32 %v1688, 4294901760
        %v2596 = vsub.f32 %v1688, %v2595
        %2597 = vmatprep.mubr.f32.mxu0 %v2596
        %v2598 = vand.u32 %v1687, 4294901760
        %v2599 = vsub.f32 %v1687, %v2598
        %2600 = vmatmul.mubr.f32.gmra.mrb[0].mxu0 %v2599
        %v2601 = vpop.f32.mrb[0].mxu0
        %v2602 = vadd.f32 %v2349, %v2601
        %v2603 = vpop.f32.mrb[0].mxu0
        %v2604 = vand.u32 %v1690, 4294901760
        %v2605 = vsub.f32 %v1690, %v2604
        %2606 = vmatprep.mubr.f32.mxu0 %v2605
        %v2607 = vand.u32 %v1689, 4294901760
        %v2608 = vsub.f32 %v1689, %v2607
        %2609 = vmatmul.mubr.f32.gmra.mrb[0].mxu0 %v2608
        %v2610 = vpop.f32.mrb[0].mxu0
        %v2611 = vadd.f32 %v2356, %v2610
        %v2612 = vpop.f32.mrb[0].mxu0
        %v2613 = vand.u32 %v1692, 4294901760
        %v2614 = vsub.f32 %v1692, %v2613
        %2615 = vmatprep.mubr.f32.mxu0 %v2614
        %v2616 = vand.u32 %v1691, 4294901760
        %v2617 = vsub.f32 %v1691, %v2616
        %2618 = vmatmul.mubr.f32.gmra.mrb[0].mxu0 %v2617
        %v2619 = vpop.f32.mrb[0].mxu0
        %v2620 = vadd.f32 %v2363, %v2619
        %v2621 = vpop.f32.mrb[0].mxu0
        %v2622 = vand.u32 %v1694, 4294901760
        %v2623 = vsub.f32 %v1694, %v2622
        %2624 = vmatprep.mubr.f32.mxu0 %v2623
        %v2625 = vand.u32 %v1693, 4294901760
        %v2626 = vsub.f32 %v1693, %v2625
        %2627 = vmatmul.mubr.f32.gmra.mrb[0].mxu0 %v2626
        %v2628 = vpop.f32.mrb[0].mxu0
        %v2629 = vadd.f32 %v2370, %v2628
        %v2630 = vpop.f32.mrb[0].mxu0
        %v2631 = vand.u32 %v1696, 4294901760
        %v2632 = vsub.f32 %v1696, %v2631
        %2633 = vmatprep.mubr.f32.mxu0 %v2632
        %v2634 = vand.u32 %v1695, 4294901760
        %v2635 = vsub.f32 %v1695, %v2634
        %2636 = vmatmul.mubr.f32.gmra.mrb[0].mxu0 %v2635
        %v2637 = vpop.f32.mrb[0].mxu0
        %v2638 = vadd.f32 %v2377, %v2637
        %v2639 = vpop.f32.mrb[0].mxu0
        %v2640 = vand.u32 %v1698, 4294901760
        %v2641 = vsub.f32 %v1698, %v2640
        %2642 = vmatprep.mubr.f32.mxu0 %v2641
        %v2643 = vand.u32 %v1697, 4294901760
        %v2644 = vsub.f32 %v1697, %v2643
        %2645 = vmatmul.mubr.f32.gmra.mrb[0].mxu0 %v2644
        %v2646 = vpop.f32.mrb[0].mxu0
        %v2647 = vadd.f32 %v2384, %v2646
        %v2648 = vpop.f32.mrb[0].mxu0
        %v2649 = vand.u32 %v1700, 4294901760
        %v2650 = vsub.f32 %v1700, %v2649
        %2651 = vmatprep.mubr.f32.mxu0 %v2650
        %v2652 = vand.u32 %v1699, 4294901760
        %v2653 = vsub.f32 %v1699, %v2652
        %2654 = vmatmul.mubr.f32.gmra.mrb[0].mxu0 %v2653
        %v2655 = vpop.f32.mrb[0].mxu0
        %v2656 = vadd.f32 %v2391, %v2655
        %v2657 = vpop.f32.mrb[0].mxu0
        %v2658 = vand.u32 %v1702, 4294901760
        %v2659 = vsub.f32 %v1702, %v2658
        %2660 = vmatprep.mubr.f32.mxu0 %v2659
        %v2661 = vand.u32 %v1701, 4294901760
        %v2662 = vsub.f32 %v1701, %v2661
        %2663 = vmatmul.mubr.f32.gmra.mrb[0].mxu0 %v2662
        %v2664 = vpop.f32.mrb[0].mxu0
        %v2665 = vadd.f32 %v2398, %v2664
        %v2666 = vpop.f32.mrb[0].mxu0
        %v2667 = vand.u32 %v1704, 4294901760
        %v2668 = vsub.f32 %v1704, %v2667
        %2669 = vmatprep.mubr.f32.mxu0 %v2668
        %v2670 = vand.u32 %v1703, 4294901760
        %v2671 = vsub.f32 %v1703, %v2670
        %2672 = vmatmul.mubr.f32.gmra.mrb[0].mxu0 %v2671
        %v2673 = vpop.f32.mrb[0].mxu0
        %v2674 = vadd.f32 %v2405, %v2673
        %v2675 = vpop.f32.mrb[0].mxu0
        %v2676 = vand.u32 %v1706, 4294901760
        %v2677 = vsub.f32 %v1706, %v2676
        %2678 = vmatprep.mubr.f32.mxu0 %v2677
        %v2679 = vand.u32 %v1705, 4294901760
        %v2680 = vsub.f32 %v1705, %v2679
        %2681 = vmatmul.mubr.f32.gmra.mrb[0].mxu0 %v2680
        %v2682 = vpop.f32.mrb[0].mxu0
        %v2683 = vadd.f32 %v2412, %v2682
        %v2684 = vpop.f32.mrb[0].mxu0
        %v2685 = vand.u32 %v1708, 4294901760
        %v2686 = vsub.f32 %v1708, %v2685
        %2687 = vmatprep.mubr.f32.mxu0 %v2686
        %v2688 = vand.u32 %v1707, 4294901760
        %v2689 = vsub.f32 %v1707, %v2688
        %2690 = vmatmul.mubr.f32.gmra.mrb[0].mxu0 %v2689
        %v2691 = vpop.f32.mrb[0].mxu0
        %v2692 = vadd.f32 %v2419, %v2691
        %v2693 = vpop.f32.mrb[0].mxu0
        %2694 = vdwg.mxu0
        %2695 = vmatprep.subr.mxu0 0.0
        %v2696 = vand.u32 %v1709, 4294901760
        %2697 = vmatpush1.msra.mxu0 %v2696
        %2698 = vmatprep.subr.mxu0 0.0
        %v2699 = vand.u32 %v1710, 4294901760
        %2700 = vmatpush1.msra.mxu0 %v2699
        %2701 = vmatprep.subr.mxu0 0.0
        %v2702 = vand.u32 %v1711, 4294901760
        %2703 = vmatpush1.msra.mxu0 %v2702
        %2704 = vmatprep.subr.mxu0 0.0
        %v2705 = vand.u32 %v1712, 4294901760
        %2706 = vmatpush1.msra.mxu0 %v2705
        %2707 = vmatprep.subr.mxu0 0.0
        %v2708 = vand.u32 %v1713, 4294901760
        %2709 = vmatpush1.msra.mxu0 %v2708
        %2710 = vmatprep.subr.mxu0 0.0
        %v2711 = vand.u32 %v1714, 4294901760
        %2712 = vmatpush1.msra.mxu0 %v2711
        %2713 = vmatprep.subr.mxu0 0.0
        %v2714 = vand.u32 %v1715, 4294901760
        %2715 = vmatpush1.msra.mxu0 %v2714
        %2716 = vmatprep.subr.mxu0 0.0
        %v2717 = vand.u32 %v1716, 4294901760
        %2718 = vmatpush1.msra.mxu0 %v2717
        %2719 = vmatprep.subr.mxu0 0.0
        %v2720 = vand.u32 %v1717, 4294901760
        %2721 = vmatpush1.msra.mxu0 %v2720
        %2722 = vmatprep.subr.mxu0 0.0
        %v2723 = vand.u32 %v1718, 4294901760
        %2724 = vmatpush1.msra.mxu0 %v2723
        %2725 = vmatprep.subr.mxu0 0.0
        %v2726 = vand.u32 %v1719, 4294901760
        %2727 = vmatpush1.msra.mxu0 %v2726
        %2728 = vmatprep.subr.mxu0 0.0
        %v2729 = vand.u32 %v1720, 4294901760
        %2730 = vmatpush1.msra.mxu0 %v2729
        %2731 = vmatprep.subr.mxu0 0.0
        %v2732 = vand.u32 %v1721, 4294901760
        %2733 = vmatpush1.msra.mxu0 %v2732
        %2734 = vmatprep.subr.mxu0 0.0
        %v2735 = vand.u32 %v1722, 4294901760
        %2736 = vmatpush1.msra.mxu0 %v2735
        %2737 = vmatprep.subr.mxu0 0.0
        %v2738 = vand.u32 %v1723, 4294901760
        %2739 = vmatpush1.msra.mxu0 %v2738
        %2740 = vmatprep.subr.mxu0 0.0
        %v2741 = vand.u32 %v1724, 4294901760
        %2742 = vmatpush1.msra.mxu0 %v2741
        %2743 = vmatprep.subr.mxu0 0.0
        %v2744 = vand.u32 %v1725, 4294901760
        %2745 = vmatpush1.msra.mxu0 %v2744
        %2746 = vmatprep.subr.mxu0 0.0
        %v2747 = vand.u32 %v1726, 4294901760
        %2748 = vmatpush1.msra.mxu0 %v2747
        %2749 = vmatprep.subr.mxu0 0.0
        %v2750 = vand.u32 %v1727, 4294901760
        %2751 = vmatpush1.msra.mxu0 %v2750
        %2752 = vmatprep.subr.mxu0 0.0
        %v2753 = vand.u32 %v1728, 4294901760
        %2754 = vmatpush1.msra.mxu0 %v2753
        %2755 = vmatprep.subr.mxu0 0.0
        %v2756 = vand.u32 %v1729, 4294901760
        %2757 = vmatpush1.msra.mxu0 %v2756
        %2758 = vmatprep.subr.mxu0 0.0
        %v2759 = vand.u32 %v1730, 4294901760
        %2760 = vmatpush1.msra.mxu0 %v2759
        %2761 = vmatprep.subr.mxu0 0.0
        %v2762 = vand.u32 %v1731, 4294901760
        %2763 = vmatpush1.msra.mxu0 %v2762
        %2764 = vmatprep.subr.mxu0 0.0
        %v2765 = vand.u32 %v1732, 4294901760
        %2766 = vmatpush1.msra.mxu0 %v2765
        %2767 = vmatprep.subr.mxu0 0.0
        %v2768 = vand.u32 %v1733, 4294901760
        %2769 = vmatpush1.msra.mxu0 %v2768
        %2770 = vmatprep.subr.mxu0 0.0
        %v2771 = vand.u32 %v1734, 4294901760
        %2772 = vmatpush1.msra.mxu0 %v2771
        %2773 = vmatprep.subr.mxu0 0.0
        %v2774 = vand.u32 %v1735, 4294901760
        %2775 = vmatpush1.msra.mxu0 %v2774
        %2776 = vmatprep.subr.mxu0 0.0
        %v2777 = vand.u32 %v1736, 4294901760
        %2778 = vmatpush1.msra.mxu0 %v2777
        %2779 = vmatprep.subr.mxu0 0.0
        %v2780 = vand.u32 %v1737, 4294901760
        %2781 = vmatpush1.msra.mxu0 %v2780
        %2782 = vmatprep.subr.mxu0 0.0
        %v2783 = vand.u32 %v1738, 4294901760
        %2784 = vmatpush1.msra.mxu0 %v2783
        %2785 = vmatprep.subr.mxu0 0.0
        %v2786 = vand.u32 %v1739, 4294901760
        %2787 = vmatpush1.msra.mxu0 %v2786
        %2788 = vmatprep.subr.mxu0 0.0
        %v2789 = vand.u32 %v1740, 4294901760
        %2790 = vmatpush1.msra.mxu0 %v2789
        %v2791 = vand.u32 %v1678, 4294901760
        %v2792 = vsub.f32 %v1678, %v2791
        %v2793 = vand.u32 %v2792, 4294901760
        %2794 = vmatprep.mubr.f32.mxu0 %v2793
        %v2795 = vand.u32 %v1677, 4294901760
        %v2796 = vsub.f32 %v1677, %v2795
        %v2797 = vand.u32 %v2796, 4294901760
        %2798 = vmatmul.mubr.f32.gmra.mrb[0].mxu0 %v2797
        %v2799 = vpop.f32.mrb[0].mxu0
        %v2800 = vadd.f32 %v2557, %v2799
        %v2801 = vpop.f32.mrb[0].mxu0
        %v2802 = vand.u32 %v1680, 4294901760
        %v2803 = vsub.f32 %v1680, %v2802
        %v2804 = vand.u32 %v2803, 4294901760
        %2805 = vmatprep.mubr.f32.mxu0 %v2804
        %v2806 = vand.u32 %v1679, 4294901760
        %v2807 = vsub.f32 %v1679, %v2806
        %v2808 = vand.u32 %v2807, 4294901760
        %2809 = vmatmul.mubr.f32.gmra.mrb[0].mxu0 %v2808
        %v2810 = vpop.f32.mrb[0].mxu0
        %v2811 = vadd.f32 %v2566, %v2810
        %v2812 = vpop.f32.mrb[0].mxu0
        %v2813 = vand.u32 %v1682, 4294901760
        %v2814 = vsub.f32 %v1682, %v2813
        %v2815 = vand.u32 %v2814, 4294901760
        %2816 = vmatprep.mubr.f32.mxu0 %v2815
        %v2817 = vand.u32 %v1681, 4294901760
        %v2818 = vsub.f32 %v1681, %v2817
        %v2819 = vand.u32 %v2818, 4294901760
        %2820 = vmatmul.mubr.f32.gmra.mrb[0].mxu0 %v2819
        %v2821 = vpop.f32.mrb[0].mxu0
        %v2822 = vadd.f32 %v2575, %v2821
        %v2823 = vpop.f32.mrb[0].mxu0
        %v2824 = vand.u32 %v1684, 4294901760
        %v2825 = vsub.f32 %v1684, %v2824
        %v2826 = vand.u32 %v2825, 4294901760
        %2827 = vmatprep.mubr.f32.mxu0 %v2826
        %v2828 = vand.u32 %v1683, 4294901760
        %v2829 = vsub.f32 %v1683, %v2828
        %v2830 = vand.u32 %v2829, 4294901760
        %2831 = vmatmul.mubr.f32.gmra.mrb[0].mxu0 %v2830
        %v2832 = vpop.f32.mrb[0].mxu0
        %v2833 = vadd.f32 %v2584, %v2832
        %v2834 = vpop.f32.mrb[0].mxu0
        %v2835 = vand.u32 %v1686, 4294901760
        %v2836 = vsub.f32 %v1686, %v2835
        %v2837 = vand.u32 %v2836, 4294901760
        %2838 = vmatprep.mubr.f32.mxu0 %v2837
        %v2839 = vand.u32 %v1685, 4294901760
        %v2840 = vsub.f32 %v1685, %v2839
        %v2841 = vand.u32 %v2840, 4294901760
        %2842 = vmatmul.mubr.f32.gmra.mrb[0].mxu0 %v2841
        %v2843 = vpop.f32.mrb[0].mxu0
        %v2844 = vadd.f32 %v2593, %v2843
        %v2845 = vpop.f32.mrb[0].mxu0
        %v2846 = vand.u32 %v1688, 4294901760
        %v2847 = vsub.f32 %v1688, %v2846
        %v2848 = vand.u32 %v2847, 4294901760
        %2849 = vmatprep.mubr.f32.mxu0 %v2848
        %v2850 = vand.u32 %v1687, 4294901760
        %v2851 = vsub.f32 %v1687, %v2850
        %v2852 = vand.u32 %v2851, 4294901760
        %2853 = vmatmul.mubr.f32.gmra.mrb[0].mxu0 %v2852
        %v2854 = vpop.f32.mrb[0].mxu0
        %v2855 = vadd.f32 %v2602, %v2854
        %v2856 = vpop.f32.mrb[0].mxu0
        %v2857 = vand.u32 %v1690, 4294901760
        %v2858 = vsub.f32 %v1690, %v2857
        %v2859 = vand.u32 %v2858, 4294901760
        %2860 = vmatprep.mubr.f32.mxu0 %v2859
        %v2861 = vand.u32 %v1689, 4294901760
        %v2862 = vsub.f32 %v1689, %v2861
        %v2863 = vand.u32 %v2862, 4294901760
        %2864 = vmatmul.mubr.f32.gmra.mrb[0].mxu0 %v2863
        %v2865 = vpop.f32.mrb[0].mxu0
        %v2866 = vadd.f32 %v2611, %v2865
        %v2867 = vpop.f32.mrb[0].mxu0
        %v2868 = vand.u32 %v1692, 4294901760
        %v2869 = vsub.f32 %v1692, %v2868
        %v2870 = vand.u32 %v2869, 4294901760
        %2871 = vmatprep.mubr.f32.mxu0 %v2870
        %v2872 = vand.u32 %v1691, 4294901760
        %v2873 = vsub.f32 %v1691, %v2872
        %v2874 = vand.u32 %v2873, 4294901760
        %2875 = vmatmul.mubr.f32.gmra.mrb[0].mxu0 %v2874
        %v2876 = vpop.f32.mrb[0].mxu0
        %v2877 = vadd.f32 %v2620, %v2876
        %v2878 = vpop.f32.mrb[0].mxu0
        %v2879 = vand.u32 %v1694, 4294901760
        %v2880 = vsub.f32 %v1694, %v2879
        %v2881 = vand.u32 %v2880, 4294901760
        %2882 = vmatprep.mubr.f32.mxu0 %v2881
        %v2883 = vand.u32 %v1693, 4294901760
        %v2884 = vsub.f32 %v1693, %v2883
        %v2885 = vand.u32 %v2884, 4294901760
        %2886 = vmatmul.mubr.f32.gmra.mrb[0].mxu0 %v2885
        %v2887 = vpop.f32.mrb[0].mxu0
        %v2888 = vadd.f32 %v2629, %v2887
        %v2889 = vpop.f32.mrb[0].mxu0
        %v2890 = vand.u32 %v1696, 4294901760
        %v2891 = vsub.f32 %v1696, %v2890
        %v2892 = vand.u32 %v2891, 4294901760
        %2893 = vmatprep.mubr.f32.mxu0 %v2892
        %v2894 = vand.u32 %v1695, 4294901760
        %v2895 = vsub.f32 %v1695, %v2894
        %v2896 = vand.u32 %v2895, 4294901760
        %2897 = vmatmul.mubr.f32.gmra.mrb[0].mxu0 %v2896
        %v2898 = vpop.f32.mrb[0].mxu0
        %v2899 = vadd.f32 %v2638, %v2898
        %v2900 = vpop.f32.mrb[0].mxu0
        %v2901 = vand.u32 %v1698, 4294901760
        %v2902 = vsub.f32 %v1698, %v2901
        %v2903 = vand.u32 %v2902, 4294901760
        %2904 = vmatprep.mubr.f32.mxu0 %v2903
        %v2905 = vand.u32 %v1697, 4294901760
        %v2906 = vsub.f32 %v1697, %v2905
        %v2907 = vand.u32 %v2906, 4294901760
        %2908 = vmatmul.mubr.f32.gmra.mrb[0].mxu0 %v2907
        %v2909 = vpop.f32.mrb[0].mxu0
        %v2910 = vadd.f32 %v2647, %v2909
        %v2911 = vpop.f32.mrb[0].mxu0
        %v2912 = vand.u32 %v1700, 4294901760
        %v2913 = vsub.f32 %v1700, %v2912
        %v2914 = vand.u32 %v2913, 4294901760
        %2915 = vmatprep.mubr.f32.mxu0 %v2914
        %v2916 = vand.u32 %v1699, 4294901760
        %v2917 = vsub.f32 %v1699, %v2916
        %v2918 = vand.u32 %v2917, 4294901760
        %2919 = vmatmul.mubr.f32.gmra.mrb[0].mxu0 %v2918
        %v2920 = vpop.f32.mrb[0].mxu0
        %v2921 = vadd.f32 %v2656, %v2920
        %v2922 = vpop.f32.mrb[0].mxu0
        %v2923 = vand.u32 %v1702, 4294901760
        %v2924 = vsub.f32 %v1702, %v2923
        %v2925 = vand.u32 %v2924, 4294901760
        %2926 = vmatprep.mubr.f32.mxu0 %v2925
        %v2927 = vand.u32 %v1701, 4294901760
        %v2928 = vsub.f32 %v1701, %v2927
        %v2929 = vand.u32 %v2928, 4294901760
        %2930 = vmatmul.mubr.f32.gmra.mrb[0].mxu0 %v2929
        %v2931 = vpop.f32.mrb[0].mxu0
        %v2932 = vadd.f32 %v2665, %v2931
        %v2933 = vpop.f32.mrb[0].mxu0
        %v2934 = vand.u32 %v1704, 4294901760
        %v2935 = vsub.f32 %v1704, %v2934
        %v2936 = vand.u32 %v2935, 4294901760
        %2937 = vmatprep.mubr.f32.mxu0 %v2936
        %v2938 = vand.u32 %v1703, 4294901760
        %v2939 = vsub.f32 %v1703, %v2938
        %v2940 = vand.u32 %v2939, 4294901760
        %2941 = vmatmul.mubr.f32.gmra.mrb[0].mxu0 %v2940
        %v2942 = vpop.f32.mrb[0].mxu0
        %v2943 = vadd.f32 %v2674, %v2942
        %v2944 = vpop.f32.mrb[0].mxu0
        %v2945 = vand.u32 %v1706, 4294901760
        %v2946 = vsub.f32 %v1706, %v2945
        %v2947 = vand.u32 %v2946, 4294901760
        %2948 = vmatprep.mubr.f32.mxu0 %v2947
        %v2949 = vand.u32 %v1705, 4294901760
        %v2950 = vsub.f32 %v1705, %v2949
        %v2951 = vand.u32 %v2950, 4294901760
        %2952 = vmatmul.mubr.f32.gmra.mrb[0].mxu0 %v2951
        %v2953 = vpop.f32.mrb[0].mxu0
        %v2954 = vadd.f32 %v2683, %v2953
        %v2955 = vpop.f32.mrb[0].mxu0
        %v2956 = vand.u32 %v1708, 4294901760
        %v2957 = vsub.f32 %v1708, %v2956
        %v2958 = vand.u32 %v2957, 4294901760
        %2959 = vmatprep.mubr.f32.mxu0 %v2958
        %v2960 = vand.u32 %v1707, 4294901760
        %v2961 = vsub.f32 %v1707, %v2960
        %v2962 = vand.u32 %v2961, 4294901760
        %2963 = vmatmul.mubr.f32.gmra.mrb[0].mxu0 %v2962
        %v2964 = vpop.f32.mrb[0].mxu0
        %v2965 = vadd.f32 %v2692, %v2964
        %v2966 = vpop.f32.mrb[0].mxu0
        %2967 = vdwg.mxu0
        %2968 = vmatprep.subr.mxu0 0.0
        %v2969 = vand.u32 %v1709, 4294901760
        %v2970 = vsub.f32 %v1709, %v2969
        %v2971 = vand.u32 %v2970, 4294901760
        %2972 = vmatpush1.msra.mxu0 %v2971
        %2973 = vmatprep.subr.mxu0 0.0
        %v2974 = vand.u32 %v1710, 4294901760
        %v2975 = vsub.f32 %v1710, %v2974
        %v2976 = vand.u32 %v2975, 4294901760
        %2977 = vmatpush1.msra.mxu0 %v2976
        %2978 = vmatprep.subr.mxu0 0.0
        %v2979 = vand.u32 %v1711, 4294901760
        %v2980 = vsub.f32 %v1711, %v2979
        %v2981 = vand.u32 %v2980, 4294901760
        %2982 = vmatpush1.msra.mxu0 %v2981
        %2983 = vmatprep.subr.mxu0 0.0
        %v2984 = vand.u32 %v1712, 4294901760
        %v2985 = vsub.f32 %v1712, %v2984
        %v2986 = vand.u32 %v2985, 4294901760
        %2987 = vmatpush1.msra.mxu0 %v2986
        %2988 = vmatprep.subr.mxu0 0.0
        %v2989 = vand.u32 %v1713, 4294901760
        %v2990 = vsub.f32 %v1713, %v2989
        %v2991 = vand.u32 %v2990, 4294901760
        %2992 = vmatpush1.msra.mxu0 %v2991
        %2993 = vmatprep.subr.mxu0 0.0
        %v2994 = vand.u32 %v1714, 4294901760
        %v2995 = vsub.f32 %v1714, %v2994
        %v2996 = vand.u32 %v2995, 4294901760
        %2997 = vmatpush1.msra.mxu0 %v2996
        %2998 = vmatprep.subr.mxu0 0.0
        %v2999 = vand.u32 %v1715, 4294901760
        %v3000 = vsub.f32 %v1715, %v2999
        %v3001 = vand.u32 %v3000, 4294901760
        %3002 = vmatpush1.msra.mxu0 %v3001
        %3003 = vmatprep.subr.mxu0 0.0
        %v3004 = vand.u32 %v1716, 4294901760
        %v3005 = vsub.f32 %v1716, %v3004
        %v3006 = vand.u32 %v3005, 4294901760
        %3007 = vmatpush1.msra.mxu0 %v3006
        %3008 = vmatprep.subr.mxu0 0.0
        %v3009 = vand.u32 %v1717, 4294901760
        %v3010 = vsub.f32 %v1717, %v3009
        %v3011 = vand.u32 %v3010, 4294901760
        %3012 = vmatpush1.msra.mxu0 %v3011
        %3013 = vmatprep.subr.mxu0 0.0
        %v3014 = vand.u32 %v1718, 4294901760
        %v3015 = vsub.f32 %v1718, %v3014
        %v3016 = vand.u32 %v3015, 4294901760
        %3017 = vmatpush1.msra.mxu0 %v3016
        %3018 = vmatprep.subr.mxu0 0.0
        %v3019 = vand.u32 %v1719, 4294901760
        %v3020 = vsub.f32 %v1719, %v3019
        %v3021 = vand.u32 %v3020, 4294901760
        %3022 = vmatpush1.msra.mxu0 %v3021
        %3023 = vmatprep.subr.mxu0 0.0
        %v3024 = vand.u32 %v1720, 4294901760
        %v3025 = vsub.f32 %v1720, %v3024
        %v3026 = vand.u32 %v3025, 4294901760
        %3027 = vmatpush1.msra.mxu0 %v3026
        %3028 = vmatprep.subr.mxu0 0.0
        %v3029 = vand.u32 %v1721, 4294901760
        %v3030 = vsub.f32 %v1721, %v3029
        %v3031 = vand.u32 %v3030, 4294901760
        %3032 = vmatpush1.msra.mxu0 %v3031
        %3033 = vmatprep.subr.mxu0 0.0
        %v3034 = vand.u32 %v1722, 4294901760
        %v3035 = vsub.f32 %v1722, %v3034
        %v3036 = vand.u32 %v3035, 4294901760
        %3037 = vmatpush1.msra.mxu0 %v3036
        %3038 = vmatprep.subr.mxu0 0.0
        %v3039 = vand.u32 %v1723, 4294901760
        %v3040 = vsub.f32 %v1723, %v3039
        %v3041 = vand.u32 %v3040, 4294901760
        %3042 = vmatpush1.msra.mxu0 %v3041
        %3043 = vmatprep.subr.mxu0 0.0
        %v3044 = vand.u32 %v1724, 4294901760
        %v3045 = vsub.f32 %v1724, %v3044
        %v3046 = vand.u32 %v3045, 4294901760
        %3047 = vmatpush1.msra.mxu0 %v3046
        %3048 = vmatprep.subr.mxu0 0.0
        %v3049 = vand.u32 %v1725, 4294901760
        %v3050 = vsub.f32 %v1725, %v3049
        %v3051 = vand.u32 %v3050, 4294901760
        %3052 = vmatpush1.msra.mxu0 %v3051
        %3053 = vmatprep.subr.mxu0 0.0
        %v3054 = vand.u32 %v1726, 4294901760
        %v3055 = vsub.f32 %v1726, %v3054
        %v3056 = vand.u32 %v3055, 4294901760
        %3057 = vmatpush1.msra.mxu0 %v3056
        %3058 = vmatprep.subr.mxu0 0.0
        %v3059 = vand.u32 %v1727, 4294901760
        %v3060 = vsub.f32 %v1727, %v3059
        %v3061 = vand.u32 %v3060, 4294901760
        %3062 = vmatpush1.msra.mxu0 %v3061
        %3063 = vmatprep.subr.mxu0 0.0
        %v3064 = vand.u32 %v1728, 4294901760
        %v3065 = vsub.f32 %v1728, %v3064
        %v3066 = vand.u32 %v3065, 4294901760
        %3067 = vmatpush1.msra.mxu0 %v3066
        %3068 = vmatprep.subr.mxu0 0.0
        %v3069 = vand.u32 %v1729, 4294901760
        %v3070 = vsub.f32 %v1729, %v3069
        %v3071 = vand.u32 %v3070, 4294901760
        %3072 = vmatpush1.msra.mxu0 %v3071
        %3073 = vmatprep.subr.mxu0 0.0
        %v3074 = vand.u32 %v1730, 4294901760
        %v3075 = vsub.f32 %v1730, %v3074
        %v3076 = vand.u32 %v3075, 4294901760
        %3077 = vmatpush1.msra.mxu0 %v3076
        %3078 = vmatprep.subr.mxu0 0.0
        %v3079 = vand.u32 %v1731, 4294901760
        %v3080 = vsub.f32 %v1731, %v3079
        %v3081 = vand.u32 %v3080, 4294901760
        %3082 = vmatpush1.msra.mxu0 %v3081
        %3083 = vmatprep.subr.mxu0 0.0
        %v3084 = vand.u32 %v1732, 4294901760
        %v3085 = vsub.f32 %v1732, %v3084
        %v3086 = vand.u32 %v3085, 4294901760
        %3087 = vmatpush1.msra.mxu0 %v3086
        %3088 = vmatprep.subr.mxu0 0.0
        %v3089 = vand.u32 %v1733, 4294901760
        %v3090 = vsub.f32 %v1733, %v3089
        %v3091 = vand.u32 %v3090, 4294901760
        %3092 = vmatpush1.msra.mxu0 %v3091
        %3093 = vmatprep.subr.mxu0 0.0
        %v3094 = vand.u32 %v1734, 4294901760
        %v3095 = vsub.f32 %v1734, %v3094
        %v3096 = vand.u32 %v3095, 4294901760
        %3097 = vmatpush1.msra.mxu0 %v3096
        %3098 = vmatprep.subr.mxu0 0.0
        %v3099 = vand.u32 %v1735, 4294901760
        %v3100 = vsub.f32 %v1735, %v3099
        %v3101 = vand.u32 %v3100, 4294901760
        %3102 = vmatpush1.msra.mxu0 %v3101
        %3103 = vmatprep.subr.mxu0 0.0
        %v3104 = vand.u32 %v1736, 4294901760
        %v3105 = vsub.f32 %v1736, %v3104
        %v3106 = vand.u32 %v3105, 4294901760
        %3107 = vmatpush1.msra.mxu0 %v3106
        %3108 = vmatprep.subr.mxu0 0.0
        %v3109 = vand.u32 %v1737, 4294901760
        %v3110 = vsub.f32 %v1737, %v3109
        %v3111 = vand.u32 %v3110, 4294901760
        %3112 = vmatpush1.msra.mxu0 %v3111
        %3113 = vmatprep.subr.mxu0 0.0
        %v3114 = vand.u32 %v1738, 4294901760
        %v3115 = vsub.f32 %v1738, %v3114
        %v3116 = vand.u32 %v3115, 4294901760
        %3117 = vmatpush1.msra.mxu0 %v3116
        %3118 = vmatprep.subr.mxu0 0.0
        %v3119 = vand.u32 %v1739, 4294901760
        %v3120 = vsub.f32 %v1739, %v3119
        %v3121 = vand.u32 %v3120, 4294901760
        %3122 = vmatpush1.msra.mxu0 %v3121
        %3123 = vmatprep.subr.mxu0 0.0
        %v3124 = vand.u32 %v1740, 4294901760
        %v3125 = vsub.f32 %v1740, %v3124
        %v3126 = vand.u32 %v3125, 4294901760
        %3127 = vmatpush1.msra.mxu0 %v3126
        %v3128 = vand.u32 %v1678, 4294901760
        %3129 = vmatprep.mubr.f32.mxu0 %v3128
        %v3130 = vand.u32 %v1677, 4294901760
        %3131 = vmatmul.mubr.f32.gmra.mrb[0].mxu0 %v3130
        %v3132 = vpop.f32.mrb[0].mxu0
        %v3133 = vadd.f32 %v2800, %v3132
        %v3134 = vpop.f32.mrb[0].mxu0
        %v3135 = vand.u32 %v1680, 4294901760
        %3136 = vmatprep.mubr.f32.mxu0 %v3135
        %v3137 = vand.u32 %v1679, 4294901760
        %3138 = vmatmul.mubr.f32.gmra.mrb[0].mxu0 %v3137
        %v3139 = vpop.f32.mrb[0].mxu0
        %v3140 = vadd.f32 %v2811, %v3139
        %v3141 = vpop.f32.mrb[0].mxu0
        %v3142 = vand.u32 %v1682, 4294901760
        %3143 = vmatprep.mubr.f32.mxu0 %v3142
        %v3144 = vand.u32 %v1681, 4294901760
        %3145 = vmatmul.mubr.f32.gmra.mrb[0].mxu0 %v3144
        %v3146 = vpop.f32.mrb[0].mxu0
        %v3147 = vadd.f32 %v2822, %v3146
        %v3148 = vpop.f32.mrb[0].mxu0
        %v3149 = vand.u32 %v1684, 4294901760
        %3150 = vmatprep.mubr.f32.mxu0 %v3149
        %v3151 = vand.u32 %v1683, 4294901760
        %3152 = vmatmul.mubr.f32.gmra.mrb[0].mxu0 %v3151
        %v3153 = vpop.f32.mrb[0].mxu0
        %v3154 = vadd.f32 %v2833, %v3153
        %v3155 = vpop.f32.mrb[0].mxu0
        %v3156 = vand.u32 %v1686, 4294901760
        %3157 = vmatprep.mubr.f32.mxu0 %v3156
        %v3158 = vand.u32 %v1685, 4294901760
        %3159 = vmatmul.mubr.f32.gmra.mrb[0].mxu0 %v3158
        %v3160 = vpop.f32.mrb[0].mxu0
        %v3161 = vadd.f32 %v2844, %v3160
        %v3162 = vpop.f32.mrb[0].mxu0
        %v3163 = vand.u32 %v1688, 4294901760
        %3164 = vmatprep.mubr.f32.mxu0 %v3163
        %v3165 = vand.u32 %v1687, 4294901760
        %3166 = vmatmul.mubr.f32.gmra.mrb[0].mxu0 %v3165
        %v3167 = vpop.f32.mrb[0].mxu0
        %v3168 = vadd.f32 %v2855, %v3167
        %v3169 = vpop.f32.mrb[0].mxu0
        %v3170 = vand.u32 %v1690, 4294901760
        %3171 = vmatprep.mubr.f32.mxu0 %v3170
        %v3172 = vand.u32 %v1689, 4294901760
        %3173 = vmatmul.mubr.f32.gmra.mrb[0].mxu0 %v3172
        %v3174 = vpop.f32.mrb[0].mxu0
        %v3175 = vadd.f32 %v2866, %v3174
        %v3176 = vpop.f32.mrb[0].mxu0
        %v3177 = vand.u32 %v1692, 4294901760
        %3178 = vmatprep.mubr.f32.mxu0 %v3177
        %v3179 = vand.u32 %v1691, 4294901760
        %3180 = vmatmul.mubr.f32.gmra.mrb[0].mxu0 %v3179
        %v3181 = vpop.f32.mrb[0].mxu0
        %v3182 = vadd.f32 %v2877, %v3181
        %v3183 = vpop.f32.mrb[0].mxu0
        %v3184 = vand.u32 %v1694, 4294901760
        %3185 = vmatprep.mubr.f32.mxu0 %v3184
        %v3186 = vand.u32 %v1693, 4294901760
        %3187 = vmatmul.mubr.f32.gmra.mrb[0].mxu0 %v3186
        %v3188 = vpop.f32.mrb[0].mxu0
        %v3189 = vadd.f32 %v2888, %v3188
        %v3190 = vpop.f32.mrb[0].mxu0
        %v3191 = vand.u32 %v1696, 4294901760
        %3192 = vmatprep.mubr.f32.mxu0 %v3191
        %v3193 = vand.u32 %v1695, 4294901760
        %3194 = vmatmul.mubr.f32.gmra.mrb[0].mxu0 %v3193
        %v3195 = vpop.f32.mrb[0].mxu0
        %v3196 = vadd.f32 %v2899, %v3195
        %v3197 = vpop.f32.mrb[0].mxu0
        %v3198 = vand.u32 %v1698, 4294901760
        %3199 = vmatprep.mubr.f32.mxu0 %v3198
        %v3200 = vand.u32 %v1697, 4294901760
        %3201 = vmatmul.mubr.f32.gmra.mrb[0].mxu0 %v3200
        %v3202 = vpop.f32.mrb[0].mxu0
        %v3203 = vadd.f32 %v2910, %v3202
        %v3204 = vpop.f32.mrb[0].mxu0
        %v3205 = vand.u32 %v1700, 4294901760
        %3206 = vmatprep.mubr.f32.mxu0 %v3205
        %v3207 = vand.u32 %v1699, 4294901760
        %3208 = vmatmul.mubr.f32.gmra.mrb[0].mxu0 %v3207
        %v3209 = vpop.f32.mrb[0].mxu0
        %v3210 = vadd.f32 %v2921, %v3209
        %v3211 = vpop.f32.mrb[0].mxu0
        %v3212 = vand.u32 %v1702, 4294901760
        %3213 = vmatprep.mubr.f32.mxu0 %v3212
        %v3214 = vand.u32 %v1701, 4294901760
        %3215 = vmatmul.mubr.f32.gmra.mrb[0].mxu0 %v3214
        %v3216 = vpop.f32.mrb[0].mxu0
        %v3217 = vadd.f32 %v2932, %v3216
        %v3218 = vpop.f32.mrb[0].mxu0
        %v3219 = vand.u32 %v1704, 4294901760
        %3220 = vmatprep.mubr.f32.mxu0 %v3219
        %v3221 = vand.u32 %v1703, 4294901760
        %3222 = vmatmul.mubr.f32.gmra.mrb[0].mxu0 %v3221
        %v3223 = vpop.f32.mrb[0].mxu0
        %v3224 = vadd.f32 %v2943, %v3223
        %v3225 = vpop.f32.mrb[0].mxu0
        %v3226 = vand.u32 %v1706, 4294901760
        %3227 = vmatprep.mubr.f32.mxu0 %v3226
        %v3228 = vand.u32 %v1705, 4294901760
        %3229 = vmatmul.mubr.f32.gmra.mrb[0].mxu0 %v3228
        %v3230 = vpop.f32.mrb[0].mxu0
        %v3231 = vadd.f32 %v2954, %v3230
        %v3232 = vpop.f32.mrb[0].mxu0
        %v3233 = vand.u32 %v1708, 4294901760
        %3234 = vmatprep.mubr.f32.mxu0 %v3233
        %v3235 = vand.u32 %v1707, 4294901760
        %3236 = vmatmul.mubr.f32.gmra.mrb[0].mxu0 %v3235
        %v3237 = vpop.f32.mrb[0].mxu0
        %v3238 = vadd.f32 %v2965, %v3237
        %v3239 = vpop.f32.mrb[0].mxu0
        %3240 = vdwg.mxu0
        %3241 = vmatprep.subr.mxu0 0.0
        %v3242 = vand.u32 %v1709, 4294901760
        %3243 = vmatpush1.msra.mxu0 %v3242
        %3244 = vmatprep.subr.mxu0 0.0
        %v3245 = vand.u32 %v1710, 4294901760
        %3246 = vmatpush1.msra.mxu0 %v3245
        %3247 = vmatprep.subr.mxu0 0.0
        %v3248 = vand.u32 %v1711, 4294901760
        %3249 = vmatpush1.msra.mxu0 %v3248
        %3250 = vmatprep.subr.mxu0 0.0
        %v3251 = vand.u32 %v1712, 4294901760
        %3252 = vmatpush1.msra.mxu0 %v3251
        %3253 = vmatprep.subr.mxu0 0.0
        %v3254 = vand.u32 %v1713, 4294901760
        %3255 = vmatpush1.msra.mxu0 %v3254
        %3256 = vmatprep.subr.mxu0 0.0
        %v3257 = vand.u32 %v1714, 4294901760
        %3258 = vmatpush1.msra.mxu0 %v3257
        %3259 = vmatprep.subr.mxu0 0.0
        %v3260 = vand.u32 %v1715, 4294901760
        %3261 = vmatpush1.msra.mxu0 %v3260
        %3262 = vmatprep.subr.mxu0 0.0
        %v3263 = vand.u32 %v1716, 4294901760
        %3264 = vmatpush1.msra.mxu0 %v3263
        %3265 = vmatprep.subr.mxu0 0.0
        %v3266 = vand.u32 %v1717, 4294901760
        %3267 = vmatpush1.msra.mxu0 %v3266
        %3268 = vmatprep.subr.mxu0 0.0
        %v3269 = vand.u32 %v1718, 4294901760
        %3270 = vmatpush1.msra.mxu0 %v3269
        %3271 = vmatprep.subr.mxu0 0.0
        %v3272 = vand.u32 %v1719, 4294901760
        %3273 = vmatpush1.msra.mxu0 %v3272
        %3274 = vmatprep.subr.mxu0 0.0
        %v3275 = vand.u32 %v1720, 4294901760
        %3276 = vmatpush1.msra.mxu0 %v3275
        %3277 = vmatprep.subr.mxu0 0.0
        %v3278 = vand.u32 %v1721, 4294901760
        %3279 = vmatpush1.msra.mxu0 %v3278
        %3280 = vmatprep.subr.mxu0 0.0
        %v3281 = vand.u32 %v1722, 4294901760
        %3282 = vmatpush1.msra.mxu0 %v3281
        %3283 = vmatprep.subr.mxu0 0.0
        %v3284 = vand.u32 %v1723, 4294901760
        %3285 = vmatpush1.msra.mxu0 %v3284
        %3286 = vmatprep.subr.mxu0 0.0
        %v3287 = vand.u32 %v1724, 4294901760
        %3288 = vmatpush1.msra.mxu0 %v3287
        %3289 = vmatprep.subr.mxu0 0.0
        %v3290 = vand.u32 %v1725, 4294901760
        %3291 = vmatpush1.msra.mxu0 %v3290
        %3292 = vmatprep.subr.mxu0 0.0
        %v3293 = vand.u32 %v1726, 4294901760
        %3294 = vmatpush1.msra.mxu0 %v3293
        %3295 = vmatprep.subr.mxu0 0.0
        %v3296 = vand.u32 %v1727, 4294901760
        %3297 = vmatpush1.msra.mxu0 %v3296
        %3298 = vmatprep.subr.mxu0 0.0
        %v3299 = vand.u32 %v1728, 4294901760
        %3300 = vmatpush1.msra.mxu0 %v3299
        %3301 = vmatprep.subr.mxu0 0.0
        %v3302 = vand.u32 %v1729, 4294901760
        %3303 = vmatpush1.msra.mxu0 %v3302
        %3304 = vmatprep.subr.mxu0 0.0
        %v3305 = vand.u32 %v1730, 4294901760
        %3306 = vmatpush1.msra.mxu0 %v3305
        %3307 = vmatprep.subr.mxu0 0.0
        %v3308 = vand.u32 %v1731, 4294901760
        %3309 = vmatpush1.msra.mxu0 %v3308
        %3310 = vmatprep.subr.mxu0 0.0
        %v3311 = vand.u32 %v1732, 4294901760
        %3312 = vmatpush1.msra.mxu0 %v3311
        %3313 = vmatprep.subr.mxu0 0.0
        %v3314 = vand.u32 %v1733, 4294901760
        %3315 = vmatpush1.msra.mxu0 %v3314
        %3316 = vmatprep.subr.mxu0 0.0
        %v3317 = vand.u32 %v1734, 4294901760
        %3318 = vmatpush1.msra.mxu0 %v3317
        %3319 = vmatprep.subr.mxu0 0.0
        %v3320 = vand.u32 %v1735, 4294901760
        %3321 = vmatpush1.msra.mxu0 %v3320
        %3322 = vmatprep.subr.mxu0 0.0
        %v3323 = vand.u32 %v1736, 4294901760
        %3324 = vmatpush1.msra.mxu0 %v3323
        %3325 = vmatprep.subr.mxu0 0.0
        %v3326 = vand.u32 %v1737, 4294901760
        %3327 = vmatpush1.msra.mxu0 %v3326
        %3328 = vmatprep.subr.mxu0 0.0
        %v3329 = vand.u32 %v1738, 4294901760
        %3330 = vmatpush1.msra.mxu0 %v3329
        %3331 = vmatprep.subr.mxu0 0.0
        %v3332 = vand.u32 %v1739, 4294901760
        %3333 = vmatpush1.msra.mxu0 %v3332
        %3334 = vmatprep.subr.mxu0 0.0
        %v3335 = vand.u32 %v1740, 4294901760
        %3336 = vmatpush1.msra.mxu0 %v3335
        %v3337 = vand.u32 %v1678, 4294901760
        %3338 = vmatprep.mubr.f32.mxu0 %v3337
        %v3339 = vand.u32 %v1677, 4294901760
        %3340 = vmatmul.mubr.f32.gmra.mrb[0].mxu0 %v3339
        %v3341 = vpop.f32.mrb[0].mxu0
        %v3342 = vadd.f32 %v3133, %v3341
        %v3343 = vpop.f32.mrb[0].mxu0
        %v3344 = vand.u32 %v1680, 4294901760
        %3345 = vmatprep.mubr.f32.mxu0 %v3344
        %v3346 = vand.u32 %v1679, 4294901760
        %3347 = vmatmul.mubr.f32.gmra.mrb[0].mxu0 %v3346
        %v3348 = vpop.f32.mrb[0].mxu0
        %v3349 = vadd.f32 %v3140, %v3348
        %v3350 = vpop.f32.mrb[0].mxu0
        %v3351 = vand.u32 %v1682, 4294901760
        %3352 = vmatprep.mubr.f32.mxu0 %v3351
        %v3353 = vand.u32 %v1681, 4294901760
        %3354 = vmatmul.mubr.f32.gmra.mrb[0].mxu0 %v3353
        %v3355 = vpop.f32.mrb[0].mxu0
        %v3356 = vadd.f32 %v3147, %v3355
        %v3357 = vpop.f32.mrb[0].mxu0
        %v3358 = vand.u32 %v1684, 4294901760
        %3359 = vmatprep.mubr.f32.mxu0 %v3358
        %v3360 = vand.u32 %v1683, 4294901760
        %3361 = vmatmul.mubr.f32.gmra.mrb[0].mxu0 %v3360
        %v3362 = vpop.f32.mrb[0].mxu0
        %v3363 = vadd.f32 %v3154, %v3362
        %v3364 = vpop.f32.mrb[0].mxu0
        %v3365 = vand.u32 %v1686, 4294901760
        %3366 = vmatprep.mubr.f32.mxu0 %v3365
        %v3367 = vand.u32 %v1685, 4294901760
        %3368 = vmatmul.mubr.f32.gmra.mrb[0].mxu0 %v3367
        %v3369 = vpop.f32.mrb[0].mxu0
        %v3370 = vadd.f32 %v3161, %v3369
        %v3371 = vpop.f32.mrb[0].mxu0
        %v3372 = vand.u32 %v1688, 4294901760
        %3373 = vmatprep.mubr.f32.mxu0 %v3372
        %v3374 = vand.u32 %v1687, 4294901760
        %3375 = vmatmul.mubr.f32.gmra.mrb[0].mxu0 %v3374
        %v3376 = vpop.f32.mrb[0].mxu0
        %v3377 = vadd.f32 %v3168, %v3376
        %v3378 = vpop.f32.mrb[0].mxu0
        %v3379 = vand.u32 %v1690, 4294901760
        %3380 = vmatprep.mubr.f32.mxu0 %v3379
        %v3381 = vand.u32 %v1689, 4294901760
        %3382 = vmatmul.mubr.f32.gmra.mrb[0].mxu0 %v3381
        %v3383 = vpop.f32.mrb[0].mxu0
        %v3384 = vadd.f32 %v3175, %v3383
        %v3385 = vpop.f32.mrb[0].mxu0
        %v3386 = vand.u32 %v1692, 4294901760
        %3387 = vmatprep.mubr.f32.mxu0 %v3386
        %v3388 = vand.u32 %v1691, 4294901760
        %3389 = vmatmul.mubr.f32.gmra.mrb[0].mxu0 %v3388
        %v3390 = vpop.f32.mrb[0].mxu0
        %v3391 = vadd.f32 %v3182, %v3390
        %v3392 = vpop.f32.mrb[0].mxu0
        %v3393 = vand.u32 %v1694, 4294901760
        %3394 = vmatprep.mubr.f32.mxu0 %v3393
        %v3395 = vand.u32 %v1693, 4294901760
        %3396 = vmatmul.mubr.f32.gmra.mrb[0].mxu0 %v3395
        %v3397 = vpop.f32.mrb[0].mxu0
        %v3398 = vadd.f32 %v3189, %v3397
        %v3399 = vpop.f32.mrb[0].mxu0
        %v3400 = vand.u32 %v1696, 4294901760
        %3401 = vmatprep.mubr.f32.mxu0 %v3400
        %v3402 = vand.u32 %v1695, 4294901760
        %3403 = vmatmul.mubr.f32.gmra.mrb[0].mxu0 %v3402
        %v3404 = vpop.f32.mrb[0].mxu0
        %v3405 = vadd.f32 %v3196, %v3404
        %v3406 = vpop.f32.mrb[0].mxu0
        %v3407 = vand.u32 %v1698, 4294901760
        %3408 = vmatprep.mubr.f32.mxu0 %v3407
        %v3409 = vand.u32 %v1697, 4294901760
        %3410 = vmatmul.mubr.f32.gmra.mrb[0].mxu0 %v3409
        %v3411 = vpop.f32.mrb[0].mxu0
        %v3412 = vadd.f32 %v3203, %v3411
        %v3413 = vpop.f32.mrb[0].mxu0
        %v3414 = vand.u32 %v1700, 4294901760
        %3415 = vmatprep.mubr.f32.mxu0 %v3414
        %v3416 = vand.u32 %v1699, 4294901760
        %3417 = vmatmul.mubr.f32.gmra.mrb[0].mxu0 %v3416
        %v3418 = vpop.f32.mrb[0].mxu0
        %v3419 = vadd.f32 %v3210, %v3418
        %v3420 = vpop.f32.mrb[0].mxu0
        %v3421 = vand.u32 %v1702, 4294901760
        %3422 = vmatprep.mubr.f32.mxu0 %v3421
        %v3423 = vand.u32 %v1701, 4294901760
        %3424 = vmatmul.mubr.f32.gmra.mrb[0].mxu0 %v3423
        %v3425 = vpop.f32.mrb[0].mxu0
        %v3426 = vadd.f32 %v3217, %v3425
        %v3427 = vpop.f32.mrb[0].mxu0
        %v3428 = vand.u32 %v1704, 4294901760
        %3429 = vmatprep.mubr.f32.mxu0 %v3428
        %v3430 = vand.u32 %v1703, 4294901760
        %3431 = vmatmul.mubr.f32.gmra.mrb[0].mxu0 %v3430
        %v3432 = vpop.f32.mrb[0].mxu0
        %v3433 = vadd.f32 %v3224, %v3432
        %v3434 = vpop.f32.mrb[0].mxu0
        %v3435 = vand.u32 %v1706, 4294901760
        %3436 = vmatprep.mubr.f32.mxu0 %v3435
        %v3437 = vand.u32 %v1705, 4294901760
        %3438 = vmatmul.mubr.f32.gmra.mrb[0].mxu0 %v3437
        %v3439 = vpop.f32.mrb[0].mxu0
        %v3440 = vadd.f32 %v3231, %v3439
        %v3441 = vpop.f32.mrb[0].mxu0
        %v3442 = vand.u32 %v1708, 4294901760
        %3443 = vmatprep.mubr.f32.mxu0 %v3442
        %v3444 = vand.u32 %v1707, 4294901760
        %3445 = vmatmul.mubr.f32.gmra.mrb[0].mxu0 %v3444
        %v3446 = vpop.f32.mrb[0].mxu0
        %v3447 = vadd.f32 %v3238, %v3446
        %v3448 = vpop.f32.mrb[0].mxu0
        %3449 = vdwg.mxu0
        %v3450 = vmax.f32 %v3342, 0.0
        %v3451 = vmax.f32 %v3349, 0.0
        %v3452 = vmax.f32 %v3356, 0.0
        %v3453 = vmax.f32 %v3363, 0.0
        %v3454 = vmax.f32 %v3370, 0.0
        %v3455 = vmax.f32 %v3377, 0.0
        %v3456 = vmax.f32 %v3384, 0.0
        %v3457 = vmax.f32 %v3391, 0.0
        %v3458 = vmax.f32 %v3398, 0.0
        %v3459 = vmax.f32 %v3405, 0.0
        %v3460 = vmax.f32 %v3412, 0.0
        %v3461 = vmax.f32 %v3419, 0.0
        %v3462 = vmax.f32 %v3426, 0.0
        %v3463 = vmax.f32 %v3433, 0.0
        %v3464 = vmax.f32 %v3440, 0.0
        %v3465 = vmax.f32 %v3447, 0.0
        %v3466 = vld [vmem:[%s5] sm:$0x1]
        %s3467 = sld [smem:[#allocation2]]
        %v3468 = vstv %s3467
        %3469 = vmatprep.subr.mxu0 0.0
        %v3470 = vand.u32 %v3450, 4294901760
        %3471 = vmatpush1.xpose.msra.mxu0 %v3470
        %3472 = vmatprep.subr.mxu0 0.0
        %v3473 = vand.u32 %v3451, 4294901760
        %3474 = vmatpush1.xpose.msra.mxu0 %v3473
        %3475 = vmatprep.subr.mxu0 0.0
        %v3476 = vand.u32 %v3452, 4294901760
        %3477 = vmatpush1.xpose.msra.mxu0 %v3476
        %3478 = vmatprep.subr.mxu0 0.0
        %v3479 = vand.u32 %v3453, 4294901760
        %3480 = vmatpush1.xpose.msra.mxu0 %v3479
        %3481 = vmatprep.subr.mxu0 0.0
        %v3482 = vand.u32 %v3454, 4294901760
        %3483 = vmatpush1.xpose.msra.mxu0 %v3482
        %3484 = vmatprep.subr.mxu0 0.0
        %v3485 = vand.u32 %v3455, 4294901760
        %3486 = vmatpush1.xpose.msra.mxu0 %v3485
        %3487 = vmatprep.subr.mxu0 0.0
        %v3488 = vand.u32 %v3456, 4294901760
        %3489 = vmatpush1.xpose.msra.mxu0 %v3488
        %3490 = vmatprep.subr.mxu0 0.0
        %v3491 = vand.u32 %v3457, 4294901760
        %3492 = vmatpush1.xpose.msra.mxu0 %v3491
        %3493 = vmatprep.subr.mxu0 0.0
        %v3494 = vand.u32 %v3458, 4294901760
        %3495 = vmatpush1.xpose.msra.mxu0 %v3494
        %3496 = vmatprep.subr.mxu0 0.0
        %v3497 = vand.u32 %v3459, 4294901760
        %3498 = vmatpush1.xpose.msra.mxu0 %v3497
        %3499 = vmatprep.subr.mxu0 0.0
        %v3500 = vand.u32 %v3460, 4294901760
        %3501 = vmatpush1.xpose.msra.mxu0 %v3500
        %3502 = vmatprep.subr.mxu0 0.0
        %v3503 = vand.u32 %v3461, 4294901760
        %3504 = vmatpush1.xpose.msra.mxu0 %v3503
        %3505 = vmatprep.subr.mxu0 0.0
        %v3506 = vand.u32 %v3462, 4294901760
        %3507 = vmatpush1.xpose.msra.mxu0 %v3506
        %3508 = vmatprep.subr.mxu0 0.0
        %v3509 = vand.u32 %v3463, 4294901760
        %3510 = vmatpush1.xpose.msra.mxu0 %v3509
        %3511 = vmatprep.subr.mxu0 0.0
        %v3512 = vand.u32 %v3464, 4294901760
        %3513 = vmatpush1.xpose.msra.mxu0 %v3512
        %3514 = vmatprep.subr.mxu0 0.0
        %v3515 = vand.u32 %v3465, 4294901760
        %3516 = vmatpush1.xpose.msra.mxu0 %v3515
        %3517 = vmatprep.subr.mxu0 0.0
        %3518 = vmatpush1.xpose.msra.mxu0 0.0
        %3519 = vmatprep.subr.mxu0 0.0
        %3520 = vmatpush1.xpose.msra.mxu0 0.0
        %3521 = vmatprep.subr.mxu0 0.0
        %3522 = vmatpush1.xpose.msra.mxu0 0.0
        %3523 = vmatprep.subr.mxu0 0.0
        %3524 = vmatpush1.xpose.msra.mxu0 0.0
        %3525 = vmatprep.subr.mxu0 0.0
        %3526 = vmatpush1.xpose.msra.mxu0 0.0
        %3527 = vmatprep.subr.mxu0 0.0
        %3528 = vmatpush1.xpose.msra.mxu0 0.0
        %3529 = vmatprep.subr.mxu0 0.0
        %3530 = vmatpush1.xpose.msra.mxu0 0.0
        %3531 = vmatprep.subr.mxu0 0.0
        %3532 = vmatpush1.xpose.msra.mxu0 0.0
        %3533 = vmatprep.subr.mxu0 0.0
        %3534 = vmatpush1.xpose.msra.mxu0 0.0
        %3535 = vmatprep.subr.mxu0 0.0
        %3536 = vmatpush1.xpose.msra.mxu0 0.0
        %3537 = vmatprep.subr.mxu0 0.0
        %3538 = vmatpush1.xpose.msra.mxu0 0.0
        %3539 = vmatprep.subr.mxu0 0.0
        %3540 = vmatpush1.xpose.msra.mxu0 0.0
        %3541 = vmatprep.subr.mxu0 0.0
        %3542 = vmatpush1.xpose.msra.mxu0 0.0
        %3543 = vmatprep.subr.mxu0 0.0
        %3544 = vmatpush1.xpose.msra.mxu0 0.0
        %3545 = vmatprep.subr.mxu0 0.0
        %3546 = vmatpush1.xpose.msra.mxu0 0.0
        %3547 = vmatprep.subr.mxu0 0.0
        %3548 = vmatpush1.xpose.msra.mxu0 0.0
        %3549 = vmatprep.mubr.f32.mxu0 0.0
        %v3550 = vand.u32 %v3466, 4294901760
        %v3551 = vsub.f32 %v3466, %v3550
        %v3552 = vand.u32 %v3551, 4294901760
        %v3553 = vsub.f32 %v3551, %v3552
        %v3554 = vand.u32 %v3553, 4294901760
        %3555 = vmatmul.mubr.f32.gmra.mrb[0].mxu0 %v3554
        %v3556 = vpop.f32.mrb[0].mxu0
        %v3557 = vadd.f32 %v3468, %v3556
        %v3558 = vpop.f32.mrb[0].mxu0
        %3559 = vdwg.mxu0
        %3560 = vmatprep.subr.mxu0 0.0
        %v3561 = vand.u32 %v3450, 4294901760
        %v3562 = vsub.f32 %v3450, %v3561
        %v3563 = vand.u32 %v3562, 4294901760
        %v3564 = vsub.f32 %v3562, %v3563
        %v3565 = vand.u32 %v3564, 4294901760
        %3566 = vmatpush1.xpose.msra.mxu0 %v3565
        %3567 = vmatprep.subr.mxu0 0.0
        %v3568 = vand.u32 %v3451, 4294901760
        %v3569 = vsub.f32 %v3451, %v3568
        %v3570 = vand.u32 %v3569, 4294901760
        %v3571 = vsub.f32 %v3569, %v3570
        %v3572 = vand.u32 %v3571, 4294901760
        %3573 = vmatpush1.xpose.msra.mxu0 %v3572
        %3574 = vmatprep.subr.mxu0 0.0
        %v3575 = vand.u32 %v3452, 4294901760
        %v3576 = vsub.f32 %v3452, %v3575
        %v3577 = vand.u32 %v3576, 4294901760
        %v3578 = vsub.f32 %v3576, %v3577
        %v3579 = vand.u32 %v3578, 4294901760
        %3580 = vmatpush1.xpose.msra.mxu0 %v3579
        %3581 = vmatprep.subr.mxu0 0.0
        %v3582 = vand.u32 %v3453, 4294901760
        %v3583 = vsub.f32 %v3453, %v3582
        %v3584 = vand.u32 %v3583, 4294901760
        %v3585 = vsub.f32 %v3583, %v3584
        %v3586 = vand.u32 %v3585, 4294901760
        %3587 = vmatpush1.xpose.msra.mxu0 %v3586
        %3588 = vmatprep.subr.mxu0 0.0
        %v3589 = vand.u32 %v3454, 4294901760
        %v3590 = vsub.f32 %v3454, %v3589
        %v3591 = vand.u32 %v3590, 4294901760
        %v3592 = vsub.f32 %v3590, %v3591
        %v3593 = vand.u32 %v3592, 4294901760
        %3594 = vmatpush1.xpose.msra.mxu0 %v3593
        %3595 = vmatprep.subr.mxu0 0.0
        %v3596 = vand.u32 %v3455, 4294901760
        %v3597 = vsub.f32 %v3455, %v3596
        %v3598 = vand.u32 %v3597, 4294901760
        %v3599 = vsub.f32 %v3597, %v3598
        %v3600 = vand.u32 %v3599, 4294901760
        %3601 = vmatpush1.xpose.msra.mxu0 %v3600
        %3602 = vmatprep.subr.mxu0 0.0
        %v3603 = vand.u32 %v3456, 4294901760
        %v3604 = vsub.f32 %v3456, %v3603
        %v3605 = vand.u32 %v3604, 4294901760
        %v3606 = vsub.f32 %v3604, %v3605
        %v3607 = vand.u32 %v3606, 4294901760
        %3608 = vmatpush1.xpose.msra.mxu0 %v3607
        %3609 = vmatprep.subr.mxu0 0.0
        %v3610 = vand.u32 %v3457, 4294901760
        %v3611 = vsub.f32 %v3457, %v3610
        %v3612 = vand.u32 %v3611, 4294901760
        %v3613 = vsub.f32 %v3611, %v3612
        %v3614 = vand.u32 %v3613, 4294901760
        %3615 = vmatpush1.xpose.msra.mxu0 %v3614
        %3616 = vmatprep.subr.mxu0 0.0
        %v3617 = vand.u32 %v3458, 4294901760
        %v3618 = vsub.f32 %v3458, %v3617
        %v3619 = vand.u32 %v3618, 4294901760
        %v3620 = vsub.f32 %v3618, %v3619
        %v3621 = vand.u32 %v3620, 4294901760
        %3622 = vmatpush1.xpose.msra.mxu0 %v3621
        %3623 = vmatprep.subr.mxu0 0.0
        %v3624 = vand.u32 %v3459, 4294901760
        %v3625 = vsub.f32 %v3459, %v3624
        %v3626 = vand.u32 %v3625, 4294901760
        %v3627 = vsub.f32 %v3625, %v3626
        %v3628 = vand.u32 %v3627, 4294901760
        %3629 = vmatpush1.xpose.msra.mxu0 %v3628
        %3630 = vmatprep.subr.mxu0 0.0
        %v3631 = vand.u32 %v3460, 4294901760
        %v3632 = vsub.f32 %v3460, %v3631
        %v3633 = vand.u32 %v3632, 4294901760
        %v3634 = vsub.f32 %v3632, %v3633
        %v3635 = vand.u32 %v3634, 4294901760
        %3636 = vmatpush1.xpose.msra.mxu0 %v3635
        %3637 = vmatprep.subr.mxu0 0.0
        %v3638 = vand.u32 %v3461, 4294901760
        %v3639 = vsub.f32 %v3461, %v3638
        %v3640 = vand.u32 %v3639, 4294901760
        %v3641 = vsub.f32 %v3639, %v3640
        %v3642 = vand.u32 %v3641, 4294901760
        %3643 = vmatpush1.xpose.msra.mxu0 %v3642
        %3644 = vmatprep.subr.mxu0 0.0
        %v3645 = vand.u32 %v3462, 4294901760
        %v3646 = vsub.f32 %v3462, %v3645
        %v3647 = vand.u32 %v3646, 4294901760
        %v3648 = vsub.f32 %v3646, %v3647
        %v3649 = vand.u32 %v3648, 4294901760
        %3650 = vmatpush1.xpose.msra.mxu0 %v3649
        %3651 = vmatprep.subr.mxu0 0.0
        %v3652 = vand.u32 %v3463, 4294901760
        %v3653 = vsub.f32 %v3463, %v3652
        %v3654 = vand.u32 %v3653, 4294901760
        %v3655 = vsub.f32 %v3653, %v3654
        %v3656 = vand.u32 %v3655, 4294901760
        %3657 = vmatpush1.xpose.msra.mxu0 %v3656
        %3658 = vmatprep.subr.mxu0 0.0
        %v3659 = vand.u32 %v3464, 4294901760
        %v3660 = vsub.f32 %v3464, %v3659
        %v3661 = vand.u32 %v3660, 4294901760
        %v3662 = vsub.f32 %v3660, %v3661
        %v3663 = vand.u32 %v3662, 4294901760
        %3664 = vmatpush1.xpose.msra.mxu0 %v3663
        %3665 = vmatprep.subr.mxu0 0.0
        %v3666 = vand.u32 %v3465, 4294901760
        %v3667 = vsub.f32 %v3465, %v3666
        %v3668 = vand.u32 %v3667, 4294901760
        %v3669 = vsub.f32 %v3667, %v3668
        %v3670 = vand.u32 %v3669, 4294901760
        %3671 = vmatpush1.xpose.msra.mxu0 %v3670
        %3672 = vmatprep.subr.mxu0 0.0
        %3673 = vmatpush1.xpose.msra.mxu0 0.0
        %3674 = vmatprep.subr.mxu0 0.0
        %3675 = vmatpush1.xpose.msra.mxu0 0.0
        %3676 = vmatprep.subr.mxu0 0.0
        %3677 = vmatpush1.xpose.msra.mxu0 0.0
        %3678 = vmatprep.subr.mxu0 0.0
        %3679 = vmatpush1.xpose.msra.mxu0 0.0
        %3680 = vmatprep.subr.mxu0 0.0
        %3681 = vmatpush1.xpose.msra.mxu0 0.0
        %3682 = vmatprep.subr.mxu0 0.0
        %3683 = vmatpush1.xpose.msra.mxu0 0.0
        %3684 = vmatprep.subr.mxu0 0.0
        %3685 = vmatpush1.xpose.msra.mxu0 0.0
        %3686 = vmatprep.subr.mxu0 0.0
        %3687 = vmatpush1.xpose.msra.mxu0 0.0
        %3688 = vmatprep.subr.mxu0 0.0
        %3689 = vmatpush1.xpose.msra.mxu0 0.0
        %3690 = vmatprep.subr.mxu0 0.0
        %3691 = vmatpush1.xpose.msra.mxu0 0.0
        %3692 = vmatprep.subr.mxu0 0.0
        %3693 = vmatpush1.xpose.msra.mxu0 0.0
        %3694 = vmatprep.subr.mxu0 0.0
        %3695 = vmatpush1.xpose.msra.mxu0 0.0
        %3696 = vmatprep.subr.mxu0 0.0
        %3697 = vmatpush1.xpose.msra.mxu0 0.0
        %3698 = vmatprep.subr.mxu0 0.0
        %3699 = vmatpush1.xpose.msra.mxu0 0.0
        %3700 = vmatprep.subr.mxu0 0.0
        %3701 = vmatpush1.xpose.msra.mxu0 0.0
        %3702 = vmatprep.subr.mxu0 0.0
        %3703 = vmatpush1.xpose.msra.mxu0 0.0
        %3704 = vmatprep.mubr.f32.mxu0 0.0
        %v3705 = vand.u32 %v3466, 4294901760
        %3706 = vmatmul.mubr.f32.gmra.mrb[0].mxu0 %v3705
        %v3707 = vpop.f32.mrb[0].mxu0
        %v3708 = vadd.f32 %v3557, %v3707
        %v3709 = vpop.f32.mrb[0].mxu0
        %3710 = vdwg.mxu0
        %3711 = vmatprep.subr.mxu0 0.0
        %v3712 = vand.u32 %v3450, 4294901760
        %v3713 = vsub.f32 %v3450, %v3712
        %3714 = vmatpush1.xpose.msra.mxu0 %v3713
        %3715 = vmatprep.subr.mxu0 0.0
        %v3716 = vand.u32 %v3451, 4294901760
        %v3717 = vsub.f32 %v3451, %v3716
        %3718 = vmatpush1.xpose.msra.mxu0 %v3717
        %3719 = vmatprep.subr.mxu0 0.0
        %v3720 = vand.u32 %v3452, 4294901760
        %v3721 = vsub.f32 %v3452, %v3720
        %3722 = vmatpush1.xpose.msra.mxu0 %v3721
        %3723 = vmatprep.subr.mxu0 0.0
        %v3724 = vand.u32 %v3453, 4294901760
        %v3725 = vsub.f32 %v3453, %v3724
        %3726 = vmatpush1.xpose.msra.mxu0 %v3725
        %3727 = vmatprep.subr.mxu0 0.0
        %v3728 = vand.u32 %v3454, 4294901760
        %v3729 = vsub.f32 %v3454, %v3728
        %3730 = vmatpush1.xpose.msra.mxu0 %v3729
        %3731 = vmatprep.subr.mxu0 0.0
        %v3732 = vand.u32 %v3455, 4294901760
        %v3733 = vsub.f32 %v3455, %v3732
        %3734 = vmatpush1.xpose.msra.mxu0 %v3733
        %3735 = vmatprep.subr.mxu0 0.0
        %v3736 = vand.u32 %v3456, 4294901760
        %v3737 = vsub.f32 %v3456, %v3736
        %3738 = vmatpush1.xpose.msra.mxu0 %v3737
        %3739 = vmatprep.subr.mxu0 0.0
        %v3740 = vand.u32 %v3457, 4294901760
        %v3741 = vsub.f32 %v3457, %v3740
        %3742 = vmatpush1.xpose.msra.mxu0 %v3741
        %3743 = vmatprep.subr.mxu0 0.0
        %v3744 = vand.u32 %v3458, 4294901760
        %v3745 = vsub.f32 %v3458, %v3744
        %3746 = vmatpush1.xpose.msra.mxu0 %v3745
        %3747 = vmatprep.subr.mxu0 0.0
        %v3748 = vand.u32 %v3459, 4294901760
        %v3749 = vsub.f32 %v3459, %v3748
        %3750 = vmatpush1.xpose.msra.mxu0 %v3749
        %3751 = vmatprep.subr.mxu0 0.0
        %v3752 = vand.u32 %v3460, 4294901760
        %v3753 = vsub.f32 %v3460, %v3752
        %3754 = vmatpush1.xpose.msra.mxu0 %v3753
        %3755 = vmatprep.subr.mxu0 0.0
        %v3756 = vand.u32 %v3461, 4294901760
        %v3757 = vsub.f32 %v3461, %v3756
        %3758 = vmatpush1.xpose.msra.mxu0 %v3757
        %3759 = vmatprep.subr.mxu0 0.0
        %v3760 = vand.u32 %v3462, 4294901760
        %v3761 = vsub.f32 %v3462, %v3760
        %3762 = vmatpush1.xpose.msra.mxu0 %v3761
        %3763 = vmatprep.subr.mxu0 0.0
        %v3764 = vand.u32 %v3463, 4294901760
        %v3765 = vsub.f32 %v3463, %v3764
        %3766 = vmatpush1.xpose.msra.mxu0 %v3765
        %3767 = vmatprep.subr.mxu0 0.0
        %v3768 = vand.u32 %v3464, 4294901760
        %v3769 = vsub.f32 %v3464, %v3768
        %3770 = vmatpush1.xpose.msra.mxu0 %v3769
        %3771 = vmatprep.subr.mxu0 0.0
        %v3772 = vand.u32 %v3465, 4294901760
        %v3773 = vsub.f32 %v3465, %v3772
        %3774 = vmatpush1.xpose.msra.mxu0 %v3773
        %3775 = vmatprep.subr.mxu0 0.0
        %3776 = vmatpush1.xpose.msra.mxu0 0.0
        %3777 = vmatprep.subr.mxu0 0.0
        %3778 = vmatpush1.xpose.msra.mxu0 0.0
        %3779 = vmatprep.subr.mxu0 0.0
        %3780 = vmatpush1.xpose.msra.mxu0 0.0
        %3781 = vmatprep.subr.mxu0 0.0
        %3782 = vmatpush1.xpose.msra.mxu0 0.0
        %3783 = vmatprep.subr.mxu0 0.0
        %3784 = vmatpush1.xpose.msra.mxu0 0.0
        %3785 = vmatprep.subr.mxu0 0.0
        %3786 = vmatpush1.xpose.msra.mxu0 0.0
        %3787 = vmatprep.subr.mxu0 0.0
        %3788 = vmatpush1.xpose.msra.mxu0 0.0
        %3789 = vmatprep.subr.mxu0 0.0
        %3790 = vmatpush1.xpose.msra.mxu0 0.0
        %3791 = vmatprep.subr.mxu0 0.0
        %3792 = vmatpush1.xpose.msra.mxu0 0.0
        %3793 = vmatprep.subr.mxu0 0.0
        %3794 = vmatpush1.xpose.msra.mxu0 0.0
        %3795 = vmatprep.subr.mxu0 0.0
        %3796 = vmatpush1.xpose.msra.mxu0 0.0
        %3797 = vmatprep.subr.mxu0 0.0
        %3798 = vmatpush1.xpose.msra.mxu0 0.0
        %3799 = vmatprep.subr.mxu0 0.0
        %3800 = vmatpush1.xpose.msra.mxu0 0.0
        %3801 = vmatprep.subr.mxu0 0.0
        %3802 = vmatpush1.xpose.msra.mxu0 0.0
        %3803 = vmatprep.subr.mxu0 0.0
        %3804 = vmatpush1.xpose.msra.mxu0 0.0
        %3805 = vmatprep.subr.mxu0 0.0
        %3806 = vmatpush1.xpose.msra.mxu0 0.0
        %3807 = vmatprep.mubr.f32.mxu0 0.0
        %v3808 = vand.u32 %v3466, 4294901760
        %v3809 = vsub.f32 %v3466, %v3808
        %3810 = vmatmul.mubr.f32.gmra.mrb[0].mxu0 %v3809
        %v3811 = vpop.f32.mrb[0].mxu0
        %v3812 = vadd.f32 %v3708, %v3811
        %v3813 = vpop.f32.mrb[0].mxu0
        %3814 = vdwg.mxu0
        %3815 = vmatprep.subr.mxu0 0.0
        %v3816 = vand.u32 %v3450, 4294901760
        %3817 = vmatpush1.xpose.msra.mxu0 %v3816
        %3818 = vmatprep.subr.mxu0 0.0
        %v3819 = vand.u32 %v3451, 4294901760
        %3820 = vmatpush1.xpose.msra.mxu0 %v3819
        %3821 = vmatprep.subr.mxu0 0.0
        %v3822 = vand.u32 %v3452, 4294901760
        %3823 = vmatpush1.xpose.msra.mxu0 %v3822
        %3824 = vmatprep.subr.mxu0 0.0
        %v3825 = vand.u32 %v3453, 4294901760
        %3826 = vmatpush1.xpose.msra.mxu0 %v3825
        %3827 = vmatprep.subr.mxu0 0.0
        %v3828 = vand.u32 %v3454, 4294901760
        %3829 = vmatpush1.xpose.msra.mxu0 %v3828
        %3830 = vmatprep.subr.mxu0 0.0
        %v3831 = vand.u32 %v3455, 4294901760
        %3832 = vmatpush1.xpose.msra.mxu0 %v3831
        %3833 = vmatprep.subr.mxu0 0.0
        %v3834 = vand.u32 %v3456, 4294901760
        %3835 = vmatpush1.xpose.msra.mxu0 %v3834
        %3836 = vmatprep.subr.mxu0 0.0
        %v3837 = vand.u32 %v3457, 4294901760
        %3838 = vmatpush1.xpose.msra.mxu0 %v3837
        %3839 = vmatprep.subr.mxu0 0.0
        %v3840 = vand.u32 %v3458, 4294901760
        %3841 = vmatpush1.xpose.msra.mxu0 %v3840
        %3842 = vmatprep.subr.mxu0 0.0
        %v3843 = vand.u32 %v3459, 4294901760
        %3844 = vmatpush1.xpose.msra.mxu0 %v3843
        %3845 = vmatprep.subr.mxu0 0.0
        %v3846 = vand.u32 %v3460, 4294901760
        %3847 = vmatpush1.xpose.msra.mxu0 %v3846
        %3848 = vmatprep.subr.mxu0 0.0
        %v3849 = vand.u32 %v3461, 4294901760
        %3850 = vmatpush1.xpose.msra.mxu0 %v3849
        %3851 = vmatprep.subr.mxu0 0.0
        %v3852 = vand.u32 %v3462, 4294901760
        %3853 = vmatpush1.xpose.msra.mxu0 %v3852
        %3854 = vmatprep.subr.mxu0 0.0
        %v3855 = vand.u32 %v3463, 4294901760
        %3856 = vmatpush1.xpose.msra.mxu0 %v3855
        %3857 = vmatprep.subr.mxu0 0.0
        %v3858 = vand.u32 %v3464, 4294901760
        %3859 = vmatpush1.xpose.msra.mxu0 %v3858
        %3860 = vmatprep.subr.mxu0 0.0
        %v3861 = vand.u32 %v3465, 4294901760
        %3862 = vmatpush1.xpose.msra.mxu0 %v3861
        %3863 = vmatprep.subr.mxu0 0.0
        %3864 = vmatpush1.xpose.msra.mxu0 0.0
        %3865 = vmatprep.subr.mxu0 0.0
        %3866 = vmatpush1.xpose.msra.mxu0 0.0
        %3867 = vmatprep.subr.mxu0 0.0
        %3868 = vmatpush1.xpose.msra.mxu0 0.0
        %3869 = vmatprep.subr.mxu0 0.0
        %3870 = vmatpush1.xpose.msra.mxu0 0.0
        %3871 = vmatprep.subr.mxu0 0.0
        %3872 = vmatpush1.xpose.msra.mxu0 0.0
        %3873 = vmatprep.subr.mxu0 0.0
        %3874 = vmatpush1.xpose.msra.mxu0 0.0
        %3875 = vmatprep.subr.mxu0 0.0
        %3876 = vmatpush1.xpose.msra.mxu0 0.0
        %3877 = vmatprep.subr.mxu0 0.0
        %3878 = vmatpush1.xpose.msra.mxu0 0.0
        %3879 = vmatprep.subr.mxu0 0.0
        %3880 = vmatpush1.xpose.msra.mxu0 0.0
        %3881 = vmatprep.subr.mxu0 0.0
        %3882 = vmatpush1.xpose.msra.mxu0 0.0
        %3883 = vmatprep.subr.mxu0 0.0
        %3884 = vmatpush1.xpose.msra.mxu0 0.0
        %3885 = vmatprep.subr.mxu0 0.0
        %3886 = vmatpush1.xpose.msra.mxu0 0.0
        %3887 = vmatprep.subr.mxu0 0.0
        %3888 = vmatpush1.xpose.msra.mxu0 0.0
        %3889 = vmatprep.subr.mxu0 0.0
        %3890 = vmatpush1.xpose.msra.mxu0 0.0
        %3891 = vmatprep.subr.mxu0 0.0
        %3892 = vmatpush1.xpose.msra.mxu0 0.0
        %3893 = vmatprep.subr.mxu0 0.0
        %3894 = vmatpush1.xpose.msra.mxu0 0.0
        %3895 = vmatprep.mubr.f32.mxu0 0.0
        %v3896 = vand.u32 %v3466, 4294901760
        %v3897 = vsub.f32 %v3466, %v3896
        %v3898 = vand.u32 %v3897, 4294901760
        %3899 = vmatmul.mubr.f32.gmra.mrb[0].mxu0 %v3898
        %v3900 = vpop.f32.mrb[0].mxu0
        %v3901 = vadd.f32 %v3812, %v3900
        %v3902 = vpop.f32.mrb[0].mxu0
        %3903 = vdwg.mxu0
        %3904 = vmatprep.subr.mxu0 0.0
        %v3905 = vand.u32 %v3450, 4294901760
        %v3906 = vsub.f32 %v3450, %v3905
        %v3907 = vand.u32 %v3906, 4294901760
        %3908 = vmatpush1.xpose.msra.mxu0 %v3907
        %3909 = vmatprep.subr.mxu0 0.0
        %v3910 = vand.u32 %v3451, 4294901760
        %v3911 = vsub.f32 %v3451, %v3910
        %v3912 = vand.u32 %v3911, 4294901760
        %3913 = vmatpush1.xpose.msra.mxu0 %v3912
        %3914 = vmatprep.subr.mxu0 0.0
        %v3915 = vand.u32 %v3452, 4294901760
        %v3916 = vsub.f32 %v3452, %v3915
        %v3917 = vand.u32 %v3916, 4294901760
        %3918 = vmatpush1.xpose.msra.mxu0 %v3917
        %3919 = vmatprep.subr.mxu0 0.0
        %v3920 = vand.u32 %v3453, 4294901760
        %v3921 = vsub.f32 %v3453, %v3920
        %v3922 = vand.u32 %v3921, 4294901760
        %3923 = vmatpush1.xpose.msra.mxu0 %v3922
        %3924 = vmatprep.subr.mxu0 0.0
        %v3925 = vand.u32 %v3454, 4294901760
        %v3926 = vsub.f32 %v3454, %v3925
        %v3927 = vand.u32 %v3926, 4294901760
        %3928 = vmatpush1.xpose.msra.mxu0 %v3927
        %3929 = vmatprep.subr.mxu0 0.0
        %v3930 = vand.u32 %v3455, 4294901760
        %v3931 = vsub.f32 %v3455, %v3930
        %v3932 = vand.u32 %v3931, 4294901760
        %3933 = vmatpush1.xpose.msra.mxu0 %v3932
        %3934 = vmatprep.subr.mxu0 0.0
        %v3935 = vand.u32 %v3456, 4294901760
        %v3936 = vsub.f32 %v3456, %v3935
        %v3937 = vand.u32 %v3936, 4294901760
        %3938 = vmatpush1.xpose.msra.mxu0 %v3937
        %3939 = vmatprep.subr.mxu0 0.0
        %v3940 = vand.u32 %v3457, 4294901760
        %v3941 = vsub.f32 %v3457, %v3940
        %v3942 = vand.u32 %v3941, 4294901760
        %3943 = vmatpush1.xpose.msra.mxu0 %v3942
        %3944 = vmatprep.subr.mxu0 0.0
        %v3945 = vand.u32 %v3458, 4294901760
        %v3946 = vsub.f32 %v3458, %v3945
        %v3947 = vand.u32 %v3946, 4294901760
        %3948 = vmatpush1.xpose.msra.mxu0 %v3947
        %3949 = vmatprep.subr.mxu0 0.0
        %v3950 = vand.u32 %v3459, 4294901760
        %v3951 = vsub.f32 %v3459, %v3950
        %v3952 = vand.u32 %v3951, 4294901760
        %3953 = vmatpush1.xpose.msra.mxu0 %v3952
        %3954 = vmatprep.subr.mxu0 0.0
        %v3955 = vand.u32 %v3460, 4294901760
        %v3956 = vsub.f32 %v3460, %v3955
        %v3957 = vand.u32 %v3956, 4294901760
        %3958 = vmatpush1.xpose.msra.mxu0 %v3957
        %3959 = vmatprep.subr.mxu0 0.0
        %v3960 = vand.u32 %v3461, 4294901760
        %v3961 = vsub.f32 %v3461, %v3960
        %v3962 = vand.u32 %v3961, 4294901760
        %3963 = vmatpush1.xpose.msra.mxu0 %v3962
        %3964 = vmatprep.subr.mxu0 0.0
        %v3965 = vand.u32 %v3462, 4294901760
        %v3966 = vsub.f32 %v3462, %v3965
        %v3967 = vand.u32 %v3966, 4294901760
        %3968 = vmatpush1.xpose.msra.mxu0 %v3967
        %3969 = vmatprep.subr.mxu0 0.0
        %v3970 = vand.u32 %v3463, 4294901760
        %v3971 = vsub.f32 %v3463, %v3970
        %v3972 = vand.u32 %v3971, 4294901760
        %3973 = vmatpush1.xpose.msra.mxu0 %v3972
        %3974 = vmatprep.subr.mxu0 0.0
        %v3975 = vand.u32 %v3464, 4294901760
        %v3976 = vsub.f32 %v3464, %v3975
        %v3977 = vand.u32 %v3976, 4294901760
        %3978 = vmatpush1.xpose.msra.mxu0 %v3977
        %3979 = vmatprep.subr.mxu0 0.0
        %v3980 = vand.u32 %v3465, 4294901760
        %v3981 = vsub.f32 %v3465, %v3980
        %v3982 = vand.u32 %v3981, 4294901760
        %3983 = vmatpush1.xpose.msra.mxu0 %v3982
        %3984 = vmatprep.subr.mxu0 0.0
        %3985 = vmatpush1.xpose.msra.mxu0 0.0
        %3986 = vmatprep.subr.mxu0 0.0
        %3987 = vmatpush1.xpose.msra.mxu0 0.0
        %3988 = vmatprep.subr.mxu0 0.0
        %3989 = vmatpush1.xpose.msra.mxu0 0.0
        %3990 = vmatprep.subr.mxu0 0.0
        %3991 = vmatpush1.xpose.msra.mxu0 0.0
        %3992 = vmatprep.subr.mxu0 0.0
        %3993 = vmatpush1.xpose.msra.mxu0 0.0
        %3994 = vmatprep.subr.mxu0 0.0
        %3995 = vmatpush1.xpose.msra.mxu0 0.0
        %3996 = vmatprep.subr.mxu0 0.0
        %3997 = vmatpush1.xpose.msra.mxu0 0.0
        %3998 = vmatprep.subr.mxu0 0.0
        %3999 = vmatpush1.xpose.msra.mxu0 0.0
        %4000 = vmatprep.subr.mxu0 0.0
        %4001 = vmatpush1.xpose.msra.mxu0 0.0
        %4002 = vmatprep.subr.mxu0 0.0
        %4003 = vmatpush1.xpose.msra.mxu0 0.0
        %4004 = vmatprep.subr.mxu0 0.0
        %4005 = vmatpush1.xpose.msra.mxu0 0.0
        %4006 = vmatprep.subr.mxu0 0.0
        %4007 = vmatpush1.xpose.msra.mxu0 0.0
        %4008 = vmatprep.subr.mxu0 0.0
        %4009 = vmatpush1.xpose.msra.mxu0 0.0
        %4010 = vmatprep.subr.mxu0 0.0
        %4011 = vmatpush1.xpose.msra.mxu0 0.0
        %4012 = vmatprep.subr.mxu0 0.0
        %4013 = vmatpush1.xpose.msra.mxu0 0.0
        %4014 = vmatprep.subr.mxu0 0.0
        %4015 = vmatpush1.xpose.msra.mxu0 0.0
        %4016 = vmatprep.mubr.f32.mxu0 0.0
        %v4017 = vand.u32 %v3466, 4294901760
        %4018 = vmatmul.mubr.f32.gmra.mrb[0].mxu0 %v4017
        %v4019 = vpop.f32.mrb[0].mxu0
        %v4020 = vadd.f32 %v3901, %v4019
        %v4021 = vpop.f32.mrb[0].mxu0
        %4022 = vdwg.mxu0
        %4023 = vmatprep.subr.mxu0 0.0
        %v4024 = vand.u32 %v3450, 4294901760
        %4025 = vmatpush1.xpose.msra.mxu0 %v4024
        %4026 = vmatprep.subr.mxu0 0.0
        %v4027 = vand.u32 %v3451, 4294901760
        %4028 = vmatpush1.xpose.msra.mxu0 %v4027
        %4029 = vmatprep.subr.mxu0 0.0
        %v4030 = vand.u32 %v3452, 4294901760
        %4031 = vmatpush1.xpose.msra.mxu0 %v4030
        %4032 = vmatprep.subr.mxu0 0.0
        %v4033 = vand.u32 %v3453, 4294901760
        %4034 = vmatpush1.xpose.msra.mxu0 %v4033
        %4035 = vmatprep.subr.mxu0 0.0
        %v4036 = vand.u32 %v3454, 4294901760
        %4037 = vmatpush1.xpose.msra.mxu0 %v4036
        %4038 = vmatprep.subr.mxu0 0.0
        %v4039 = vand.u32 %v3455, 4294901760
        %4040 = vmatpush1.xpose.msra.mxu0 %v4039
        %4041 = vmatprep.subr.mxu0 0.0
        %v4042 = vand.u32 %v3456, 4294901760
        %4043 = vmatpush1.xpose.msra.mxu0 %v4042
        %4044 = vmatprep.subr.mxu0 0.0
        %v4045 = vand.u32 %v3457, 4294901760
        %4046 = vmatpush1.xpose.msra.mxu0 %v4045
        %4047 = vmatprep.subr.mxu0 0.0
        %v4048 = vand.u32 %v3458, 4294901760
        %4049 = vmatpush1.xpose.msra.mxu0 %v4048
        %4050 = vmatprep.subr.mxu0 0.0
        %v4051 = vand.u32 %v3459, 4294901760
        %4052 = vmatpush1.xpose.msra.mxu0 %v4051
        %4053 = vmatprep.subr.mxu0 0.0
        %v4054 = vand.u32 %v3460, 4294901760
        %4055 = vmatpush1.xpose.msra.mxu0 %v4054
        %4056 = vmatprep.subr.mxu0 0.0
        %v4057 = vand.u32 %v3461, 4294901760
        %4058 = vmatpush1.xpose.msra.mxu0 %v4057
        %4059 = vmatprep.subr.mxu0 0.0
        %v4060 = vand.u32 %v3462, 4294901760
        %4061 = vmatpush1.xpose.msra.mxu0 %v4060
        %4062 = vmatprep.subr.mxu0 0.0
        %v4063 = vand.u32 %v3463, 4294901760
        %4064 = vmatpush1.xpose.msra.mxu0 %v4063
        %4065 = vmatprep.subr.mxu0 0.0
        %v4066 = vand.u32 %v3464, 4294901760
        %4067 = vmatpush1.xpose.msra.mxu0 %v4066
        %4068 = vmatprep.subr.mxu0 0.0
        %v4069 = vand.u32 %v3465, 4294901760
        %4070 = vmatpush1.xpose.msra.mxu0 %v4069
        %4071 = vmatprep.subr.mxu0 0.0
        %4072 = vmatpush1.xpose.msra.mxu0 0.0
        %4073 = vmatprep.subr.mxu0 0.0
        %4074 = vmatpush1.xpose.msra.mxu0 0.0
        %4075 = vmatprep.subr.mxu0 0.0
        %4076 = vmatpush1.xpose.msra.mxu0 0.0
        %4077 = vmatprep.subr.mxu0 0.0
        %4078 = vmatpush1.xpose.msra.mxu0 0.0
        %4079 = vmatprep.subr.mxu0 0.0
        %4080 = vmatpush1.xpose.msra.mxu0 0.0
        %4081 = vmatprep.subr.mxu0 0.0
        %4082 = vmatpush1.xpose.msra.mxu0 0.0
        %4083 = vmatprep.subr.mxu0 0.0
        %4084 = vmatpush1.xpose.msra.mxu0 0.0
        %4085 = vmatprep.subr.mxu0 0.0
        %4086 = vmatpush1.xpose.msra.mxu0 0.0
        %4087 = vmatprep.subr.mxu0 0.0
        %4088 = vmatpush1.xpose.msra.mxu0 0.0
        %4089 = vmatprep.subr.mxu0 0.0
        %4090 = vmatpush1.xpose.msra.mxu0 0.0
        %4091 = vmatprep.subr.mxu0 0.0
        %4092 = vmatpush1.xpose.msra.mxu0 0.0
        %4093 = vmatprep.subr.mxu0 0.0
        %4094 = vmatpush1.xpose.msra.mxu0 0.0
        %4095 = vmatprep.subr.mxu0 0.0
        %4096 = vmatpush1.xpose.msra.mxu0 0.0
        %4097 = vmatprep.subr.mxu0 0.0
        %4098 = vmatpush1.xpose.msra.mxu0 0.0
        %4099 = vmatprep.subr.mxu0 0.0
        %4100 = vmatpush1.xpose.msra.mxu0 0.0
        %4101 = vmatprep.subr.mxu0 0.0
        %4102 = vmatpush1.xpose.msra.mxu0 0.0
        %4103 = vmatprep.mubr.f32.mxu0 0.0
        %v4104 = vand.u32 %v3466, 4294901760
        %4105 = vmatmul.mubr.f32.gmra.mrb[0].mxu0 %v4104
        %v4106 = vpop.f32.mrb[0].mxu0
        %v4107 = vadd.f32 %v4020, %v4106
        %v4108 = vpop.f32.mrb[0].mxu0
        %4109 = vdwg.mxu0
        %4110 = vst [vmem:[%s299] sm:$0x1] %v4107
        %s4111 = sand.u32 %s183, 1
        %s4112 = scalar_lea.sflag [#allocation5], %s4111
        %s4113 = sand.u32 %s183, 1
        %s4114 = scalar_lea.vmem [#allocation6], %s4113
        // Predicated region
        $region53: #{tpu_custom_call.1} parent=47 // pred_check
          %p4115 = pneg %p193
        $region54: #{tpu_custom_call.1} parent=47 // pred_check_branch
          %4117 = sbr.rel (%p4115) target = $region56
        $region55: #{tpu_custom_call.1} parent=47 // pred_region
          %s4119 = ssub.s32 16, 16
          %4120 = vsyncadd %s4112, %s4119
          %s4121 = smul.addr %s23, 16
          %s4122 = scalar_lea.hbm %s7, %s4121
          %s4124 = sshll.u32 %s4114, 4
          %s4125 = int_to_ptr.vmem [resolvable:$true] %s4124
          %4127 = dma.vmem_to_hbm [thread:$0]  %s4125, 16, %s4122, %s4112
        $region56: #{tpu_custom_call.1} parent=47 // pred_fallthru
          _
      $region48: #{tpu_custom_call.1} parent=5 // pred_fallthru
        _
      %p4128 = scmp.le.s32.totalorder 2, %s18
      // Predicated region
      $region57: #{tpu_custom_call.1} parent=5 // pred_check
        %p4129 = pneg %p4128
      $region58: #{tpu_custom_call.1} parent=5 // pred_check_branch
        %4131 = sbr.rel (%p4129) target = $region60
      $region59: #{tpu_custom_call.1} parent=5 // pred_region
        %s4132 = ssub.s32 %s18, 2
        // Predicated region
        $region61: #{tpu_custom_call.1} parent=59 // pred_check
          %p4133 = pneg %p199
        $region62: #{tpu_custom_call.1} parent=59 // pred_check_branch
          %4135 = sbr.rel (%p4133) target = $region64
        $region63: #{tpu_custom_call.1} parent=59 // pred_region
          %s4136 = sand.u32 %s184, 1
          %s4137 = scalar_lea.sflag [#allocation5], %s4136
          %s4138 = sand.u32 %s184, 1
          %s4139 = scalar_lea.vmem [#allocation6], %s4138
          %4140 = dma.done %s4137, 16
        $region64: #{tpu_custom_call.1} parent=59 // pred_fallthru
          _
      $region60: #{tpu_custom_call.1} parent=5 // pred_fallthru
        _
    $region6: #{tpu_custom_call.1} parent=1 // loop_footer
      %s22 = sadd.s32 1, %s18
    $region7: #{tpu_custom_call.1} parent=1 // loop_footer_branch
      %17 = sbr.rel target = $region3
    $region8: #{tpu_custom_call.1} parent=1 // loop_exit
      _
    %4141 = vsyncpa [#allocation4], 1
    %s4142 = scalar_lea.sflag [#allocation4], 1
    %4143 = vsyncpa %s4142, 1
    %4144 = vsyncpa [#allocation5], 1
    %s4145 = scalar_lea.sflag [#allocation5], 1
    %4146 = vsyncpa %s4145, 1

</llo_original>
